<compile_context>
chip_gen: v7x
topology: tpu7x:2x2x1
jax: 0.10.0
libtpu: 0.0.40
codegen_flags: <defaults>
</compile_context>

<pallas_src>
import jax
import jax.numpy as jnp
from jax.experimental import pallas as pl
from jax.experimental.pallas import tpu as pltpu

# ----------------------------- config (small) ------------------------------
B = 2            # batch
C_IN = 3         # image channels
IMG = 16         # image spatial size
PATCH = 4        # patch size -> 4x4 = 16 visual tokens
L = 8            # word length
VOCAB = 64
WORD_DIM = 32    # text feature dim
VIS_DIM = 32     # visual / decoder dim  (cfg.vis_dim)
NHEAD = 2        # decoder heads         (cfg.num_head)
DIM_FFN = 64     # decoder FFN dim       (cfg.dim_ffn)

HW = (IMG // PATCH) * (IMG // PATCH)   # number of visual tokens
PATCH_DIM = C_IN * PATCH * PATCH       # flattened patch length
DH = VIS_DIM // NHEAD                  # per-head dim


# ------------------------------ fused kernel --------------------------------
def _etris_fused_kernel(
    # per-sample inputs
    patches_ref,          # (HW, PATCH_DIM)
    word_row_ref,         # (1, L)  int32
    word_col_ref,         # (L, 1)  int32
    # shared weights
    tok_emb_ref,          # (VOCAB, WORD_DIM)
    w_patch_ref, b_patch_ref,
    w_txt_ref, b_txt_ref,
    w_state_ref, b_state_ref,
    w_vis_ref, b_vis_ref,
    w_gate_ref, b_gate_ref,
    ln1_g_ref, ln1_b_ref,
    w_q_ref, b_q_ref,
    w_kv_ref, b_kv_ref,
    w_o_ref, b_o_ref,
    ln2_g_ref, ln2_b_ref,
    w_ff1_ref, b_ff1_ref,
    w_ff2_ref, b_ff2_ref,
    w_pf_ref, b_pf_ref,
    w_ps_ref, b_ps_ref,
    # output
    pred_ref,             # (HW, 1)
):
    f32 = jnp.float32

    def mm(x, w_ref, b_ref, act=None):
        y = jnp.dot(x, w_ref[...], preferred_element_type=f32) + b_ref[...]
        if act == "relu":
            y = jnp.maximum(y, 0.0)
        return y

    def layernorm(x, g_ref, b_ref):
        mu = jnp.mean(x, axis=-1, keepdims=True)
        var = jnp.mean(jnp.square(x - mu), axis=-1, keepdims=True)
        return (x - mu) * jax.lax.rsqrt(var + 1e-5) * g_ref[...] + b_ref[...]

    # ---------------- text branch: embed, project, pooled sentence state ----
    wid_row = word_row_ref[...]                       # (1, L)  int32
    wid_col = word_col_ref[...]                       # (L, 1)  int32

    # token embedding as one-hot matmul over the VMEM-resident table
    lane_ids = jax.lax.broadcasted_iota(jnp.int32, (L, VOCAB), 1)
    onehot = (lane_ids == wid_col).astype(f32)        # (L, VOCAB)
    word_emb = jnp.dot(onehot, tok_emb_ref[...],
                       preferred_element_type=f32)    # (L, WORD_DIM)
    word_feat = mm(word_emb, w_txt_ref, b_txt_ref)    # (L, WORD_DIM)

    pad_row = (wid_row == 0).astype(f32)              # (1, L)  1.0 at padding
    valid = 1.0 - pad_row                             # (1, L)
    denom = jnp.maximum(jnp.sum(valid, axis=-1, keepdims=True), 1.0)
    pooled = jnp.dot(valid, word_feat, preferred_element_type=f32) / denom
    state = mm(pooled, w_state_ref, b_state_ref)      # (1, WORD_DIM)

    # ---------------- visual branch + HA neck (gated fusion) ----------------
    vis = mm(patches_ref[...], w_patch_ref, b_patch_ref)   # (HW, VIS_DIM)
    vis_p = mm(vis, w_vis_ref, b_vis_ref)                  # (HW, VIS_DIM)
    gate = mm(state, w_gate_ref, b_gate_ref)               # (1,  VIS_DIM)
    fq = vis_p * jax.nn.sigmoid(gate)                      # (HW, VIS_DIM)

    # ---------------- GA decoder: masked cross attention + FFN --------------
    x = layernorm(fq, ln1_g_ref, ln1_b_ref)
    q = mm(x, w_q_ref, b_q_ref)                            # (HW, VIS_DIM)
    kv = mm(word_feat, w_kv_ref, b_kv_ref)                 # (L, 2*VIS_DIM)
    k = kv[:, :VIS_DIM]
    v = kv[:, VIS_DIM:]

    scale = 1.0 / (DH ** 0.5)
    attn_proj = None
    for hh in range(NHEAD):                                # static unroll
        lo, hi = hh * DH, (hh + 1) * DH
        qh, kh, vh = q[:, lo:hi], k[:, lo:hi], v[:, lo:hi]
        s = jax.lax.dot_general(qh, kh, (((1,), (1,)), ((), ())),
                                preferred_element_type=f32) * scale   # (HW, L)
        s = s - pad_row * 1e9                              # mask padded words
        s = s - jnp.max(s, axis=-1, keepdims=True)
        p = jnp.exp(s)
        p = p * pl.reciprocal(jnp.sum(p, axis=-1, keepdims=True), approx=True)
        head = jnp.dot(p, vh, preferred_element_type=f32)  # (HW, DH)
        # concat(heads) @ w_o == sum_h head_h @ w_o[rows_h]  (no concat needed)
        contrib = jnp.dot(head, w_o_ref[lo:hi, :], preferred_element_type=f32)
        attn_proj = contrib if attn_proj is None else attn_proj + contrib
    attn_proj = attn_proj + b_o_ref[...]
    fq = fq + attn_proj

    y = layernorm(fq, ln2_g_ref, ln2_b_ref)
    y = mm(y, w_ff1_ref, b_ff1_ref, act="relu")            # (HW, DIM_FFN)
    y = mm(y, w_ff2_ref, b_ff2_ref)                        # (HW, VIS_DIM)
    fq = fq + y

    # ---------------- projector: per-sample dynamic 1x1 projection ----------
    f_half = mm(fq, w_pf_ref, b_pf_ref)                    # (HW, VIS_DIM//2)
    dyn = mm(state, w_ps_ref, b_ps_ref)                    # (1, VIS_DIM//2+1)
    w_dyn = dyn[:, : VIS_DIM // 2]                         # (1, VIS_DIM//2)
    b_dyn = dyn[:, VIS_DIM // 2:]                          # (1, 1)
    # VPU multiply + lane reduce instead of an (M,K)@(K,1) MXU matmul
    pred = jnp.sum(f_half * w_dyn, axis=-1, keepdims=True) + b_dyn   # (HW, 1)
    pred_ref[...] = pred.astype(pred_ref.dtype)


# ------------------------------- parameters --------------------------------
def init_params(key):
    def dense(k, shape, scale=0.1):
        return scale * jax.random.normal(k, shape, jnp.float32)

    ks = iter(jax.random.split(key, 40))
    p = {}
    # bridger / backbone (patch embed + token embed + projections)
    p["w_patch"] = dense(next(ks), (PATCH_DIM, VIS_DIM))
    p["b_patch"] = jnp.zeros((VIS_DIM,), jnp.float32)
    p["tok_emb"] = dense(next(ks), (VOCAB, WORD_DIM))
    p["w_txt"] = dense(next(ks), (WORD_DIM, WORD_DIM))
    p["b_txt"] = jnp.zeros((WORD_DIM,), jnp.float32)
    p["w_state"] = dense(next(ks), (WORD_DIM, WORD_DIM))
    p["b_state"] = jnp.zeros((WORD_DIM,), jnp.float32)
    # neck HA
    p["w_vis"] = dense(next(ks), (VIS_DIM, VIS_DIM))
    p["b_vis"] = jnp.zeros((VIS_DIM,), jnp.float32)
    p["w_gate"] = dense(next(ks), (WORD_DIM, VIS_DIM))
    p["b_gate"] = jnp.zeros((VIS_DIM,), jnp.float32)
    # decoder GA (one cross-attention + FFN block)
    p["ln1_g"] = jnp.ones((VIS_DIM,), jnp.float32)
    p["ln1_b"] = jnp.zeros((VIS_DIM,), jnp.float32)
    p["w_q"] = dense(next(ks), (VIS_DIM, VIS_DIM))
    p["b_q"] = jnp.zeros((VIS_DIM,), jnp.float32)
    w_k = dense(next(ks), (WORD_DIM, VIS_DIM))
    w_v = dense(next(ks), (WORD_DIM, VIS_DIM))
    p["w_kv"] = jnp.concatenate([w_k, w_v], axis=1)        # fused K/V weights
    p["b_kv"] = jnp.zeros((2 * VIS_DIM,), jnp.float32)
    p["w_o"] = dense(next(ks), (VIS_DIM, VIS_DIM))
    p["b_o"] = jnp.zeros((VIS_DIM,), jnp.float32)
    p["ln2_g"] = jnp.ones((VIS_DIM,), jnp.float32)
    p["ln2_b"] = jnp.zeros((VIS_DIM,), jnp.float32)
    p["w_ff1"] = dense(next(ks), (VIS_DIM, DIM_FFN))
    p["b_ff1"] = jnp.zeros((DIM_FFN,), jnp.float32)
    p["w_ff2"] = dense(next(ks), (DIM_FFN, VIS_DIM))
    p["b_ff2"] = jnp.zeros((VIS_DIM,), jnp.float32)
    # projector (dynamic per-sample kernel from state)
    p["w_proj_f"] = dense(next(ks), (VIS_DIM, VIS_DIM // 2))
    p["b_proj_f"] = jnp.zeros((VIS_DIM // 2,), jnp.float32)
    p["w_proj_s"] = dense(next(ks), (WORD_DIM, VIS_DIM // 2 + 1))
    p["b_proj_s"] = jnp.zeros((VIS_DIM // 2 + 1,), jnp.float32)
    return p


# ------------------------------- forward pass -------------------------------
def etris_forward(params, img, word):
    Bn = img.shape[0]
    h = w = IMG // PATCH

    # patch extraction: pure layout op (single XLA op before the fused kernel)
    patches = img.reshape(Bn, C_IN, h, PATCH, w, PATCH)
    patches = patches.transpose(0, 2, 4, 1, 3, 5).reshape(Bn, HW, PATCH_DIM)

    word = word.astype(jnp.int32)
    word_row = word.reshape(Bn, 1, L)
    word_col = word.reshape(Bn, L, 1)

    def b2(x):  # bias / gain as a (1, N) row
        return x.reshape(1, -1)

    shared = [
        params["tok_emb"],
        params["w_patch"], b2(params["b_patch"]),
        params["w_txt"], b2(params["b_txt"]),
        params["w_state"], b2(params["b_state"]),
        params["w_vis"], b2(params["b_vis"]),
        params["w_gate"], b2(params["b_gate"]),
        b2(params["ln1_g"]), b2(params["ln1_b"]),
        params["w_q"], b2(params["b_q"]),
        params["w_kv"], b2(params["b_kv"]),
        params["w_o"], b2(params["b_o"]),
        b2(params["ln2_g"]), b2(params["ln2_b"]),
        params["w_ff1"], b2(params["b_ff1"]),
        params["w_ff2"], b2(params["b_ff2"]),
        params["w_proj_f"], b2(params["b_proj_f"]),
        params["w_proj_s"], b2(params["b_proj_s"]),
    ]

    def shared_spec(a):
        nd = a.ndim
        return pl.BlockSpec(a.shape, lambda i, _nd=nd: (0,) * _nd)

    in_specs = (
        [pl.BlockSpec((None, HW, PATCH_DIM), lambda i: (i, 0, 0)),   # patches
         pl.BlockSpec((None, 1, L), lambda i: (i, 0, 0)),            # word row
         pl.BlockSpec((None, L, 1), lambda i: (i, 0, 0))]            # word col
        + [shared_spec(a) for a in shared]
    )

    pred = pl.pallas_call(
        _etris_fused_kernel,
        out_shape=jax.ShapeDtypeStruct((Bn, HW, 1), jnp.float32),
        grid=(Bn,),
        in_specs=in_specs,
        out_specs=pl.BlockSpec((None, HW, 1), lambda i: (i, 0, 0)),
        compiler_params=pltpu.CompilerParams(dimension_semantics=("parallel",)),
    )(patches, word_row, word_col, *shared)

    # back to NCHW (B, 1, h, w)
    return pred.reshape(Bn, h, w, 1).transpose(0, 3, 1, 2)


# ---------------------------------- main ------------------------------------
if __name__ == "__main__":
    key = jax.random.PRNGKey(0)
    k_p, k_img, k_word = jax.random.split(key, 3)

    params = init_params(k_p)
    img = jax.random.normal(k_img, (B, C_IN, IMG, IMG), jnp.float32)
    word = jax.random.randint(k_word, (B, L), 1, VOCAB).astype(jnp.int32)
    word = word.at[:, 6:].set(0)   # trailing padding tokens -> exercises pad_mask

    pred = jax.jit(etris_forward)(params, img, word)
    pred = jax.block_until_ready(pred)

    assert pred.shape == (B, 1, IMG // PATCH, IMG // PATCH), pred.shape
    assert jnp.all(jnp.isfinite(pred))
    print("KERNEL_OK")
</pallas_src>

<mosaic_0001>
module attributes {stable_mosaic.version = 11 : i64} {
  func.func @_etris_fused_kernel(%arg0: i32, %arg1: memref<1x16x48xf32, #tpu.memory_space<vmem>>, %arg2: memref<1x1x8xi32, #tpu.memory_space<vmem>>, %arg3: memref<1x8x1xi32, #tpu.memory_space<vmem>>, %arg4: memref<64x32xf32, #tpu.memory_space<vmem>>, %arg5: memref<48x32xf32, #tpu.memory_space<vmem>>, %arg6: memref<1x32xf32, #tpu.memory_space<vmem>>, %arg7: memref<32x32xf32, #tpu.memory_space<vmem>>, %arg8: memref<1x32xf32, #tpu.memory_space<vmem>>, %arg9: memref<32x32xf32, #tpu.memory_space<vmem>>, %arg10: memref<1x32xf32, #tpu.memory_space<vmem>>, %arg11: memref<32x32xf32, #tpu.memory_space<vmem>>, %arg12: memref<1x32xf32, #tpu.memory_space<vmem>>, %arg13: memref<32x32xf32, #tpu.memory_space<vmem>>, %arg14: memref<1x32xf32, #tpu.memory_space<vmem>>, %arg15: memref<1x32xf32, #tpu.memory_space<vmem>>, %arg16: memref<1x32xf32, #tpu.memory_space<vmem>>, %arg17: memref<32x32xf32, #tpu.memory_space<vmem>>, %arg18: memref<1x32xf32, #tpu.memory_space<vmem>>, %arg19: memref<32x64xf32, #tpu.memory_space<vmem>>, %arg20: memref<1x64xf32, #tpu.memory_space<vmem>>, %arg21: memref<32x32xf32, #tpu.memory_space<vmem>>, %arg22: memref<1x32xf32, #tpu.memory_space<vmem>>, %arg23: memref<1x32xf32, #tpu.memory_space<vmem>>, %arg24: memref<1x32xf32, #tpu.memory_space<vmem>>, %arg25: memref<32x64xf32, #tpu.memory_space<vmem>>, %arg26: memref<1x64xf32, #tpu.memory_space<vmem>>, %arg27: memref<64x32xf32, #tpu.memory_space<vmem>>, %arg28: memref<1x32xf32, #tpu.memory_space<vmem>>, %arg29: memref<32x16xf32, #tpu.memory_space<vmem>>, %arg30: memref<1x16xf32, #tpu.memory_space<vmem>>, %arg31: memref<32x17xf32, #tpu.memory_space<vmem>>, %arg32: memref<1x17xf32, #tpu.memory_space<vmem>>, %arg33: memref<1x16x1xf32, #tpu.memory_space<vmem>>) attributes {dimension_semantics = [#tpu.dimension_semantics<parallel>], iteration_bounds = array<i64: 2>, scalar_prefetch = 0 : i64, scratch_operands = 0 : i64, tpu.core_type = #tpu.core_type<tc>, window_params = [{transform_indices = @transform_0, window_bounds = array<i64: 1, 16, 48>}, {transform_indices = @transform_1, window_bounds = array<i64: 1, 1, 8>}, {transform_indices = @transform_2, window_bounds = array<i64: 1, 8, 1>}, {pipeline_mode = #tpu.pipeline_mode<synchronous>, transform_indices = @transform_3, window_bounds = array<i64: 64, 32>}, {pipeline_mode = #tpu.pipeline_mode<synchronous>, transform_indices = @transform_4, window_bounds = array<i64: 48, 32>}, {pipeline_mode = #tpu.pipeline_mode<synchronous>, transform_indices = @transform_5, window_bounds = array<i64: 1, 32>}, {pipeline_mode = #tpu.pipeline_mode<synchronous>, transform_indices = @transform_6, window_bounds = array<i64: 32, 32>}, {pipeline_mode = #tpu.pipeline_mode<synchronous>, transform_indices = @transform_7, window_bounds = array<i64: 1, 32>}, {pipeline_mode = #tpu.pipeline_mode<synchronous>, transform_indices = @transform_8, window_bounds = array<i64: 32, 32>}, {pipeline_mode = #tpu.pipeline_mode<synchronous>, transform_indices = @transform_9, window_bounds = array<i64: 1, 32>}, {pipeline_mode = #tpu.pipeline_mode<synchronous>, transform_indices = @transform_10, window_bounds = array<i64: 32, 32>}, {pipeline_mode = #tpu.pipeline_mode<synchronous>, transform_indices = @transform_11, window_bounds = array<i64: 1, 32>}, {pipeline_mode = #tpu.pipeline_mode<synchronous>, transform_indices = @transform_12, window_bounds = array<i64: 32, 32>}, {pipeline_mode = #tpu.pipeline_mode<synchronous>, transform_indices = @transform_13, window_bounds = array<i64: 1, 32>}, {pipeline_mode = #tpu.pipeline_mode<synchronous>, transform_indices = @transform_14, window_bounds = array<i64: 1, 32>}, {pipeline_mode = #tpu.pipeline_mode<synchronous>, transform_indices = @transform_15, window_bounds = array<i64: 1, 32>}, {pipeline_mode = #tpu.pipeline_mode<synchronous>, transform_indices = @transform_16, window_bounds = array<i64: 32, 32>}, {pipeline_mode = #tpu.pipeline_mode<synchronous>, transform_indices = @transform_17, window_bounds = array<i64: 1, 32>}, {pipeline_mode = #tpu.pipeline_mode<synchronous>, transform_indices = @transform_18, window_bounds = array<i64: 32, 64>}, {pipeline_mode = #tpu.pipeline_mode<synchronous>, transform_indices = @transform_19, window_bounds = array<i64: 1, 64>}, {pipeline_mode = #tpu.pipeline_mode<synchronous>, transform_indices = @transform_20, window_bounds = array<i64: 32, 32>}, {pipeline_mode = #tpu.pipeline_mode<synchronous>, transform_indices = @transform_21, window_bounds = array<i64: 1, 32>}, {pipeline_mode = #tpu.pipeline_mode<synchronous>, transform_indices = @transform_22, window_bounds = array<i64: 1, 32>}, {pipeline_mode = #tpu.pipeline_mode<synchronous>, transform_indices = @transform_23, window_bounds = array<i64: 1, 32>}, {pipeline_mode = #tpu.pipeline_mode<synchronous>, transform_indices = @transform_24, window_bounds = array<i64: 32, 64>}, {pipeline_mode = #tpu.pipeline_mode<synchronous>, transform_indices = @transform_25, window_bounds = array<i64: 1, 64>}, {pipeline_mode = #tpu.pipeline_mode<synchronous>, transform_indices = @transform_26, window_bounds = array<i64: 64, 32>}, {pipeline_mode = #tpu.pipeline_mode<synchronous>, transform_indices = @transform_27, window_bounds = array<i64: 1, 32>}, {pipeline_mode = #tpu.pipeline_mode<synchronous>, transform_indices = @transform_28, window_bounds = array<i64: 32, 16>}, {pipeline_mode = #tpu.pipeline_mode<synchronous>, transform_indices = @transform_29, window_bounds = array<i64: 1, 16>}, {pipeline_mode = #tpu.pipeline_mode<synchronous>, transform_indices = @transform_30, window_bounds = array<i64: 32, 17>}, {pipeline_mode = #tpu.pipeline_mode<synchronous>, transform_indices = @transform_31, window_bounds = array<i64: 1, 17>}, {transform_indices = @transform_32, window_bounds = array<i64: 1, 16, 1>}]} {
    %c0 = arith.constant 0 : index
    %c0_0 = arith.constant 0 : index
    %c0_1 = arith.constant 0 : index
    %0 = vector.load %arg2[%c0, %c0_0, %c0_1] : memref<1x1x8xi32, #tpu.memory_space<vmem>>, vector<1x1x8xi32>
    %1 = vector.shape_cast %0 : vector<1x1x8xi32> to vector<1x8xi32>
    %c0_2 = arith.constant 0 : index
    %c0_3 = arith.constant 0 : index
    %c0_4 = arith.constant 0 : index
    %2 = vector.load %arg3[%c0_2, %c0_3, %c0_4] : memref<1x8x1xi32, #tpu.memory_space<vmem>>, vector<1x8x1xi32>
    %3 = vector.shape_cast %2 : vector<1x8x1xi32> to vector<8x1xi32>
    %4 = tpu.iota {dimensions = array<i32: 1>} : vector<8x64xi32>
    %5 = vector.broadcast %3 : vector<8x1xi32> to vector<8x64xi32>
    %6 = arith.cmpi eq, %4, %5 : vector<8x64xi32>
    %7 = arith.extui %6 : vector<8x64xi1> to vector<8x64xi32>
    %8 = arith.sitofp %7 : vector<8x64xi32> to vector<8x64xf32>
    %c0_5 = arith.constant 0 : index
    %c0_6 = arith.constant 0 : index
    %9 = vector.load %arg4[%c0_5, %c0_6] : memref<64x32xf32, #tpu.memory_space<vmem>>, vector<64x32xf32>
    %cst = arith.constant dense<0.000000e+00> : vector<8x32xf32>
    %10 = tpu.matmul %8, %9, %cst {dimension_numbers = #tpu.dot_dimension_numbers<[1], [0], [0], [1], [0, 0, 1, 1], [], []>} : vector<8x64xf32>, vector<64x32xf32>, vector<8x32xf32> -> vector<8x32xf32>
    %c0_7 = arith.constant 0 : index
    %c0_8 = arith.constant 0 : index
    %11 = vector.load %arg7[%c0_7, %c0_8] : memref<32x32xf32, #tpu.memory_space<vmem>>, vector<32x32xf32>
    %cst_9 = arith.constant dense<0.000000e+00> : vector<8x32xf32>
    %12 = tpu.matmul %10, %11, %cst_9 {dimension_numbers = #tpu.dot_dimension_numbers<[1], [0], [0], [1], [0, 0, 1, 1], [], []>} : vector<8x32xf32>, vector<32x32xf32>, vector<8x32xf32> -> vector<8x32xf32>
    %c0_10 = arith.constant 0 : index
    %c0_11 = arith.constant 0 : index
    %13 = vector.load %arg8[%c0_10, %c0_11] : memref<1x32xf32, #tpu.memory_space<vmem>>, vector<1x32xf32>
    %14 = vector.broadcast %13 : vector<1x32xf32> to vector<8x32xf32>
    %15 = arith.addf %12, %14 : vector<8x32xf32>
    %c0_i32 = arith.constant 0 : i32
    %16 = vector.broadcast %c0_i32 : i32 to vector<1x8xi32>
    %17 = arith.cmpi eq, %1, %16 : vector<1x8xi32>
    %18 = arith.extui %17 : vector<1x8xi1> to vector<1x8xi32>
    %19 = arith.sitofp %18 : vector<1x8xi32> to vector<1x8xf32>
    %cst_12 = arith.constant 1.000000e+00 : f32
    %20 = vector.broadcast %cst_12 : f32 to vector<1x8xf32>
    %21 = arith.subf %20, %19 : vector<1x8xf32>
    %cst_13 = arith.constant dense<0.000000e+00> : vector<1xf32>
    %22 = vector.multi_reduction <add>, %21, %cst_13 [1] : vector<1x8xf32> to vector<1xf32>
    %23 = vector.shape_cast %22 : vector<1xf32> to vector<1x1xf32>
    %cst_14 = arith.constant 1.000000e+00 : f32
    %24 = vector.broadcast %cst_14 : f32 to vector<1x1xf32>
    %25 = arith.maximumf %23, %24 : vector<1x1xf32>
    %cst_15 = arith.constant dense<0.000000e+00> : vector<1x32xf32>
    %26 = tpu.matmul %21, %15, %cst_15 {dimension_numbers = #tpu.dot_dimension_numbers<[1], [0], [0], [1], [0, 0, 1, 1], [], []>} : vector<1x8xf32>, vector<8x32xf32>, vector<1x32xf32> -> vector<1x32xf32>
    %27 = vector.broadcast %25 : vector<1x1xf32> to vector<1x32xf32>
    %28 = arith.divf %26, %27 : vector<1x32xf32>
    %c0_16 = arith.constant 0 : index
    %c0_17 = arith.constant 0 : index
    %29 = vector.load %arg9[%c0_16, %c0_17] : memref<32x32xf32, #tpu.memory_space<vmem>>, vector<32x32xf32>
    %cst_18 = arith.constant dense<0.000000e+00> : vector<1x32xf32>
    %30 = tpu.matmul %28, %29, %cst_18 {dimension_numbers = #tpu.dot_dimension_numbers<[1], [0], [0], [1], [0, 0, 1, 1], [], []>} : vector<1x32xf32>, vector<32x32xf32>, vector<1x32xf32> -> vector<1x32xf32>
    %c0_19 = arith.constant 0 : index
    %c0_20 = arith.constant 0 : index
    %31 = vector.load %arg10[%c0_19, %c0_20] : memref<1x32xf32, #tpu.memory_space<vmem>>, vector<1x32xf32>
    %32 = arith.addf %30, %31 : vector<1x32xf32>
    %c0_21 = arith.constant 0 : index
    %c0_22 = arith.constant 0 : index
    %c0_23 = arith.constant 0 : index
    %33 = vector.load %arg1[%c0_21, %c0_22, %c0_23] : memref<1x16x48xf32, #tpu.memory_space<vmem>>, vector<1x16x48xf32>
    %34 = vector.shape_cast %33 : vector<1x16x48xf32> to vector<16x48xf32>
    %c0_24 = arith.constant 0 : index
    %c0_25 = arith.constant 0 : index
    %35 = vector.load %arg5[%c0_24, %c0_25] : memref<48x32xf32, #tpu.memory_space<vmem>>, vector<48x32xf32>
    %cst_26 = arith.constant dense<0.000000e+00> : vector<16x32xf32>
    %36 = tpu.matmul %34, %35, %cst_26 {dimension_numbers = #tpu.dot_dimension_numbers<[1], [0], [0], [1], [0, 0, 1, 1], [], []>} : vector<16x48xf32>, vector<48x32xf32>, vector<16x32xf32> -> vector<16x32xf32>
    %c0_27 = arith.constant 0 : index
    %c0_28 = arith.constant 0 : index
    %37 = vector.load %arg6[%c0_27, %c0_28] : memref<1x32xf32, #tpu.memory_space<vmem>>, vector<1x32xf32>
    %38 = vector.broadcast %37 : vector<1x32xf32> to vector<16x32xf32>
    %39 = arith.addf %36, %38 : vector<16x32xf32>
    %c0_29 = arith.constant 0 : index
    %c0_30 = arith.constant 0 : index
    %40 = vector.load %arg11[%c0_29, %c0_30] : memref<32x32xf32, #tpu.memory_space<vmem>>, vector<32x32xf32>
    %cst_31 = arith.constant dense<0.000000e+00> : vector<16x32xf32>
    %41 = tpu.matmul %39, %40, %cst_31 {dimension_numbers = #tpu.dot_dimension_numbers<[1], [0], [0], [1], [0, 0, 1, 1], [], []>} : vector<16x32xf32>, vector<32x32xf32>, vector<16x32xf32> -> vector<16x32xf32>
    %c0_32 = arith.constant 0 : index
    %c0_33 = arith.constant 0 : index
    %42 = vector.load %arg12[%c0_32, %c0_33] : memref<1x32xf32, #tpu.memory_space<vmem>>, vector<1x32xf32>
    %43 = vector.broadcast %42 : vector<1x32xf32> to vector<16x32xf32>
    %44 = arith.addf %41, %43 : vector<16x32xf32>
    %c0_34 = arith.constant 0 : index
    %c0_35 = arith.constant 0 : index
    %45 = vector.load %arg13[%c0_34, %c0_35] : memref<32x32xf32, #tpu.memory_space<vmem>>, vector<32x32xf32>
    %cst_36 = arith.constant dense<0.000000e+00> : vector<1x32xf32>
    %46 = tpu.matmul %32, %45, %cst_36 {dimension_numbers = #tpu.dot_dimension_numbers<[1], [0], [0], [1], [0, 0, 1, 1], [], []>} : vector<1x32xf32>, vector<32x32xf32>, vector<1x32xf32> -> vector<1x32xf32>
    %c0_37 = arith.constant 0 : index
    %c0_38 = arith.constant 0 : index
    %47 = vector.load %arg14[%c0_37, %c0_38] : memref<1x32xf32, #tpu.memory_space<vmem>>, vector<1x32xf32>
    %48 = arith.addf %46, %47 : vector<1x32xf32>
    %49 = arith.negf %48 : vector<1x32xf32>
    %50 = math.exp %49 : vector<1x32xf32>
    %cst_39 = arith.constant 1.000000e+00 : f32
    %51 = vector.broadcast %cst_39 : f32 to vector<1x32xf32>
    %52 = arith.addf %51, %50 : vector<1x32xf32>
    %53 = arith.divf %51, %52 : vector<1x32xf32>
    %54 = vector.broadcast %53 : vector<1x32xf32> to vector<16x32xf32>
    %55 = arith.mulf %44, %54 : vector<16x32xf32>
    %cst_40 = arith.constant dense<0.000000e+00> : vector<16xf32>
    %56 = vector.multi_reduction <add>, %55, %cst_40 [1] : vector<16x32xf32> to vector<16xf32>
    %57 = vector.shape_cast %56 : vector<16xf32> to vector<16x1xf32>
    %cst_41 = arith.constant 3.200000e+01 : f32
    %58 = vector.broadcast %cst_41 : f32 to vector<16x1xf32>
    %59 = arith.divf %57, %58 : vector<16x1xf32>
    %60 = vector.broadcast %59 : vector<16x1xf32> to vector<16x32xf32>
    %61 = arith.subf %55, %60 : vector<16x32xf32>
    %62 = arith.mulf %61, %61 : vector<16x32xf32>
    %cst_42 = arith.constant dense<0.000000e+00> : vector<16xf32>
    %63 = vector.multi_reduction <add>, %62, %cst_42 [1] : vector<16x32xf32> to vector<16xf32>
    %64 = vector.shape_cast %63 : vector<16xf32> to vector<16x1xf32>
    %cst_43 = arith.constant 3.200000e+01 : f32
    %65 = vector.broadcast %cst_43 : f32 to vector<16x1xf32>
    %66 = arith.divf %64, %65 : vector<16x1xf32>
    %67 = vector.broadcast %59 : vector<16x1xf32> to vector<16x32xf32>
    %68 = arith.subf %55, %67 : vector<16x32xf32>
    %cst_44 = arith.constant 9.99999974E-6 : f32
    %69 = vector.broadcast %cst_44 : f32 to vector<16x1xf32>
    %70 = arith.addf %66, %69 : vector<16x1xf32>
    %71 = math.rsqrt %70 : vector<16x1xf32>
    %72 = vector.broadcast %71 : vector<16x1xf32> to vector<16x32xf32>
    %73 = arith.mulf %68, %72 : vector<16x32xf32>
    %c0_45 = arith.constant 0 : index
    %c0_46 = arith.constant 0 : index
    %74 = vector.load %arg15[%c0_45, %c0_46] : memref<1x32xf32, #tpu.memory_space<vmem>>, vector<1x32xf32>
    %75 = vector.broadcast %74 : vector<1x32xf32> to vector<16x32xf32>
    %76 = arith.mulf %73, %75 : vector<16x32xf32>
    %c0_47 = arith.constant 0 : index
    %c0_48 = arith.constant 0 : index
    %77 = vector.load %arg16[%c0_47, %c0_48] : memref<1x32xf32, #tpu.memory_space<vmem>>, vector<1x32xf32>
    %78 = vector.broadcast %77 : vector<1x32xf32> to vector<16x32xf32>
    %79 = arith.addf %76, %78 : vector<16x32xf32>
    %c0_49 = arith.constant 0 : index
    %c0_50 = arith.constant 0 : index
    %80 = vector.load %arg17[%c0_49, %c0_50] : memref<32x32xf32, #tpu.memory_space<vmem>>, vector<32x32xf32>
    %cst_51 = arith.constant dense<0.000000e+00> : vector<16x32xf32>
    %81 = tpu.matmul %79, %80, %cst_51 {dimension_numbers = #tpu.dot_dimension_numbers<[1], [0], [0], [1], [0, 0, 1, 1], [], []>} : vector<16x32xf32>, vector<32x32xf32>, vector<16x32xf32> -> vector<16x32xf32>
    %c0_52 = arith.constant 0 : index
    %c0_53 = arith.constant 0 : index
    %82 = vector.load %arg18[%c0_52, %c0_53] : memref<1x32xf32, #tpu.memory_space<vmem>>, vector<1x32xf32>
    %83 = vector.broadcast %82 : vector<1x32xf32> to vector<16x32xf32>
    %84 = arith.addf %81, %83 : vector<16x32xf32>
    %c0_54 = arith.constant 0 : index
    %c0_55 = arith.constant 0 : index
    %85 = vector.load %arg19[%c0_54, %c0_55] : memref<32x64xf32, #tpu.memory_space<vmem>>, vector<32x64xf32>
    %cst_56 = arith.constant dense<0.000000e+00> : vector<8x64xf32>
    %86 = tpu.matmul %15, %85, %cst_56 {dimension_numbers = #tpu.dot_dimension_numbers<[1], [0], [0], [1], [0, 0, 1, 1], [], []>} : vector<8x32xf32>, vector<32x64xf32>, vector<8x64xf32> -> vector<8x64xf32>
    %c0_57 = arith.constant 0 : index
    %c0_58 = arith.constant 0 : index
    %87 = vector.load %arg20[%c0_57, %c0_58] : memref<1x64xf32, #tpu.memory_space<vmem>>, vector<1x64xf32>
    %88 = vector.broadcast %87 : vector<1x64xf32> to vector<8x64xf32>
    %89 = arith.addf %86, %88 : vector<8x64xf32>
    %90 = vector.extract_strided_slice %89 {offsets = [0, 0], sizes = [8, 32], strides = [1, 1]} : vector<8x64xf32> to vector<8x32xf32>
    %91 = vector.extract_strided_slice %89 {offsets = [0, 32], sizes = [8, 32], strides = [1, 1]} : vector<8x64xf32> to vector<8x32xf32>
    %92 = vector.extract_strided_slice %84 {offsets = [0, 0], sizes = [16, 16], strides = [1, 1]} : vector<16x32xf32> to vector<16x16xf32>
    %93 = vector.extract_strided_slice %90 {offsets = [0, 0], sizes = [8, 16], strides = [1, 1]} : vector<8x32xf32> to vector<8x16xf32>
    %94 = vector.extract_strided_slice %91 {offsets = [0, 0], sizes = [8, 16], strides = [1, 1]} : vector<8x32xf32> to vector<8x16xf32>
    %cst_59 = arith.constant dense<0.000000e+00> : vector<16x8xf32>
    %95 = tpu.matmul %92, %93, %cst_59 {dimension_numbers = #tpu.dot_dimension_numbers<[1], [1], [0], [0], [0, 0, 1, 0], [], []>} : vector<16x16xf32>, vector<8x16xf32>, vector<16x8xf32> -> vector<16x8xf32>
    %cst_60 = arith.constant 2.500000e-01 : f32
    %96 = vector.broadcast %cst_60 : f32 to vector<16x8xf32>
    %97 = arith.mulf %95, %96 : vector<16x8xf32>
    %cst_61 = arith.constant 1.000000e+09 : f32
    %98 = vector.broadcast %cst_61 : f32 to vector<1x8xf32>
    %99 = arith.mulf %19, %98 : vector<1x8xf32>
    %100 = vector.broadcast %99 : vector<1x8xf32> to vector<16x8xf32>
    %101 = arith.subf %97, %100 : vector<16x8xf32>
    %cst_62 = arith.constant dense<0xFF800000> : vector<16xf32>
    %102 = vector.multi_reduction <maximumf>, %101, %cst_62 [1] : vector<16x8xf32> to vector<16xf32>
    %103 = vector.shape_cast %102 : vector<16xf32> to vector<16x1xf32>
    %104 = vector.broadcast %103 : vector<16x1xf32> to vector<16x8xf32>
    %105 = arith.subf %101, %104 : vector<16x8xf32>
    %106 = math.exp %105 : vector<16x8xf32>
    %cst_63 = arith.constant dense<0.000000e+00> : vector<16xf32>
    %107 = vector.multi_reduction <add>, %106, %cst_63 [1] : vector<16x8xf32> to vector<16xf32>
    %108 = vector.shape_cast %107 : vector<16xf32> to vector<16x1xf32>
    %109 = tpu.reciprocal %108 {approx = true} : vector<16x1xf32> -> vector<16x1xf32>
    %110 = vector.broadcast %109 : vector<16x1xf32> to vector<16x8xf32>
    %111 = arith.mulf %106, %110 : vector<16x8xf32>
    %cst_64 = arith.constant dense<0.000000e+00> : vector<16x16xf32>
    %112 = tpu.matmul %111, %94, %cst_64 {dimension_numbers = #tpu.dot_dimension_numbers<[1], [0], [0], [1], [0, 0, 1, 1], [], []>} : vector<16x8xf32>, vector<8x16xf32>, vector<16x16xf32> -> vector<16x16xf32>
    %c0_65 = arith.constant 0 : index
    %c0_66 = arith.constant 0 : index
    %113 = vector.load %arg21[%c0_65, %c0_66] : memref<32x32xf32, #tpu.memory_space<vmem>>, vector<16x32xf32>
    %cst_67 = arith.constant dense<0.000000e+00> : vector<16x32xf32>
    %114 = tpu.matmul %112, %113, %cst_67 {dimension_numbers = #tpu.dot_dimension_numbers<[1], [0], [0], [1], [0, 0, 1, 1], [], []>} : vector<16x16xf32>, vector<16x32xf32>, vector<16x32xf32> -> vector<16x32xf32>
    %115 = vector.extract_strided_slice %84 {offsets = [0, 16], sizes = [16, 16], strides = [1, 1]} : vector<16x32xf32> to vector<16x16xf32>
    %116 = vector.extract_strided_slice %90 {offsets = [0, 16], sizes = [8, 16], strides = [1, 1]} : vector<8x32xf32> to vector<8x16xf32>
    %117 = vector.extract_strided_slice %91 {offsets = [0, 16], sizes = [8, 16], strides = [1, 1]} : vector<8x32xf32> to vector<8x16xf32>
    %cst_68 = arith.constant dense<0.000000e+00> : vector<16x8xf32>
    %118 = tpu.matmul %115, %116, %cst_68 {dimension_numbers = #tpu.dot_dimension_numbers<[1], [1], [0], [0], [0, 0, 1, 0], [], []>} : vector<16x16xf32>, vector<8x16xf32>, vector<16x8xf32> -> vector<16x8xf32>
    %cst_69 = arith.constant 2.500000e-01 : f32
    %119 = vector.broadcast %cst_69 : f32 to vector<16x8xf32>
    %120 = arith.mulf %118, %119 : vector<16x8xf32>
    %cst_70 = arith.constant 1.000000e+09 : f32
    %121 = vector.broadcast %cst_70 : f32 to vector<1x8xf32>
    %122 = arith.mulf %19, %121 : vector<1x8xf32>
    %123 = vector.broadcast %122 : vector<1x8xf32> to vector<16x8xf32>
    %124 = arith.subf %120, %123 : vector<16x8xf32>
    %cst_71 = arith.constant dense<0xFF800000> : vector<16xf32>
    %125 = vector.multi_reduction <maximumf>, %124, %cst_71 [1] : vector<16x8xf32> to vector<16xf32>
    %126 = vector.shape_cast %125 : vector<16xf32> to vector<16x1xf32>
    %127 = vector.broadcast %126 : vector<16x1xf32> to vector<16x8xf32>
    %128 = arith.subf %124, %127 : vector<16x8xf32>
    %129 = math.exp %128 : vector<16x8xf32>
    %cst_72 = arith.constant dense<0.000000e+00> : vector<16xf32>
    %130 = vector.multi_reduction <add>, %129, %cst_72 [1] : vector<16x8xf32> to vector<16xf32>
    %131 = vector.shape_cast %130 : vector<16xf32> to vector<16x1xf32>
    %132 = tpu.reciprocal %131 {approx = true} : vector<16x1xf32> -> vector<16x1xf32>
    %133 = vector.broadcast %132 : vector<16x1xf32> to vector<16x8xf32>
    %134 = arith.mulf %129, %133 : vector<16x8xf32>
    %cst_73 = arith.constant dense<0.000000e+00> : vector<16x16xf32>
    %135 = tpu.matmul %134, %117, %cst_73 {dimension_numbers = #tpu.dot_dimension_numbers<[1], [0], [0], [1], [0, 0, 1, 1], [], []>} : vector<16x8xf32>, vector<8x16xf32>, vector<16x16xf32> -> vector<16x16xf32>
    %c16 = arith.constant 16 : index
    %c0_74 = arith.constant 0 : index
    %136 = vector.load %arg21[%c16, %c0_74] : memref<32x32xf32, #tpu.memory_space<vmem>>, vector<16x32xf32>
    %cst_75 = arith.constant dense<0.000000e+00> : vector<16x32xf32>
    %137 = tpu.matmul %135, %136, %cst_75 {dimension_numbers = #tpu.dot_dimension_numbers<[1], [0], [0], [1], [0, 0, 1, 1], [], []>} : vector<16x16xf32>, vector<16x32xf32>, vector<16x32xf32> -> vector<16x32xf32>
    %138 = arith.addf %114, %137 : vector<16x32xf32>
    %c0_76 = arith.constant 0 : index
    %c0_77 = arith.constant 0 : index
    %139 = vector.load %arg22[%c0_76, %c0_77] : memref<1x32xf32, #tpu.memory_space<vmem>>, vector<1x32xf32>
    %140 = vector.broadcast %139 : vector<1x32xf32> to vector<16x32xf32>
    %141 = arith.addf %138, %140 : vector<16x32xf32>
    %142 = arith.addf %55, %141 : vector<16x32xf32>
    %cst_78 = arith.constant dense<0.000000e+00> : vector<16xf32>
    %143 = vector.multi_reduction <add>, %142, %cst_78 [1] : vector<16x32xf32> to vector<16xf32>
    %144 = vector.shape_cast %143 : vector<16xf32> to vector<16x1xf32>
    %cst_79 = arith.constant 3.200000e+01 : f32
    %145 = vector.broadcast %cst_79 : f32 to vector<16x1xf32>
    %146 = arith.divf %144, %145 : vector<16x1xf32>
    %147 = vector.broadcast %146 : vector<16x1xf32> to vector<16x32xf32>
    %148 = arith.subf %142, %147 : vector<16x32xf32>
    %149 = arith.mulf %148, %148 : vector<16x32xf32>
    %cst_80 = arith.constant dense<0.000000e+00> : vector<16xf32>
    %150 = vector.multi_reduction <add>, %149, %cst_80 [1] : vector<16x32xf32> to vector<16xf32>
    %151 = vector.shape_cast %150 : vector<16xf32> to vector<16x1xf32>
    %cst_81 = arith.constant 3.200000e+01 : f32
    %152 = vector.broadcast %cst_81 : f32 to vector<16x1xf32>
    %153 = arith.divf %151, %152 : vector<16x1xf32>
    %154 = vector.broadcast %146 : vector<16x1xf32> to vector<16x32xf32>
    %155 = arith.subf %142, %154 : vector<16x32xf32>
    %cst_82 = arith.constant 9.99999974E-6 : f32
    %156 = vector.broadcast %cst_82 : f32 to vector<16x1xf32>
    %157 = arith.addf %153, %156 : vector<16x1xf32>
    %158 = math.rsqrt %157 : vector<16x1xf32>
    %159 = vector.broadcast %158 : vector<16x1xf32> to vector<16x32xf32>
    %160 = arith.mulf %155, %159 : vector<16x32xf32>
    %c0_83 = arith.constant 0 : index
    %c0_84 = arith.constant 0 : index
    %161 = vector.load %arg23[%c0_83, %c0_84] : memref<1x32xf32, #tpu.memory_space<vmem>>, vector<1x32xf32>
    %162 = vector.broadcast %161 : vector<1x32xf32> to vector<16x32xf32>
    %163 = arith.mulf %160, %162 : vector<16x32xf32>
    %c0_85 = arith.constant 0 : index
    %c0_86 = arith.constant 0 : index
    %164 = vector.load %arg24[%c0_85, %c0_86] : memref<1x32xf32, #tpu.memory_space<vmem>>, vector<1x32xf32>
    %165 = vector.broadcast %164 : vector<1x32xf32> to vector<16x32xf32>
    %166 = arith.addf %163, %165 : vector<16x32xf32>
    %c0_87 = arith.constant 0 : index
    %c0_88 = arith.constant 0 : index
    %167 = vector.load %arg25[%c0_87, %c0_88] : memref<32x64xf32, #tpu.memory_space<vmem>>, vector<32x64xf32>
    %cst_89 = arith.constant dense<0.000000e+00> : vector<16x64xf32>
    %168 = tpu.matmul %166, %167, %cst_89 {dimension_numbers = #tpu.dot_dimension_numbers<[1], [0], [0], [1], [0, 0, 1, 1], [], []>} : vector<16x32xf32>, vector<32x64xf32>, vector<16x64xf32> -> vector<16x64xf32>
    %c0_90 = arith.constant 0 : index
    %c0_91 = arith.constant 0 : index
    %169 = vector.load %arg26[%c0_90, %c0_91] : memref<1x64xf32, #tpu.memory_space<vmem>>, vector<1x64xf32>
    %170 = vector.broadcast %169 : vector<1x64xf32> to vector<16x64xf32>
    %171 = arith.addf %168, %170 : vector<16x64xf32>
    %cst_92 = arith.constant 0.000000e+00 : f32
    %172 = vector.broadcast %cst_92 : f32 to vector<16x64xf32>
    %173 = arith.maximumf %171, %172 : vector<16x64xf32>
    %c0_93 = arith.constant 0 : index
    %c0_94 = arith.constant 0 : index
    %174 = vector.load %arg27[%c0_93, %c0_94] : memref<64x32xf32, #tpu.memory_space<vmem>>, vector<64x32xf32>
    %cst_95 = arith.constant dense<0.000000e+00> : vector<16x32xf32>
    %175 = tpu.matmul %173, %174, %cst_95 {dimension_numbers = #tpu.dot_dimension_numbers<[1], [0], [0], [1], [0, 0, 1, 1], [], []>} : vector<16x64xf32>, vector<64x32xf32>, vector<16x32xf32> -> vector<16x32xf32>
    %c0_96 = arith.constant 0 : index
    %c0_97 = arith.constant 0 : index
    %176 = vector.load %arg28[%c0_96, %c0_97] : memref<1x32xf32, #tpu.memory_space<vmem>>, vector<1x32xf32>
    %177 = vector.broadcast %176 : vector<1x32xf32> to vector<16x32xf32>
    %178 = arith.addf %175, %177 : vector<16x32xf32>
    %179 = arith.addf %142, %178 : vector<16x32xf32>
    %c0_98 = arith.constant 0 : index
    %c0_99 = arith.constant 0 : index
    %180 = vector.load %arg29[%c0_98, %c0_99] : memref<32x16xf32, #tpu.memory_space<vmem>>, vector<32x16xf32>
    %cst_100 = arith.constant dense<0.000000e+00> : vector<16x16xf32>
    %181 = tpu.matmul %179, %180, %cst_100 {dimension_numbers = #tpu.dot_dimension_numbers<[1], [0], [0], [1], [0, 0, 1, 1], [], []>} : vector<16x32xf32>, vector<32x16xf32>, vector<16x16xf32> -> vector<16x16xf32>
    %c0_101 = arith.constant 0 : index
    %c0_102 = arith.constant 0 : index
    %182 = vector.load %arg30[%c0_101, %c0_102] : memref<1x16xf32, #tpu.memory_space<vmem>>, vector<1x16xf32>
    %183 = vector.broadcast %182 : vector<1x16xf32> to vector<16x16xf32>
    %184 = arith.addf %181, %183 : vector<16x16xf32>
    %c0_103 = arith.constant 0 : index
    %c0_104 = arith.constant 0 : index
    %185 = vector.load %arg31[%c0_103, %c0_104] : memref<32x17xf32, #tpu.memory_space<vmem>>, vector<32x17xf32>
    %cst_105 = arith.constant dense<0.000000e+00> : vector<1x17xf32>
    %186 = tpu.matmul %32, %185, %cst_105 {dimension_numbers = #tpu.dot_dimension_numbers<[1], [0], [0], [1], [0, 0, 1, 1], [], []>} : vector<1x32xf32>, vector<32x17xf32>, vector<1x17xf32> -> vector<1x17xf32>
    %c0_106 = arith.constant 0 : index
    %c0_107 = arith.constant 0 : index
    %187 = vector.load %arg32[%c0_106, %c0_107] : memref<1x17xf32, #tpu.memory_space<vmem>>, vector<1x17xf32>
    %188 = arith.addf %186, %187 : vector<1x17xf32>
    %189 = vector.extract_strided_slice %188 {offsets = [0, 0], sizes = [1, 16], strides = [1, 1]} : vector<1x17xf32> to vector<1x16xf32>
    %190 = vector.extract_strided_slice %188 {offsets = [0, 16], sizes = [1, 1], strides = [1, 1]} : vector<1x17xf32> to vector<1x1xf32>
    %191 = vector.broadcast %189 : vector<1x16xf32> to vector<16x16xf32>
    %192 = arith.mulf %184, %191 : vector<16x16xf32>
    %cst_108 = arith.constant dense<0.000000e+00> : vector<16xf32>
    %193 = vector.multi_reduction <add>, %192, %cst_108 [1] : vector<16x16xf32> to vector<16xf32>
    %194 = vector.shape_cast %193 : vector<16xf32> to vector<16x1xf32>
    %195 = vector.broadcast %190 : vector<1x1xf32> to vector<16x1xf32>
    %196 = arith.addf %194, %195 : vector<16x1xf32>
    %c0_109 = arith.constant 0 : index
    %c0_110 = arith.constant 0 : index
    %c0_111 = arith.constant 0 : index
    %197 = vector.load %arg33[%c0_109, %c0_110, %c0_111] : memref<1x16x1xf32, #tpu.memory_space<vmem>>, vector<1x16x1xf32>
    %198 = vector.shape_cast %197 : vector<1x16x1xf32> to vector<16x1xf32>
    %199 = vector.shape_cast %196 : vector<16x1xf32> to vector<1x16x1xf32>
    tpu.vector_store %arg33[%c0_109, %c0_110, %c0_111], %199 {strides = array<i32>} : memref<1x16x1xf32, #tpu.memory_space<vmem>>, vector<1x16x1xf32>,
    return
  }
  func.func @transform_0(%arg0: i32) -> (i32, i32, i32) {
    %c0_i32 = arith.constant 0 : i32
    %c0_i32_0 = arith.constant 0 : i32
    %c0_i32_1 = arith.constant 0 : i32
    return %arg0, %c0_i32, %c0_i32_0 : i32, i32, i32
  }
  func.func @transform_1(%arg0: i32) -> (i32, i32, i32) {
    %c0_i32 = arith.constant 0 : i32
    %c0_i32_0 = arith.constant 0 : i32
    %c0_i32_1 = arith.constant 0 : i32
    return %arg0, %c0_i32, %c0_i32_0 : i32, i32, i32
  }
  func.func @transform_2(%arg0: i32) -> (i32, i32, i32) {
    %c0_i32 = arith.constant 0 : i32
    %c0_i32_0 = arith.constant 0 : i32
    %c0_i32_1 = arith.constant 0 : i32
    return %arg0, %c0_i32, %c0_i32_0 : i32, i32, i32
  }
  func.func @transform_3(%arg0: i32) -> (i32, i32) {
    %c0_i32 = arith.constant 0 : i32
    %c0_i32_0 = arith.constant 0 : i32
    %c0_i32_1 = arith.constant 0 : i32
    return %c0_i32, %c0_i32_0 : i32, i32
  }
  func.func @transform_4(%arg0: i32) -> (i32, i32) {
    %c0_i32 = arith.constant 0 : i32
    %c0_i32_0 = arith.constant 0 : i32
    %c0_i32_1 = arith.constant 0 : i32
    return %c0_i32, %c0_i32_0 : i32, i32
  }
  func.func @transform_5(%arg0: i32) -> (i32, i32) {
    %c0_i32 = arith.constant 0 : i32
    %c0_i32_0 = arith.constant 0 : i32
    %c0_i32_1 = arith.constant 0 : i32
    return %c0_i32, %c0_i32_0 : i32, i32
  }
  func.func @transform_6(%arg0: i32) -> (i32, i32) {
    %c0_i32 = arith.constant 0 : i32
    %c0_i32_0 = arith.constant 0 : i32
    %c0_i32_1 = arith.constant 0 : i32
    return %c0_i32, %c0_i32_0 : i32, i32
  }
  func.func @transform_7(%arg0: i32) -> (i32, i32) {
    %c0_i32 = arith.constant 0 : i32
    %c0_i32_0 = arith.constant 0 : i32
    %c0_i32_1 = arith.constant 0 : i32
    return %c0_i32, %c0_i32_0 : i32, i32
  }
  func.func @transform_8(%arg0: i32) -> (i32, i32) {
    %c0_i32 = arith.constant 0 : i32
    %c0_i32_0 = arith.constant 0 : i32
    %c0_i32_1 = arith.constant 0 : i32
    return %c0_i32, %c0_i32_0 : i32, i32
  }
  func.func @transform_9(%arg0: i32) -> (i32, i32) {
    %c0_i32 = arith.constant 0 : i32
    %c0_i32_0 = arith.constant 0 : i32
    %c0_i32_1 = arith.constant 0 : i32
    return %c0_i32, %c0_i32_0 : i32, i32
  }
  func.func @transform_10(%arg0: i32) -> (i32, i32) {
    %c0_i32 = arith.constant 0 : i32
    %c0_i32_0 = arith.constant 0 : i32
    %c0_i32_1 = arith.constant 0 : i32
    return %c0_i32, %c0_i32_0 : i32, i32
  }
  func.func @transform_11(%arg0: i32) -> (i32, i32) {
    %c0_i32 = arith.constant 0 : i32
    %c0_i32_0 = arith.constant 0 : i32
    %c0_i32_1 = arith.constant 0 : i32
    return %c0_i32, %c0_i32_0 : i32, i32
  }
  func.func @transform_12(%arg0: i32) -> (i32, i32) {
    %c0_i32 = arith.constant 0 : i32
    %c0_i32_0 = arith.constant 0 : i32
    %c0_i32_1 = arith.constant 0 : i32
    return %c0_i32, %c0_i32_0 : i32, i32
  }
  func.func @transform_13(%arg0: i32) -> (i32, i32) {
    %c0_i32 = arith.constant 0 : i32
    %c0_i32_0 = arith.constant 0 : i32
    %c0_i32_1 = arith.constant 0 : i32
    return %c0_i32, %c0_i32_0 : i32, i32
  }
  func.func @transform_14(%arg0: i32) -> (i32, i32) {
    %c0_i32 = arith.constant 0 : i32
    %c0_i32_0 = arith.constant 0 : i32
    %c0_i32_1 = arith.constant 0 : i32
    return %c0_i32, %c0_i32_0 : i32, i32
  }
  func.func @transform_15(%arg0: i32) -> (i32, i32) {
    %c0_i32 = arith.constant 0 : i32
    %c0_i32_0 = arith.constant 0 : i32
    %c0_i32_1 = arith.constant 0 : i32
    return %c0_i32, %c0_i32_0 : i32, i32
  }
  func.func @transform_16(%arg0: i32) -> (i32, i32) {
    %c0_i32 = arith.constant 0 : i32
    %c0_i32_0 = arith.constant 0 : i32
    %c0_i32_1 = arith.constant 0 : i32
    return %c0_i32, %c0_i32_0 : i32, i32
  }
  func.func @transform_17(%arg0: i32) -> (i32, i32) {
    %c0_i32 = arith.constant 0 : i32
    %c0_i32_0 = arith.constant 0 : i32
    %c0_i32_1 = arith.constant 0 : i32
    return %c0_i32, %c0_i32_0 : i32, i32
  }
  func.func @transform_18(%arg0: i32) -> (i32, i32) {
    %c0_i32 = arith.constant 0 : i32
    %c0_i32_0 = arith.constant 0 : i32
    %c0_i32_1 = arith.constant 0 : i32
    return %c0_i32, %c0_i32_0 : i32, i32
  }
  func.func @transform_19(%arg0: i32) -> (i32, i32) {
    %c0_i32 = arith.constant 0 : i32
    %c0_i32_0 = arith.constant 0 : i32
    %c0_i32_1 = arith.constant 0 : i32
    return %c0_i32, %c0_i32_0 : i32, i32
  }
  func.func @transform_20(%arg0: i32) -> (i32, i32) {
    %c0_i32 = arith.constant 0 : i32
    %c0_i32_0 = arith.constant 0 : i32
    %c0_i32_1 = arith.constant 0 : i32
    return %c0_i32, %c0_i32_0 : i32, i32
  }
  func.func @transform_21(%arg0: i32) -> (i32, i32) {
    %c0_i32 = arith.constant 0 : i32
    %c0_i32_0 = arith.constant 0 : i32
    %c0_i32_1 = arith.constant 0 : i32
    return %c0_i32, %c0_i32_0 : i32, i32
  }
  func.func @transform_22(%arg0: i32) -> (i32, i32) {
    %c0_i32 = arith.constant 0 : i32
    %c0_i32_0 = arith.constant 0 : i32
    %c0_i32_1 = arith.constant 0 : i32
    return %c0_i32, %c0_i32_0 : i32, i32
  }
  func.func @transform_23(%arg0: i32) -> (i32, i32) {
    %c0_i32 = arith.constant 0 : i32
    %c0_i32_0 = arith.constant 0 : i32
    %c0_i32_1 = arith.constant 0 : i32
    return %c0_i32, %c0_i32_0 : i32, i32
  }
  func.func @transform_24(%arg0: i32) -> (i32, i32) {
    %c0_i32 = arith.constant 0 : i32
    %c0_i32_0 = arith.constant 0 : i32
    %c0_i32_1 = arith.constant 0 : i32
    return %c0_i32, %c0_i32_0 : i32, i32
  }
  func.func @transform_25(%arg0: i32) -> (i32, i32) {
    %c0_i32 = arith.constant 0 : i32
    %c0_i32_0 = arith.constant 0 : i32
    %c0_i32_1 = arith.constant 0 : i32
    return %c0_i32, %c0_i32_0 : i32, i32
  }
  func.func @transform_26(%arg0: i32) -> (i32, i32) {
    %c0_i32 = arith.constant 0 : i32
    %c0_i32_0 = arith.constant 0 : i32
    %c0_i32_1 = arith.constant 0 : i32
    return %c0_i32, %c0_i32_0 : i32, i32
  }
  func.func @transform_27(%arg0: i32) -> (i32, i32) {
    %c0_i32 = arith.constant 0 : i32
    %c0_i32_0 = arith.constant 0 : i32
    %c0_i32_1 = arith.constant 0 : i32
    return %c0_i32, %c0_i32_0 : i32, i32
  }
  func.func @transform_28(%arg0: i32) -> (i32, i32) {
    %c0_i32 = arith.constant 0 : i32
    %c0_i32_0 = arith.constant 0 : i32
    %c0_i32_1 = arith.constant 0 : i32
    return %c0_i32, %c0_i32_0 : i32, i32
  }
  func.func @transform_29(%arg0: i32) -> (i32, i32) {
    %c0_i32 = arith.constant 0 : i32
    %c0_i32_0 = arith.constant 0 : i32
    %c0_i32_1 = arith.constant 0 : i32
    return %c0_i32, %c0_i32_0 : i32, i32
  }
  func.func @transform_30(%arg0: i32) -> (i32, i32) {
    %c0_i32 = arith.constant 0 : i32
    %c0_i32_0 = arith.constant 0 : i32
    %c0_i32_1 = arith.constant 0 : i32
    return %c0_i32, %c0_i32_0 : i32, i32
  }
  func.func @transform_31(%arg0: i32) -> (i32, i32) {
    %c0_i32 = arith.constant 0 : i32
    %c0_i32_0 = arith.constant 0 : i32
    %c0_i32_1 = arith.constant 0 : i32
    return %c0_i32, %c0_i32_0 : i32, i32
  }
  func.func @transform_32(%arg0: i32) -> (i32, i32, i32) {
    %c0_i32 = arith.constant 0 : i32
    %c0_i32_0 = arith.constant 0 : i32
    %c0_i32_1 = arith.constant 0 : i32
    return %arg0, %c0_i32, %c0_i32_0 : i32, i32, i32
  }
}

</mosaic_0001>

<llo_original>
// kernel: etris_forward.1
$region0: #{etris_forward.1}
  #allocation0 [shape = 'u32[]', space=smem, size = 0x4, offset = 0x4, fixed_abs, tag = 'smem constant byte address 0x4 - core index']
  #allocation1 [shape = 'u32[144,128]{1,0:T(1,128)}', space=vmem, size = 0x12000, scoped, tag = 'internal scratch']
  %s0 = inlined_call_operand.smem [shape: u32[33], index: -1, kind: input, shape index: {}]
  %s1 = sld [smem:[%s0]]
  %s2 = scalar_lea.smem %s0, 1
  %s3 = sld [smem:[%s2]]
  %s4 = scalar_lea.smem %s0, 2
  %s5 = sld [smem:[%s4]]
  %s6 = scalar_lea.smem %s0, 3
  %s7 = sld [smem:[%s6]]
  %s8 = scalar_lea.smem %s0, 4
  %s9 = sld [smem:[%s8]]
  %s10 = scalar_lea.smem %s0, 5
  %s11 = sld [smem:[%s10]]
  %s12 = scalar_lea.smem %s0, 6
  %s13 = sld [smem:[%s12]]
  %s14 = scalar_lea.smem %s0, 7
  %s15 = sld [smem:[%s14]]
  %s16 = scalar_lea.smem %s0, 8
  %s17 = sld [smem:[%s16]]
  %s18 = scalar_lea.smem %s0, 9
  %s19 = sld [smem:[%s18]]
  %s20 = scalar_lea.smem %s0, 10
  %s21 = sld [smem:[%s20]]
  %s22 = scalar_lea.smem %s0, 11
  %s23 = sld [smem:[%s22]]
  %s24 = scalar_lea.smem %s0, 12
  %s25 = sld [smem:[%s24]]
  %s26 = scalar_lea.smem %s0, 13
  %s27 = sld [smem:[%s26]]
  %s28 = scalar_lea.smem %s0, 14
  %s29 = sld [smem:[%s28]]
  %s30 = scalar_lea.smem %s0, 15
  %s31 = sld [smem:[%s30]]
  %s32 = scalar_lea.smem %s0, 16
  %s33 = sld [smem:[%s32]]
  %s34 = scalar_lea.smem %s0, 17
  %s35 = sld [smem:[%s34]]
  %s36 = scalar_lea.smem %s0, 18
  %s37 = sld [smem:[%s36]]
  %s38 = scalar_lea.smem %s0, 19
  %s39 = sld [smem:[%s38]]
  %s40 = scalar_lea.smem %s0, 20
  %s41 = sld [smem:[%s40]]
  %s42 = scalar_lea.smem %s0, 21
  %s43 = sld [smem:[%s42]]
  %s44 = scalar_lea.smem %s0, 22
  %s45 = sld [smem:[%s44]]
  %s46 = scalar_lea.smem %s0, 23
  %s47 = sld [smem:[%s46]]
  %s48 = scalar_lea.smem %s0, 24
  %s49 = sld [smem:[%s48]]
  %s50 = scalar_lea.smem %s0, 25
  %s51 = sld [smem:[%s50]]
  %s52 = scalar_lea.smem %s0, 26
  %s53 = sld [smem:[%s52]]
  %s54 = scalar_lea.smem %s0, 27
  %s55 = sld [smem:[%s54]]
  %s56 = scalar_lea.smem %s0, 28
  %s57 = sld [smem:[%s56]]
  %s58 = scalar_lea.smem %s0, 29
  %s59 = sld [smem:[%s58]]
  %s60 = scalar_lea.smem %s0, 30
  %s61 = sld [smem:[%s60]]
  %s62 = scalar_lea.smem %s0, 31
  %s63 = sld [smem:[%s62]]
  %s64 = scalar_lea.smem %s0, 32
  %s65 = sld [smem:[%s64]]
  %s66 = sld [smem:[#allocation0]]
  $region161: #{etris_forward.1} parent=0
    _
  %s68 = ssub.s32 1, %s66
  %s69 = scalar_select 0, %s68, %s66
  loop: start=0, step=1, limit=4
  $region2: #{etris_forward.1} parent=0 // loop_pre_header
    _
  $region3: #{etris_forward.1} parent=0 // loop_header
    %s71 = sphi 0, %s75
    %p72 = scmp.ge.s32.totalorder %s71, 4
    %s81 = sphi 0, %s83
    %s84 = sphi 0, %s81
    %s85 = sphi 0, %s84
    %s101 = sphi 0, %s85
    %s107 = sphi 0, %s109
    %s110 = sphi 0, %s107
    %s111 = sphi 0, %s110
    %s127 = sphi 0, %s111
    %s133 = sphi 0, %s135
    %s136 = sphi 0, %s133
    %s137 = sphi 0, %s136
    %s153 = sphi 0, %s137
    %s157 = sphi 0, %s157
    %s159 = sphi 0, %s157
    %s160 = sphi 0, %s159
    %s174 = sphi 0, %s160
    %s178 = sphi 0, %s178
    %s180 = sphi 0, %s178
    %s181 = sphi 0, %s180
    %s195 = sphi 0, %s181
    %s199 = sphi 0, %s199
    %s201 = sphi 0, %s199
    %s202 = sphi 0, %s201
    %s216 = sphi 0, %s202
    %s220 = sphi 0, %s220
    %s222 = sphi 0, %s220
    %s223 = sphi 0, %s222
    %s237 = sphi 0, %s223
    %s241 = sphi 0, %s241
    %s243 = sphi 0, %s241
    %s244 = sphi 0, %s243
    %s258 = sphi 0, %s244
    %s262 = sphi 0, %s262
    %s264 = sphi 0, %s262
    %s265 = sphi 0, %s264
    %s279 = sphi 0, %s265
    %s283 = sphi 0, %s283
    %s285 = sphi 0, %s283
    %s286 = sphi 0, %s285
    %s300 = sphi 0, %s286
    %s304 = sphi 0, %s304
    %s306 = sphi 0, %s304
    %s307 = sphi 0, %s306
    %s321 = sphi 0, %s307
    %s325 = sphi 0, %s325
    %s327 = sphi 0, %s325
    %s328 = sphi 0, %s327
    %s342 = sphi 0, %s328
    %s346 = sphi 0, %s346
    %s348 = sphi 0, %s346
    %s349 = sphi 0, %s348
    %s363 = sphi 0, %s349
    %s367 = sphi 0, %s367
    %s369 = sphi 0, %s367
    %s370 = sphi 0, %s369
    %s384 = sphi 0, %s370
    %s388 = sphi 0, %s388
    %s390 = sphi 0, %s388
    %s391 = sphi 0, %s390
    %s405 = sphi 0, %s391
    %s409 = sphi 0, %s409
    %s411 = sphi 0, %s409
    %s412 = sphi 0, %s411
    %s426 = sphi 0, %s412
    %s430 = sphi 0, %s430
    %s432 = sphi 0, %s430
    %s433 = sphi 0, %s432
    %s447 = sphi 0, %s433
    %s451 = sphi 0, %s451
    %s453 = sphi 0, %s451
    %s454 = sphi 0, %s453
    %s468 = sphi 0, %s454
    %s472 = sphi 0, %s472
    %s474 = sphi 0, %s472
    %s475 = sphi 0, %s474
    %s489 = sphi 0, %s475
    %s493 = sphi 0, %s493
    %s495 = sphi 0, %s493
    %s496 = sphi 0, %s495
    %s510 = sphi 0, %s496
    %s514 = sphi 0, %s514
    %s516 = sphi 0, %s514
    %s517 = sphi 0, %s516
    %s531 = sphi 0, %s517
    %s535 = sphi 0, %s535
    %s537 = sphi 0, %s535
    %s538 = sphi 0, %s537
    %s552 = sphi 0, %s538
    %s556 = sphi 0, %s556
    %s558 = sphi 0, %s556
    %s559 = sphi 0, %s558
    %s573 = sphi 0, %s559
    %s577 = sphi 0, %s577
    %s579 = sphi 0, %s577
    %s580 = sphi 0, %s579
    %s594 = sphi 0, %s580
    %s598 = sphi 0, %s598
    %s600 = sphi 0, %s598
    %s601 = sphi 0, %s600
    %s615 = sphi 0, %s601
    %s619 = sphi 0, %s619
    %s621 = sphi 0, %s619
    %s622 = sphi 0, %s621
    %s636 = sphi 0, %s622
    %s640 = sphi 0, %s640
    %s642 = sphi 0, %s640
    %s643 = sphi 0, %s642
    %s657 = sphi 0, %s643
    %s661 = sphi 0, %s661
    %s663 = sphi 0, %s661
    %s664 = sphi 0, %s663
    %s678 = sphi 0, %s664
    %s682 = sphi 0, %s682
    %s684 = sphi 0, %s682
    %s685 = sphi 0, %s684
    %s699 = sphi 0, %s685
    %s703 = sphi 0, %s703
    %s705 = sphi 0, %s703
    %s706 = sphi 0, %s705
    %s720 = sphi 0, %s706
    %s724 = sphi 0, %s724
    %s726 = sphi 0, %s724
    %s727 = sphi 0, %s726
    %s741 = sphi 0, %s727
    %s745 = sphi 0, %s745
    %s747 = sphi 0, %s745
    %s748 = sphi 0, %s747
    %s762 = sphi 0, %s748
    %s768 = sphi 0, %s770
    %s771 = sphi 0, %s768
    %s772 = sphi 0, %s771
    %s788 = sphi 0, %s772
  $region4: #{etris_forward.1} parent=0 // loop_header_branch
    %74 = sbr.rel (%p72) target = $region8
  $region5: #{etris_forward.1} parent=0 // loop_body
    %s76 = ssub.s32 %s71, 1
    %s77 = ssub.s32 %s71, 2
    %s78 = sadd.s32 %s71, 1
    %s79 = ssub.s32 %s71, %s78
    %p80 = scmp.eq.s32.totalorder %s79, 0
    %s82 = sadd.s32 %s81, 1
    %s83 = scalar_select %p80, %s81, %s82
    %p86 = pneg %p80
    %p87 = scmp.eq.s32.totalorder %s71, 1
    %p88 = por %p86, %p87
    %p89 = scmp.ne.s32.totalorder %s81, %s84
    %p90 = scmp.eq.s32.totalorder %s71, 0
    %p91 = por %p89, %p90
    %p92 = scmp.ne.s32.totalorder %s81, %s84
    %p93 = scmp.eq.s32.totalorder %s76, 1
    %p94 = por %p92, %p93
    %p95 = scmp.ne.s32.totalorder %s84, %s85
    %p96 = scmp.eq.s32.totalorder %s76, 0
    %p97 = por %p95, %p96
    %p98 = scmp.ne.s32.totalorder %s84, %s85
    %p99 = scmp.eq.s32.totalorder %s77, 1
    %p100 = por %p98, %p99
    %p102 = scmp.ne.s32.totalorder %s85, %s101
    %p103 = scmp.eq.s32.totalorder %s77, 0
    %p104 = por %p102, %p103
    %s105 = ssub.s32 %s71, %s78
    %p106 = scmp.eq.s32.totalorder %s105, 0
    %s108 = sadd.s32 %s107, 1
    %s109 = scalar_select %p106, %s107, %s108
    %p112 = pneg %p106
    %p113 = scmp.eq.s32.totalorder %s71, 1
    %p114 = por %p112, %p113
    %p115 = scmp.ne.s32.totalorder %s107, %s110
    %p116 = scmp.eq.s32.totalorder %s71, 0
    %p117 = por %p115, %p116
    %p118 = scmp.ne.s32.totalorder %s107, %s110
    %p119 = scmp.eq.s32.totalorder %s76, 1
    %p120 = por %p118, %p119
    %p121 = scmp.ne.s32.totalorder %s110, %s111
    %p122 = scmp.eq.s32.totalorder %s76, 0
    %p123 = por %p121, %p122
    %p124 = scmp.ne.s32.totalorder %s110, %s111
    %p125 = scmp.eq.s32.totalorder %s77, 1
    %p126 = por %p124, %p125
    %p128 = scmp.ne.s32.totalorder %s111, %s127
    %p129 = scmp.eq.s32.totalorder %s77, 0
    %p130 = por %p128, %p129
    %s131 = ssub.s32 %s71, %s78
    %p132 = scmp.eq.s32.totalorder %s131, 0
    %s134 = sadd.s32 %s133, 1
    %s135 = scalar_select %p132, %s133, %s134
    %p138 = pneg %p132
    %p139 = scmp.eq.s32.totalorder %s71, 1
    %p140 = por %p138, %p139
    %p141 = scmp.ne.s32.totalorder %s133, %s136
    %p142 = scmp.eq.s32.totalorder %s71, 0
    %p143 = por %p141, %p142
    %p144 = scmp.ne.s32.totalorder %s133, %s136
    %p145 = scmp.eq.s32.totalorder %s76, 1
    %p146 = por %p144, %p145
    %p147 = scmp.ne.s32.totalorder %s136, %s137
    %p148 = scmp.eq.s32.totalorder %s76, 0
    %p149 = por %p147, %p148
    %p150 = scmp.ne.s32.totalorder %s136, %s137
    %p151 = scmp.eq.s32.totalorder %s77, 1
    %p152 = por %p150, %p151
    %p154 = scmp.ne.s32.totalorder %s137, %s153
    %p155 = scmp.eq.s32.totalorder %s77, 0
    %p156 = por %p154, %p155
    %s158 = sadd.s32 %s157, 1
    %p161 = scmp.eq.s32.totalorder %s71, 1
    %p162 = scmp.ne.s32.totalorder %s157, %s159
    %p163 = scmp.eq.s32.totalorder %s71, 0
    %p164 = por %p162, %p163
    %p165 = scmp.ne.s32.totalorder %s157, %s159
    %p166 = scmp.eq.s32.totalorder %s76, 1
    %p167 = por %p165, %p166
    %p168 = scmp.ne.s32.totalorder %s159, %s160
    %p169 = scmp.eq.s32.totalorder %s76, 0
    %p170 = por %p168, %p169
    %p171 = scmp.ne.s32.totalorder %s159, %s160
    %p172 = scmp.eq.s32.totalorder %s77, 1
    %p173 = por %p171, %p172
    %p175 = scmp.ne.s32.totalorder %s160, %s174
    %p176 = scmp.eq.s32.totalorder %s77, 0
    %p177 = por %p175, %p176
    %s179 = sadd.s32 %s178, 1
    %p182 = scmp.eq.s32.totalorder %s71, 1
    %p183 = scmp.ne.s32.totalorder %s178, %s180
    %p184 = scmp.eq.s32.totalorder %s71, 0
    %p185 = por %p183, %p184
    %p186 = scmp.ne.s32.totalorder %s178, %s180
    %p187 = scmp.eq.s32.totalorder %s76, 1
    %p188 = por %p186, %p187
    %p189 = scmp.ne.s32.totalorder %s180, %s181
    %p190 = scmp.eq.s32.totalorder %s76, 0
    %p191 = por %p189, %p190
    %p192 = scmp.ne.s32.totalorder %s180, %s181
    %p193 = scmp.eq.s32.totalorder %s77, 1
    %p194 = por %p192, %p193
    %p196 = scmp.ne.s32.totalorder %s181, %s195
    %p197 = scmp.eq.s32.totalorder %s77, 0
    %p198 = por %p196, %p197
    %s200 = sadd.s32 %s199, 1
    %p203 = scmp.eq.s32.totalorder %s71, 1
    %p204 = scmp.ne.s32.totalorder %s199, %s201
    %p205 = scmp.eq.s32.totalorder %s71, 0
    %p206 = por %p204, %p205
    %p207 = scmp.ne.s32.totalorder %s199, %s201
    %p208 = scmp.eq.s32.totalorder %s76, 1
    %p209 = por %p207, %p208
    %p210 = scmp.ne.s32.totalorder %s201, %s202
    %p211 = scmp.eq.s32.totalorder %s76, 0
    %p212 = por %p210, %p211
    %p213 = scmp.ne.s32.totalorder %s201, %s202
    %p214 = scmp.eq.s32.totalorder %s77, 1
    %p215 = por %p213, %p214
    %p217 = scmp.ne.s32.totalorder %s202, %s216
    %p218 = scmp.eq.s32.totalorder %s77, 0
    %p219 = por %p217, %p218
    %s221 = sadd.s32 %s220, 1
    %p224 = scmp.eq.s32.totalorder %s71, 1
    %p225 = scmp.ne.s32.totalorder %s220, %s222
    %p226 = scmp.eq.s32.totalorder %s71, 0
    %p227 = por %p225, %p226
    %p228 = scmp.ne.s32.totalorder %s220, %s222
    %p229 = scmp.eq.s32.totalorder %s76, 1
    %p230 = por %p228, %p229
    %p231 = scmp.ne.s32.totalorder %s222, %s223
    %p232 = scmp.eq.s32.totalorder %s76, 0
    %p233 = por %p231, %p232
    %p234 = scmp.ne.s32.totalorder %s222, %s223
    %p235 = scmp.eq.s32.totalorder %s77, 1
    %p236 = por %p234, %p235
    %p238 = scmp.ne.s32.totalorder %s223, %s237
    %p239 = scmp.eq.s32.totalorder %s77, 0
    %p240 = por %p238, %p239
    %s242 = sadd.s32 %s241, 1
    %p245 = scmp.eq.s32.totalorder %s71, 1
    %p246 = scmp.ne.s32.totalorder %s241, %s243
    %p247 = scmp.eq.s32.totalorder %s71, 0
    %p248 = por %p246, %p247
    %p249 = scmp.ne.s32.totalorder %s241, %s243
    %p250 = scmp.eq.s32.totalorder %s76, 1
    %p251 = por %p249, %p250
    %p252 = scmp.ne.s32.totalorder %s243, %s244
    %p253 = scmp.eq.s32.totalorder %s76, 0
    %p254 = por %p252, %p253
    %p255 = scmp.ne.s32.totalorder %s243, %s244
    %p256 = scmp.eq.s32.totalorder %s77, 1
    %p257 = por %p255, %p256
    %p259 = scmp.ne.s32.totalorder %s244, %s258
    %p260 = scmp.eq.s32.totalorder %s77, 0
    %p261 = por %p259, %p260
    %s263 = sadd.s32 %s262, 1
    %p266 = scmp.eq.s32.totalorder %s71, 1
    %p267 = scmp.ne.s32.totalorder %s262, %s264
    %p268 = scmp.eq.s32.totalorder %s71, 0
    %p269 = por %p267, %p268
    %p270 = scmp.ne.s32.totalorder %s262, %s264
    %p271 = scmp.eq.s32.totalorder %s76, 1
    %p272 = por %p270, %p271
    %p273 = scmp.ne.s32.totalorder %s264, %s265
    %p274 = scmp.eq.s32.totalorder %s76, 0
    %p275 = por %p273, %p274
    %p276 = scmp.ne.s32.totalorder %s264, %s265
    %p277 = scmp.eq.s32.totalorder %s77, 1
    %p278 = por %p276, %p277
    %p280 = scmp.ne.s32.totalorder %s265, %s279
    %p281 = scmp.eq.s32.totalorder %s77, 0
    %p282 = por %p280, %p281
    %s284 = sadd.s32 %s283, 1
    %p287 = scmp.eq.s32.totalorder %s71, 1
    %p288 = scmp.ne.s32.totalorder %s283, %s285
    %p289 = scmp.eq.s32.totalorder %s71, 0
    %p290 = por %p288, %p289
    %p291 = scmp.ne.s32.totalorder %s283, %s285
    %p292 = scmp.eq.s32.totalorder %s76, 1
    %p293 = por %p291, %p292
    %p294 = scmp.ne.s32.totalorder %s285, %s286
    %p295 = scmp.eq.s32.totalorder %s76, 0
    %p296 = por %p294, %p295
    %p297 = scmp.ne.s32.totalorder %s285, %s286
    %p298 = scmp.eq.s32.totalorder %s77, 1
    %p299 = por %p297, %p298
    %p301 = scmp.ne.s32.totalorder %s286, %s300
    %p302 = scmp.eq.s32.totalorder %s77, 0
    %p303 = por %p301, %p302
    %s305 = sadd.s32 %s304, 1
    %p308 = scmp.eq.s32.totalorder %s71, 1
    %p309 = scmp.ne.s32.totalorder %s304, %s306
    %p310 = scmp.eq.s32.totalorder %s71, 0
    %p311 = por %p309, %p310
    %p312 = scmp.ne.s32.totalorder %s304, %s306
    %p313 = scmp.eq.s32.totalorder %s76, 1
    %p314 = por %p312, %p313
    %p315 = scmp.ne.s32.totalorder %s306, %s307
    %p316 = scmp.eq.s32.totalorder %s76, 0
    %p317 = por %p315, %p316
    %p318 = scmp.ne.s32.totalorder %s306, %s307
    %p319 = scmp.eq.s32.totalorder %s77, 1
    %p320 = por %p318, %p319
    %p322 = scmp.ne.s32.totalorder %s307, %s321
    %p323 = scmp.eq.s32.totalorder %s77, 0
    %p324 = por %p322, %p323
    %s326 = sadd.s32 %s325, 1
    %p329 = scmp.eq.s32.totalorder %s71, 1
    %p330 = scmp.ne.s32.totalorder %s325, %s327
    %p331 = scmp.eq.s32.totalorder %s71, 0
    %p332 = por %p330, %p331
    %p333 = scmp.ne.s32.totalorder %s325, %s327
    %p334 = scmp.eq.s32.totalorder %s76, 1
    %p335 = por %p333, %p334
    %p336 = scmp.ne.s32.totalorder %s327, %s328
    %p337 = scmp.eq.s32.totalorder %s76, 0
    %p338 = por %p336, %p337
    %p339 = scmp.ne.s32.totalorder %s327, %s328
    %p340 = scmp.eq.s32.totalorder %s77, 1
    %p341 = por %p339, %p340
    %p343 = scmp.ne.s32.totalorder %s328, %s342
    %p344 = scmp.eq.s32.totalorder %s77, 0
    %p345 = por %p343, %p344
    %s347 = sadd.s32 %s346, 1
    %p350 = scmp.eq.s32.totalorder %s71, 1
    %p351 = scmp.ne.s32.totalorder %s346, %s348
    %p352 = scmp.eq.s32.totalorder %s71, 0
    %p353 = por %p351, %p352
    %p354 = scmp.ne.s32.totalorder %s346, %s348
    %p355 = scmp.eq.s32.totalorder %s76, 1
    %p356 = por %p354, %p355
    %p357 = scmp.ne.s32.totalorder %s348, %s349
    %p358 = scmp.eq.s32.totalorder %s76, 0
    %p359 = por %p357, %p358
    %p360 = scmp.ne.s32.totalorder %s348, %s349
    %p361 = scmp.eq.s32.totalorder %s77, 1
    %p362 = por %p360, %p361
    %p364 = scmp.ne.s32.totalorder %s349, %s363
    %p365 = scmp.eq.s32.totalorder %s77, 0
    %p366 = por %p364, %p365
    %s368 = sadd.s32 %s367, 1
    %p371 = scmp.eq.s32.totalorder %s71, 1
    %p372 = scmp.ne.s32.totalorder %s367, %s369
    %p373 = scmp.eq.s32.totalorder %s71, 0
    %p374 = por %p372, %p373
    %p375 = scmp.ne.s32.totalorder %s367, %s369
    %p376 = scmp.eq.s32.totalorder %s76, 1
    %p377 = por %p375, %p376
    %p378 = scmp.ne.s32.totalorder %s369, %s370
    %p379 = scmp.eq.s32.totalorder %s76, 0
    %p380 = por %p378, %p379
    %p381 = scmp.ne.s32.totalorder %s369, %s370
    %p382 = scmp.eq.s32.totalorder %s77, 1
    %p383 = por %p381, %p382
    %p385 = scmp.ne.s32.totalorder %s370, %s384
    %p386 = scmp.eq.s32.totalorder %s77, 0
    %p387 = por %p385, %p386
    %s389 = sadd.s32 %s388, 1
    %p392 = scmp.eq.s32.totalorder %s71, 1
    %p393 = scmp.ne.s32.totalorder %s388, %s390
    %p394 = scmp.eq.s32.totalorder %s71, 0
    %p395 = por %p393, %p394
    %p396 = scmp.ne.s32.totalorder %s388, %s390
    %p397 = scmp.eq.s32.totalorder %s76, 1
    %p398 = por %p396, %p397
    %p399 = scmp.ne.s32.totalorder %s390, %s391
    %p400 = scmp.eq.s32.totalorder %s76, 0
    %p401 = por %p399, %p400
    %p402 = scmp.ne.s32.totalorder %s390, %s391
    %p403 = scmp.eq.s32.totalorder %s77, 1
    %p404 = por %p402, %p403
    %p406 = scmp.ne.s32.totalorder %s391, %s405
    %p407 = scmp.eq.s32.totalorder %s77, 0
    %p408 = por %p406, %p407
    %s410 = sadd.s32 %s409, 1
    %p413 = scmp.eq.s32.totalorder %s71, 1
    %p414 = scmp.ne.s32.totalorder %s409, %s411
    %p415 = scmp.eq.s32.totalorder %s71, 0
    %p416 = por %p414, %p415
    %p417 = scmp.ne.s32.totalorder %s409, %s411
    %p418 = scmp.eq.s32.totalorder %s76, 1
    %p419 = por %p417, %p418
    %p420 = scmp.ne.s32.totalorder %s411, %s412
    %p421 = scmp.eq.s32.totalorder %s76, 0
    %p422 = por %p420, %p421
    %p423 = scmp.ne.s32.totalorder %s411, %s412
    %p424 = scmp.eq.s32.totalorder %s77, 1
    %p425 = por %p423, %p424
    %p427 = scmp.ne.s32.totalorder %s412, %s426
    %p428 = scmp.eq.s32.totalorder %s77, 0
    %p429 = por %p427, %p428
    %s431 = sadd.s32 %s430, 1
    %p434 = scmp.eq.s32.totalorder %s71, 1
    %p435 = scmp.ne.s32.totalorder %s430, %s432
    %p436 = scmp.eq.s32.totalorder %s71, 0
    %p437 = por %p435, %p436
    %p438 = scmp.ne.s32.totalorder %s430, %s432
    %p439 = scmp.eq.s32.totalorder %s76, 1
    %p440 = por %p438, %p439
    %p441 = scmp.ne.s32.totalorder %s432, %s433
    %p442 = scmp.eq.s32.totalorder %s76, 0
    %p443 = por %p441, %p442
    %p444 = scmp.ne.s32.totalorder %s432, %s433
    %p445 = scmp.eq.s32.totalorder %s77, 1
    %p446 = por %p444, %p445
    %p448 = scmp.ne.s32.totalorder %s433, %s447
    %p449 = scmp.eq.s32.totalorder %s77, 0
    %p450 = por %p448, %p449
    %s452 = sadd.s32 %s451, 1
    %p455 = scmp.eq.s32.totalorder %s71, 1
    %p456 = scmp.ne.s32.totalorder %s451, %s453
    %p457 = scmp.eq.s32.totalorder %s71, 0
    %p458 = por %p456, %p457
    %p459 = scmp.ne.s32.totalorder %s451, %s453
    %p460 = scmp.eq.s32.totalorder %s76, 1
    %p461 = por %p459, %p460
    %p462 = scmp.ne.s32.totalorder %s453, %s454
    %p463 = scmp.eq.s32.totalorder %s76, 0
    %p464 = por %p462, %p463
    %p465 = scmp.ne.s32.totalorder %s453, %s454
    %p466 = scmp.eq.s32.totalorder %s77, 1
    %p467 = por %p465, %p466
    %p469 = scmp.ne.s32.totalorder %s454, %s468
    %p470 = scmp.eq.s32.totalorder %s77, 0
    %p471 = por %p469, %p470
    %s473 = sadd.s32 %s472, 1
    %p476 = scmp.eq.s32.totalorder %s71, 1
    %p477 = scmp.ne.s32.totalorder %s472, %s474
    %p478 = scmp.eq.s32.totalorder %s71, 0
    %p479 = por %p477, %p478
    %p480 = scmp.ne.s32.totalorder %s472, %s474
    %p481 = scmp.eq.s32.totalorder %s76, 1
    %p482 = por %p480, %p481
    %p483 = scmp.ne.s32.totalorder %s474, %s475
    %p484 = scmp.eq.s32.totalorder %s76, 0
    %p485 = por %p483, %p484
    %p486 = scmp.ne.s32.totalorder %s474, %s475
    %p487 = scmp.eq.s32.totalorder %s77, 1
    %p488 = por %p486, %p487
    %p490 = scmp.ne.s32.totalorder %s475, %s489
    %p491 = scmp.eq.s32.totalorder %s77, 0
    %p492 = por %p490, %p491
    %s494 = sadd.s32 %s493, 1
    %p497 = scmp.eq.s32.totalorder %s71, 1
    %p498 = scmp.ne.s32.totalorder %s493, %s495
    %p499 = scmp.eq.s32.totalorder %s71, 0
    %p500 = por %p498, %p499
    %p501 = scmp.ne.s32.totalorder %s493, %s495
    %p502 = scmp.eq.s32.totalorder %s76, 1
    %p503 = por %p501, %p502
    %p504 = scmp.ne.s32.totalorder %s495, %s496
    %p505 = scmp.eq.s32.totalorder %s76, 0
    %p506 = por %p504, %p505
    %p507 = scmp.ne.s32.totalorder %s495, %s496
    %p508 = scmp.eq.s32.totalorder %s77, 1
    %p509 = por %p507, %p508
    %p511 = scmp.ne.s32.totalorder %s496, %s510
    %p512 = scmp.eq.s32.totalorder %s77, 0
    %p513 = por %p511, %p512
    %s515 = sadd.s32 %s514, 1
    %p518 = scmp.eq.s32.totalorder %s71, 1
    %p519 = scmp.ne.s32.totalorder %s514, %s516
    %p520 = scmp.eq.s32.totalorder %s71, 0
    %p521 = por %p519, %p520
    %p522 = scmp.ne.s32.totalorder %s514, %s516
    %p523 = scmp.eq.s32.totalorder %s76, 1
    %p524 = por %p522, %p523
    %p525 = scmp.ne.s32.totalorder %s516, %s517
    %p526 = scmp.eq.s32.totalorder %s76, 0
    %p527 = por %p525, %p526
    %p528 = scmp.ne.s32.totalorder %s516, %s517
    %p529 = scmp.eq.s32.totalorder %s77, 1
    %p530 = por %p528, %p529
    %p532 = scmp.ne.s32.totalorder %s517, %s531
    %p533 = scmp.eq.s32.totalorder %s77, 0
    %p534 = por %p532, %p533
    %s536 = sadd.s32 %s535, 1
    %p539 = scmp.eq.s32.totalorder %s71, 1
    %p540 = scmp.ne.s32.totalorder %s535, %s537
    %p541 = scmp.eq.s32.totalorder %s71, 0
    %p542 = por %p540, %p541
    %p543 = scmp.ne.s32.totalorder %s535, %s537
    %p544 = scmp.eq.s32.totalorder %s76, 1
    %p545 = por %p543, %p544
    %p546 = scmp.ne.s32.totalorder %s537, %s538
    %p547 = scmp.eq.s32.totalorder %s76, 0
    %p548 = por %p546, %p547
    %p549 = scmp.ne.s32.totalorder %s537, %s538
    %p550 = scmp.eq.s32.totalorder %s77, 1
    %p551 = por %p549, %p550
    %p553 = scmp.ne.s32.totalorder %s538, %s552
    %p554 = scmp.eq.s32.totalorder %s77, 0
    %p555 = por %p553, %p554
    %s557 = sadd.s32 %s556, 1
    %p560 = scmp.eq.s32.totalorder %s71, 1
    %p561 = scmp.ne.s32.totalorder %s556, %s558
    %p562 = scmp.eq.s32.totalorder %s71, 0
    %p563 = por %p561, %p562
    %p564 = scmp.ne.s32.totalorder %s556, %s558
    %p565 = scmp.eq.s32.totalorder %s76, 1
    %p566 = por %p564, %p565
    %p567 = scmp.ne.s32.totalorder %s558, %s559
    %p568 = scmp.eq.s32.totalorder %s76, 0
    %p569 = por %p567, %p568
    %p570 = scmp.ne.s32.totalorder %s558, %s559
    %p571 = scmp.eq.s32.totalorder %s77, 1
    %p572 = por %p570, %p571
    %p574 = scmp.ne.s32.totalorder %s559, %s573
    %p575 = scmp.eq.s32.totalorder %s77, 0
    %p576 = por %p574, %p575
    %s578 = sadd.s32 %s577, 1
    %p581 = scmp.eq.s32.totalorder %s71, 1
    %p582 = scmp.ne.s32.totalorder %s577, %s579
    %p583 = scmp.eq.s32.totalorder %s71, 0
    %p584 = por %p582, %p583
    %p585 = scmp.ne.s32.totalorder %s577, %s579
    %p586 = scmp.eq.s32.totalorder %s76, 1
    %p587 = por %p585, %p586
    %p588 = scmp.ne.s32.totalorder %s579, %s580
    %p589 = scmp.eq.s32.totalorder %s76, 0
    %p590 = por %p588, %p589
    %p591 = scmp.ne.s32.totalorder %s579, %s580
    %p592 = scmp.eq.s32.totalorder %s77, 1
    %p593 = por %p591, %p592
    %p595 = scmp.ne.s32.totalorder %s580, %s594
    %p596 = scmp.eq.s32.totalorder %s77, 0
    %p597 = por %p595, %p596
    %s599 = sadd.s32 %s598, 1
    %p602 = scmp.eq.s32.totalorder %s71, 1
    %p603 = scmp.ne.s32.totalorder %s598, %s600
    %p604 = scmp.eq.s32.totalorder %s71, 0
    %p605 = por %p603, %p604
    %p606 = scmp.ne.s32.totalorder %s598, %s600
    %p607 = scmp.eq.s32.totalorder %s76, 1
    %p608 = por %p606, %p607
    %p609 = scmp.ne.s32.totalorder %s600, %s601
    %p610 = scmp.eq.s32.totalorder %s76, 0
    %p611 = por %p609, %p610
    %p612 = scmp.ne.s32.totalorder %s600, %s601
    %p613 = scmp.eq.s32.totalorder %s77, 1
    %p614 = por %p612, %p613
    %p616 = scmp.ne.s32.totalorder %s601, %s615
    %p617 = scmp.eq.s32.totalorder %s77, 0
    %p618 = por %p616, %p617
    %s620 = sadd.s32 %s619, 1
    %p623 = scmp.eq.s32.totalorder %s71, 1
    %p624 = scmp.ne.s32.totalorder %s619, %s621
    %p625 = scmp.eq.s32.totalorder %s71, 0
    %p626 = por %p624, %p625
    %p627 = scmp.ne.s32.totalorder %s619, %s621
    %p628 = scmp.eq.s32.totalorder %s76, 1
    %p629 = por %p627, %p628
    %p630 = scmp.ne.s32.totalorder %s621, %s622
    %p631 = scmp.eq.s32.totalorder %s76, 0
    %p632 = por %p630, %p631
    %p633 = scmp.ne.s32.totalorder %s621, %s622
    %p634 = scmp.eq.s32.totalorder %s77, 1
    %p635 = por %p633, %p634
    %p637 = scmp.ne.s32.totalorder %s622, %s636
    %p638 = scmp.eq.s32.totalorder %s77, 0
    %p639 = por %p637, %p638
    %s641 = sadd.s32 %s640, 1
    %p644 = scmp.eq.s32.totalorder %s71, 1
    %p645 = scmp.ne.s32.totalorder %s640, %s642
    %p646 = scmp.eq.s32.totalorder %s71, 0
    %p647 = por %p645, %p646
    %p648 = scmp.ne.s32.totalorder %s640, %s642
    %p649 = scmp.eq.s32.totalorder %s76, 1
    %p650 = por %p648, %p649
    %p651 = scmp.ne.s32.totalorder %s642, %s643
    %p652 = scmp.eq.s32.totalorder %s76, 0
    %p653 = por %p651, %p652
    %p654 = scmp.ne.s32.totalorder %s642, %s643
    %p655 = scmp.eq.s32.totalorder %s77, 1
    %p656 = por %p654, %p655
    %p658 = scmp.ne.s32.totalorder %s643, %s657
    %p659 = scmp.eq.s32.totalorder %s77, 0
    %p660 = por %p658, %p659
    %s662 = sadd.s32 %s661, 1
    %p665 = scmp.eq.s32.totalorder %s71, 1
    %p666 = scmp.ne.s32.totalorder %s661, %s663
    %p667 = scmp.eq.s32.totalorder %s71, 0
    %p668 = por %p666, %p667
    %p669 = scmp.ne.s32.totalorder %s661, %s663
    %p670 = scmp.eq.s32.totalorder %s76, 1
    %p671 = por %p669, %p670
    %p672 = scmp.ne.s32.totalorder %s663, %s664
    %p673 = scmp.eq.s32.totalorder %s76, 0
    %p674 = por %p672, %p673
    %p675 = scmp.ne.s32.totalorder %s663, %s664
    %p676 = scmp.eq.s32.totalorder %s77, 1
    %p677 = por %p675, %p676
    %p679 = scmp.ne.s32.totalorder %s664, %s678
    %p680 = scmp.eq.s32.totalorder %s77, 0
    %p681 = por %p679, %p680
    %s683 = sadd.s32 %s682, 1
    %p686 = scmp.eq.s32.totalorder %s71, 1
    %p687 = scmp.ne.s32.totalorder %s682, %s684
    %p688 = scmp.eq.s32.totalorder %s71, 0
    %p689 = por %p687, %p688
    %p690 = scmp.ne.s32.totalorder %s682, %s684
    %p691 = scmp.eq.s32.totalorder %s76, 1
    %p692 = por %p690, %p691
    %p693 = scmp.ne.s32.totalorder %s684, %s685
    %p694 = scmp.eq.s32.totalorder %s76, 0
    %p695 = por %p693, %p694
    %p696 = scmp.ne.s32.totalorder %s684, %s685
    %p697 = scmp.eq.s32.totalorder %s77, 1
    %p698 = por %p696, %p697
    %p700 = scmp.ne.s32.totalorder %s685, %s699
    %p701 = scmp.eq.s32.totalorder %s77, 0
    %p702 = por %p700, %p701
    %s704 = sadd.s32 %s703, 1
    %p707 = scmp.eq.s32.totalorder %s71, 1
    %p708 = scmp.ne.s32.totalorder %s703, %s705
    %p709 = scmp.eq.s32.totalorder %s71, 0
    %p710 = por %p708, %p709
    %p711 = scmp.ne.s32.totalorder %s703, %s705
    %p712 = scmp.eq.s32.totalorder %s76, 1
    %p713 = por %p711, %p712
    %p714 = scmp.ne.s32.totalorder %s705, %s706
    %p715 = scmp.eq.s32.totalorder %s76, 0
    %p716 = por %p714, %p715
    %p717 = scmp.ne.s32.totalorder %s705, %s706
    %p718 = scmp.eq.s32.totalorder %s77, 1
    %p719 = por %p717, %p718
    %p721 = scmp.ne.s32.totalorder %s706, %s720
    %p722 = scmp.eq.s32.totalorder %s77, 0
    %p723 = por %p721, %p722
    %s725 = sadd.s32 %s724, 1
    %p728 = scmp.eq.s32.totalorder %s71, 1
    %p729 = scmp.ne.s32.totalorder %s724, %s726
    %p730 = scmp.eq.s32.totalorder %s71, 0
    %p731 = por %p729, %p730
    %p732 = scmp.ne.s32.totalorder %s724, %s726
    %p733 = scmp.eq.s32.totalorder %s76, 1
    %p734 = por %p732, %p733
    %p735 = scmp.ne.s32.totalorder %s726, %s727
    %p736 = scmp.eq.s32.totalorder %s76, 0
    %p737 = por %p735, %p736
    %p738 = scmp.ne.s32.totalorder %s726, %s727
    %p739 = scmp.eq.s32.totalorder %s77, 1
    %p740 = por %p738, %p739
    %p742 = scmp.ne.s32.totalorder %s727, %s741
    %p743 = scmp.eq.s32.totalorder %s77, 0
    %p744 = por %p742, %p743
    %s746 = sadd.s32 %s745, 1
    %p749 = scmp.eq.s32.totalorder %s71, 1
    %p750 = scmp.ne.s32.totalorder %s745, %s747
    %p751 = scmp.eq.s32.totalorder %s71, 0
    %p752 = por %p750, %p751
    %p753 = scmp.ne.s32.totalorder %s745, %s747
    %p754 = scmp.eq.s32.totalorder %s76, 1
    %p755 = por %p753, %p754
    %p756 = scmp.ne.s32.totalorder %s747, %s748
    %p757 = scmp.eq.s32.totalorder %s76, 0
    %p758 = por %p756, %p757
    %p759 = scmp.ne.s32.totalorder %s747, %s748
    %p760 = scmp.eq.s32.totalorder %s77, 1
    %p761 = por %p759, %p760
    %p763 = scmp.ne.s32.totalorder %s748, %s762
    %p764 = scmp.eq.s32.totalorder %s77, 0
    %p765 = por %p763, %p764
    %s766 = ssub.s32 %s71, %s78
    %p767 = scmp.eq.s32.totalorder %s766, 0
    %s769 = sadd.s32 %s768, 1
    %s770 = scalar_select %p767, %s768, %s769
    %p773 = pneg %p767
    %p774 = scmp.eq.s32.totalorder %s71, 1
    %p775 = por %p773, %p774
    %p776 = scmp.ne.s32.totalorder %s768, %s771
    %p777 = scmp.eq.s32.totalorder %s71, 0
    %p778 = por %p776, %p777
    %p779 = scmp.ne.s32.totalorder %s768, %s771
    %p780 = scmp.eq.s32.totalorder %s76, 1
    %p781 = por %p779, %p780
    %p782 = scmp.ne.s32.totalorder %s771, %s772
    %p783 = scmp.eq.s32.totalorder %s76, 0
    %p784 = por %p782, %p783
    %p785 = scmp.ne.s32.totalorder %s771, %s772
    %p786 = scmp.eq.s32.totalorder %s77, 1
    %p787 = por %p785, %p786
    %p789 = scmp.ne.s32.totalorder %s772, %s788
    %p790 = scmp.eq.s32.totalorder %s77, 0
    %p791 = por %p789, %p790
    %p792 = scmp.le.s32.totalorder 1, %s71
    %p793 = scmp.lt.s32.totalorder %s71, 3
    %p794 = pnand %p792, %p793
    %p795 = pneg %p794
    // Predicated region
    $region9: #{etris_forward.1} parent=5 // pred_check
      _
    $region10: #{etris_forward.1} parent=5 // pred_check_branch
      %797 = sbr.rel (%p794) target = $region12
    $region11: #{etris_forward.1} parent=5 // pred_region
      %s798 = ssub.s32 %s71, 1
      // Predicated region
      $region13: #{etris_forward.1} parent=11 // pred_check
        %p799 = pneg %p170
      $region14: #{etris_forward.1} parent=11 // pred_check_branch
        %801 = sbr.rel (%p799) target = $region16
      $region15: #{etris_forward.1} parent=11 // pred_region
        _
      $region16: #{etris_forward.1} parent=11 // pred_fallthru
        _
      // Predicated region
      $region17: #{etris_forward.1} parent=11 // pred_check
        %p802 = pneg %p191
      $region18: #{etris_forward.1} parent=11 // pred_check_branch
        %804 = sbr.rel (%p802) target = $region20
      $region19: #{etris_forward.1} parent=11 // pred_region
        _
      $region20: #{etris_forward.1} parent=11 // pred_fallthru
        _
      // Predicated region
      $region21: #{etris_forward.1} parent=11 // pred_check
        %p805 = pneg %p212
      $region22: #{etris_forward.1} parent=11 // pred_check_branch
        %807 = sbr.rel (%p805) target = $region24
      $region23: #{etris_forward.1} parent=11 // pred_region
        _
      $region24: #{etris_forward.1} parent=11 // pred_fallthru
        _
      // Predicated region
      $region25: #{etris_forward.1} parent=11 // pred_check
        %p808 = pneg %p233
      $region26: #{etris_forward.1} parent=11 // pred_check_branch
        %810 = sbr.rel (%p808) target = $region28
      $region27: #{etris_forward.1} parent=11 // pred_region
        _
      $region28: #{etris_forward.1} parent=11 // pred_fallthru
        _
      // Predicated region
      $region29: #{etris_forward.1} parent=11 // pred_check
        %p811 = pneg %p254
      $region30: #{etris_forward.1} parent=11 // pred_check_branch
        %813 = sbr.rel (%p811) target = $region32
      $region31: #{etris_forward.1} parent=11 // pred_region
        _
      $region32: #{etris_forward.1} parent=11 // pred_fallthru
        _
      // Predicated region
      $region33: #{etris_forward.1} parent=11 // pred_check
        %p814 = pneg %p275
      $region34: #{etris_forward.1} parent=11 // pred_check_branch
        %816 = sbr.rel (%p814) target = $region36
      $region35: #{etris_forward.1} parent=11 // pred_region
        _
      $region36: #{etris_forward.1} parent=11 // pred_fallthru
        _
      // Predicated region
      $region37: #{etris_forward.1} parent=11 // pred_check
        %p817 = pneg %p296
      $region38: #{etris_forward.1} parent=11 // pred_check_branch
        %819 = sbr.rel (%p817) target = $region40
      $region39: #{etris_forward.1} parent=11 // pred_region
        _
      $region40: #{etris_forward.1} parent=11 // pred_fallthru
        _
      // Predicated region
      $region41: #{etris_forward.1} parent=11 // pred_check
        %p820 = pneg %p317
      $region42: #{etris_forward.1} parent=11 // pred_check_branch
        %822 = sbr.rel (%p820) target = $region44
      $region43: #{etris_forward.1} parent=11 // pred_region
        _
      $region44: #{etris_forward.1} parent=11 // pred_fallthru
        _
      // Predicated region
      $region45: #{etris_forward.1} parent=11 // pred_check
        %p823 = pneg %p338
      $region46: #{etris_forward.1} parent=11 // pred_check_branch
        %825 = sbr.rel (%p823) target = $region48
      $region47: #{etris_forward.1} parent=11 // pred_region
        _
      $region48: #{etris_forward.1} parent=11 // pred_fallthru
        _
      // Predicated region
      $region49: #{etris_forward.1} parent=11 // pred_check
        %p826 = pneg %p359
      $region50: #{etris_forward.1} parent=11 // pred_check_branch
        %828 = sbr.rel (%p826) target = $region52
      $region51: #{etris_forward.1} parent=11 // pred_region
        _
      $region52: #{etris_forward.1} parent=11 // pred_fallthru
        _
      // Predicated region
      $region53: #{etris_forward.1} parent=11 // pred_check
        %p829 = pneg %p380
      $region54: #{etris_forward.1} parent=11 // pred_check_branch
        %831 = sbr.rel (%p829) target = $region56
      $region55: #{etris_forward.1} parent=11 // pred_region
        _
      $region56: #{etris_forward.1} parent=11 // pred_fallthru
        _
      // Predicated region
      $region57: #{etris_forward.1} parent=11 // pred_check
        %p832 = pneg %p401
      $region58: #{etris_forward.1} parent=11 // pred_check_branch
        %834 = sbr.rel (%p832) target = $region60
      $region59: #{etris_forward.1} parent=11 // pred_region
        _
      $region60: #{etris_forward.1} parent=11 // pred_fallthru
        _
      // Predicated region
      $region61: #{etris_forward.1} parent=11 // pred_check
        %p835 = pneg %p422
      $region62: #{etris_forward.1} parent=11 // pred_check_branch
        %837 = sbr.rel (%p835) target = $region64
      $region63: #{etris_forward.1} parent=11 // pred_region
        _
      $region64: #{etris_forward.1} parent=11 // pred_fallthru
        _
      // Predicated region
      $region65: #{etris_forward.1} parent=11 // pred_check
        %p838 = pneg %p443
      $region66: #{etris_forward.1} parent=11 // pred_check_branch
        %840 = sbr.rel (%p838) target = $region68
      $region67: #{etris_forward.1} parent=11 // pred_region
        _
      $region68: #{etris_forward.1} parent=11 // pred_fallthru
        _
      // Predicated region
      $region69: #{etris_forward.1} parent=11 // pred_check
        %p841 = pneg %p464
      $region70: #{etris_forward.1} parent=11 // pred_check_branch
        %843 = sbr.rel (%p841) target = $region72
      $region71: #{etris_forward.1} parent=11 // pred_region
        _
      $region72: #{etris_forward.1} parent=11 // pred_fallthru
        _
      // Predicated region
      $region73: #{etris_forward.1} parent=11 // pred_check
        %p844 = pneg %p485
      $region74: #{etris_forward.1} parent=11 // pred_check_branch
        %846 = sbr.rel (%p844) target = $region76
      $region75: #{etris_forward.1} parent=11 // pred_region
        _
      $region76: #{etris_forward.1} parent=11 // pred_fallthru
        _
      // Predicated region
      $region77: #{etris_forward.1} parent=11 // pred_check
        %p847 = pneg %p506
      $region78: #{etris_forward.1} parent=11 // pred_check_branch
        %849 = sbr.rel (%p847) target = $region80
      $region79: #{etris_forward.1} parent=11 // pred_region
        _
      $region80: #{etris_forward.1} parent=11 // pred_fallthru
        _
      // Predicated region
      $region81: #{etris_forward.1} parent=11 // pred_check
        %p850 = pneg %p527
      $region82: #{etris_forward.1} parent=11 // pred_check_branch
        %852 = sbr.rel (%p850) target = $region84
      $region83: #{etris_forward.1} parent=11 // pred_region
        _
      $region84: #{etris_forward.1} parent=11 // pred_fallthru
        _
      // Predicated region
      $region85: #{etris_forward.1} parent=11 // pred_check
        %p853 = pneg %p548
      $region86: #{etris_forward.1} parent=11 // pred_check_branch
        %855 = sbr.rel (%p853) target = $region88
      $region87: #{etris_forward.1} parent=11 // pred_region
        _
      $region88: #{etris_forward.1} parent=11 // pred_fallthru
        _
      // Predicated region
      $region89: #{etris_forward.1} parent=11 // pred_check
        %p856 = pneg %p569
      $region90: #{etris_forward.1} parent=11 // pred_check_branch
        %858 = sbr.rel (%p856) target = $region92
      $region91: #{etris_forward.1} parent=11 // pred_region
        _
      $region92: #{etris_forward.1} parent=11 // pred_fallthru
        _
      // Predicated region
      $region93: #{etris_forward.1} parent=11 // pred_check
        %p859 = pneg %p590
      $region94: #{etris_forward.1} parent=11 // pred_check_branch
        %861 = sbr.rel (%p859) target = $region96
      $region95: #{etris_forward.1} parent=11 // pred_region
        _
      $region96: #{etris_forward.1} parent=11 // pred_fallthru
        _
      // Predicated region
      $region97: #{etris_forward.1} parent=11 // pred_check
        %p862 = pneg %p611
      $region98: #{etris_forward.1} parent=11 // pred_check_branch
        %864 = sbr.rel (%p862) target = $region100
      $region99: #{etris_forward.1} parent=11 // pred_region
        _
      $region100: #{etris_forward.1} parent=11 // pred_fallthru
        _
      // Predicated region
      $region101: #{etris_forward.1} parent=11 // pred_check
        %p865 = pneg %p632
      $region102: #{etris_forward.1} parent=11 // pred_check_branch
        %867 = sbr.rel (%p865) target = $region104
      $region103: #{etris_forward.1} parent=11 // pred_region
        _
      $region104: #{etris_forward.1} parent=11 // pred_fallthru
        _
      // Predicated region
      $region105: #{etris_forward.1} parent=11 // pred_check
        %p868 = pneg %p653
      $region106: #{etris_forward.1} parent=11 // pred_check_branch
        %870 = sbr.rel (%p868) target = $region108
      $region107: #{etris_forward.1} parent=11 // pred_region
        _
      $region108: #{etris_forward.1} parent=11 // pred_fallthru
        _
      // Predicated region
      $region109: #{etris_forward.1} parent=11 // pred_check
        %p871 = pneg %p674
      $region110: #{etris_forward.1} parent=11 // pred_check_branch
        %873 = sbr.rel (%p871) target = $region112
      $region111: #{etris_forward.1} parent=11 // pred_region
        _
      $region112: #{etris_forward.1} parent=11 // pred_fallthru
        _
      // Predicated region
      $region113: #{etris_forward.1} parent=11 // pred_check
        %p874 = pneg %p695
      $region114: #{etris_forward.1} parent=11 // pred_check_branch
        %876 = sbr.rel (%p874) target = $region116
      $region115: #{etris_forward.1} parent=11 // pred_region
        _
      $region116: #{etris_forward.1} parent=11 // pred_fallthru
        _
      // Predicated region
      $region117: #{etris_forward.1} parent=11 // pred_check
        %p877 = pneg %p716
      $region118: #{etris_forward.1} parent=11 // pred_check_branch
        %879 = sbr.rel (%p877) target = $region120
      $region119: #{etris_forward.1} parent=11 // pred_region
        _
      $region120: #{etris_forward.1} parent=11 // pred_fallthru
        _
      // Predicated region
      $region121: #{etris_forward.1} parent=11 // pred_check
        %p880 = pneg %p737
      $region122: #{etris_forward.1} parent=11 // pred_check_branch
        %882 = sbr.rel (%p880) target = $region124
      $region123: #{etris_forward.1} parent=11 // pred_region
        _
      $region124: #{etris_forward.1} parent=11 // pred_fallthru
        _
      // Predicated region
      $region125: #{etris_forward.1} parent=11 // pred_check
        %p883 = pneg %p758
      $region126: #{etris_forward.1} parent=11 // pred_check_branch
        %885 = sbr.rel (%p883) target = $region128
      $region127: #{etris_forward.1} parent=11 // pred_region
        _
      $region128: #{etris_forward.1} parent=11 // pred_fallthru
        _
    $region12: #{etris_forward.1} parent=5 // pred_fallthru
      _
    %p886 = scmp.lt.s32.totalorder %s71, 2
    // Predicated region
    $region129: #{etris_forward.1} parent=5 // pred_check
      %p887 = pneg %p886
    $region130: #{etris_forward.1} parent=5 // pred_check_branch
      %889 = sbr.rel (%p887) target = $region132
    $region131: #{etris_forward.1} parent=5 // pred_region
      // Predicated region
      $region133: #{etris_forward.1} parent=131 // pred_check
        %p890 = pneg %p91
      $region134: #{etris_forward.1} parent=131 // pred_check_branch
        %892 = sbr.rel (%p890) target = $region136
      $region135: #{etris_forward.1} parent=131 // pred_region
        %p893 = scmp.lt.s32.totalorder %s71, 1
        %s894 = scalar_select %p893, %s71, 1
        %s895 = smul.addr %s894, 2
        %s896 = smul.addr %s895, 8
        %s897 = scalar_lea.vmem %s1, %s896
      $region136: #{etris_forward.1} parent=131 // pred_fallthru
        _
      // Predicated region
      $region137: #{etris_forward.1} parent=131 // pred_check
        %p898 = pneg %p117
      $region138: #{etris_forward.1} parent=131 // pred_check_branch
        %900 = sbr.rel (%p898) target = $region140
      $region139: #{etris_forward.1} parent=131 // pred_region
        %p901 = scmp.lt.s32.totalorder %s71, 1
        %s902 = scalar_select %p901, %s71, 1
        %s903 = scalar_lea.vmem %s3, %s902
      $region140: #{etris_forward.1} parent=131 // pred_fallthru
        _
      // Predicated region
      $region141: #{etris_forward.1} parent=131 // pred_check
        %p904 = pneg %p143
      $region142: #{etris_forward.1} parent=131 // pred_check_branch
        %906 = sbr.rel (%p904) target = $region144
      $region143: #{etris_forward.1} parent=131 // pred_region
        %p907 = scmp.lt.s32.totalorder %s71, 1
        %s908 = scalar_select %p907, %s71, 1
        %s909 = smul.addr %s908, 8
        %s910 = scalar_lea.vmem %s5, %s909
      $region144: #{etris_forward.1} parent=131 // pred_fallthru
        _
    $region132: #{etris_forward.1} parent=5 // pred_fallthru
      _
    %p911 = scmp.le.s32.totalorder 1, %s71
    %p912 = scmp.lt.s32.totalorder %s71, 3
    %p913 = pnand %p911, %p912
    %p914 = pneg %p913
    // Predicated region
    $region145: #{etris_forward.1} parent=5 // pred_check
      _
    $region146: #{etris_forward.1} parent=5 // pred_check_branch
      %916 = sbr.rel (%p913) target = $region148
    $region147: #{etris_forward.1} parent=5 // pred_region
      %s917 = ssub.s32 %s71, 1
      %p918 = scmp.lt.s32.totalorder %s76, 1
      %s919 = scalar_select %p918, %s76, 1
      %s920 = smul.addr %s919, 2
      %s921 = smul.addr %s920, 8
      %s922 = scalar_lea.vmem %s1, %s921
      %p923 = pneg %p97
      %p924 = pneg %p94
      %p925 = scmp.lt.s32.totalorder %s76, 1
      %s926 = scalar_select %p925, %s76, 1
      %s927 = scalar_lea.vmem %s3, %s926
      %p928 = pneg %p123
      %p929 = pneg %p120
      %p930 = scmp.lt.s32.totalorder %s76, 1
      %s931 = scalar_select %p930, %s76, 1
      %s932 = smul.addr %s931, 8
      %s933 = scalar_lea.vmem %s5, %s932
      %p934 = pneg %p149
      %p935 = pneg %p146
      %p936 = pneg %p170
      %p937 = pneg %p167
      %p938 = pneg %p191
      %p939 = pneg %p188
      %p940 = pneg %p212
      %p941 = pneg %p209
      %p942 = pneg %p233
      %p943 = pneg %p230
      %p944 = pneg %p254
      %p945 = pneg %p251
      %p946 = pneg %p275
      %p947 = pneg %p272
      %p948 = pneg %p296
      %p949 = pneg %p293
      %p950 = pneg %p317
      %p951 = pneg %p314
      %p952 = pneg %p338
      %p953 = pneg %p335
      %p954 = pneg %p359
      %p955 = pneg %p356
      %p956 = pneg %p380
      %p957 = pneg %p377
      %p958 = pneg %p401
      %p959 = pneg %p398
      %p960 = pneg %p422
      %p961 = pneg %p419
      %p962 = pneg %p443
      %p963 = pneg %p440
      %p964 = pneg %p464
      %p965 = pneg %p461
      %p966 = pneg %p485
      %p967 = pneg %p482
      %p968 = pneg %p506
      %p969 = pneg %p503
      %p970 = pneg %p527
      %p971 = pneg %p524
      %p972 = pneg %p548
      %p973 = pneg %p545
      %p974 = pneg %p569
      %p975 = pneg %p566
      %p976 = pneg %p590
      %p977 = pneg %p587
      %p978 = pneg %p611
      %p979 = pneg %p608
      %p980 = pneg %p632
      %p981 = pneg %p629
      %p982 = pneg %p653
      %p983 = pneg %p650
      %p984 = pneg %p674
      %p985 = pneg %p671
      %p986 = pneg %p695
      %p987 = pneg %p692
      %p988 = pneg %p716
      %p989 = pneg %p713
      %p990 = pneg %p737
      %p991 = pneg %p734
      %p992 = pneg %p758
      %p993 = pneg %p755
      %p994 = pneg %p784
      %p995 = pneg %p781
      %p996 = scmp.lt.s32.totalorder %s76, 1
      %s997 = scalar_select %p996, %s76, 1
      %s998 = smul.addr %s997, 2
      %s999 = smul.addr %s998, 8
      %s1000 = scalar_lea.vmem %s65, %s999
      %p1001 = scmp.lt.s32.totalorder %s76, 1
      %s1002 = scalar_select %p1001, %s76, 1
      %s1003 = smul.addr %s1002, 2
      %s1004 = smul.addr %s1003, 8
      %s1005 = scalar_lea.vmem %s1, %s1004
      %p1006 = scmp.lt.s32.totalorder %s76, 1
      %s1007 = scalar_select %p1006, %s76, 1
      %s1008 = scalar_lea.vmem %s3, %s1007
      %p1009 = scmp.lt.s32.totalorder %s76, 1
      %s1010 = scalar_select %p1009, %s76, 1
      %s1011 = smul.addr %s1010, 8
      %s1012 = scalar_lea.vmem %s5, %s1011
      %p1013 = scmp.lt.s32.totalorder %s76, 1
      %s1014 = scalar_select %p1013, %s76, 1
      %s1015 = smul.addr %s1014, 2
      %s1016 = smul.addr %s1015, 8
      %s1017 = scalar_lea.vmem %s65, %s1016
      %v1018 = vld [vmem:[%s1008] sm:$0x1]
      %v1019 = vld [vmem:[%s1012] sm:$0xff]
      %v1020 = vlaneseq
      %v1021 = vand.u32 %v1020, 127
      %1022 = vset.pattern.permute.xlu0 0
      %1023 = vperm.xlu0 %1022, %v1019
      %v1024 = vpop.permute.xlu0 %1023
      %vm1025 = vcmp.eq.s32.totalorder %v1021, %v1024
      %v1026 = vsel %vm1025, 1, 0
      %v1027 = vcvt.s32.f32 %v1026
      %v1028 = vld [vmem:[%s7] sm:$0xff]
      %v1029 = vld [vmem:[%s7 + $0x8] sm:$0xff]
      %v1030 = vld [vmem:[%s7 + $0x10] sm:$0xff]
      %v1031 = vld [vmem:[%s7 + $0x18] sm:$0xff]
      %v1032 = vld [vmem:[%s7 + $0x20] sm:$0xff]
      %v1033 = vld [vmem:[%s7 + $0x28] sm:$0xff]
      %v1034 = vld [vmem:[%s7 + $0x30] sm:$0xff]
      %v1035 = vld [vmem:[%s7 + $0x38] sm:$0xff]
      %vm1036 = vcmask 523264
      %v1038 = vsel %vm1036, %v1027, 0
      %1040 = vmatprep.subr.mxu0 0.0
      %1041 = vmatpush1.msra.mxu0 %v1028
      %1042 = vmatprep.subr.mxu0 0.0
      %1043 = vmatpush1.msra.mxu0 %v1029
      %1044 = vmatprep.subr.mxu0 0.0
      %1045 = vmatpush1.msra.mxu0 %v1030
      %1046 = vmatprep.subr.mxu0 0.0
      %1047 = vmatpush1.msra.mxu0 %v1031
      %1048 = vmatprep.subr.mxu0 0.0
      %1049 = vmatpush1.msra.mxu0 %v1032
      %1050 = vmatprep.subr.mxu0 0.0
      %1051 = vmatpush1.msra.mxu0 %v1033
      %1052 = vmatprep.subr.mxu0 0.0
      %1053 = vmatpush1.msra.mxu0 %v1034
      %1054 = vmatprep.subr.mxu0 0.0
      %1055 = vmatpush1.msra.mxu0 %v1035
      %1056 = vmatprep.subr.mxu0 0.0
      %1057 = vmatpush1.msra.mxu0 0.0
      %1058 = vmatprep.subr.mxu0 0.0
      %1059 = vmatpush1.msra.mxu0 0.0
      %1060 = vmatprep.subr.mxu0 0.0
      %1061 = vmatpush1.msra.mxu0 0.0
      %1062 = vmatprep.subr.mxu0 0.0
      %1063 = vmatpush1.msra.mxu0 0.0
      %1064 = vmatprep.subr.mxu0 0.0
      %1065 = vmatpush1.msra.mxu0 0.0
      %1066 = vmatprep.subr.mxu0 0.0
      %1067 = vmatpush1.msra.mxu0 0.0
      %1068 = vmatprep.subr.mxu0 0.0
      %1069 = vmatpush1.msra.mxu0 0.0
      %1070 = vmatprep.subr.mxu0 0.0
      %1071 = vmatpush1.msra.mxu0 0.0
      %1072 = vmatprep.subr.mxu0 0.0
      %1073 = vmatpush1.msra.mxu0 0.0
      %1074 = vmatprep.subr.mxu0 0.0
      %1075 = vmatpush1.msra.mxu0 0.0
      %1076 = vmatprep.subr.mxu0 0.0
      %1077 = vmatpush1.msra.mxu0 0.0
      %1078 = vmatprep.subr.mxu0 0.0
      %1079 = vmatpush1.msra.mxu0 0.0
      %1080 = vmatprep.subr.mxu0 0.0
      %1081 = vmatpush1.msra.mxu0 0.0
      %1082 = vmatprep.subr.mxu0 0.0
      %1083 = vmatpush1.msra.mxu0 0.0
      %1084 = vmatprep.subr.mxu0 0.0
      %1085 = vmatpush1.msra.mxu0 0.0
      %1086 = vmatprep.subr.mxu0 0.0
      %1087 = vmatpush1.msra.mxu0 0.0
      %1088 = vmatprep.subr.mxu0 0.0
      %1089 = vmatpush1.msra.mxu0 0.0
      %1090 = vmatprep.subr.mxu0 0.0
      %1091 = vmatpush1.msra.mxu0 0.0
      %1092 = vmatprep.subr.mxu0 0.0
      %1093 = vmatpush1.msra.mxu0 0.0
      %1094 = vmatprep.subr.mxu0 0.0
      %1095 = vmatpush1.msra.mxu0 0.0
      %1096 = vmatprep.subr.mxu0 0.0
      %1097 = vmatpush1.msra.mxu0 0.0
      %1098 = vmatprep.subr.mxu0 0.0
      %1099 = vmatpush1.msra.mxu0 0.0
      %1100 = vmatprep.subr.mxu0 0.0
      %1101 = vmatpush1.msra.mxu0 0.0
      %1102 = vmatprep.subr.mxu0 0.0
      %1103 = vmatpush1.msra.mxu0 0.0
      %1104 = vmatprep.mubr.f32.mxu0 0.0
      %1105 = vmatmul.mubr.f32.gmra.mrb[0].mxu0 %v1038
      %v1106 = vpop.f32.mrb[0].mxu0
      %v1107 = vadd.f32 0.0, %v1106
      %v1108 = vpop.f32.mrb[0].mxu0
      %1109 = vdwg.mxu0
      %v1110 = vld [vmem:[%s13] sm:$0xff]
      %v1111 = vld [vmem:[%s13 + $0x8] sm:$0xff]
      %v1112 = vld [vmem:[%s13 + $0x10] sm:$0xff]
      %v1113 = vld [vmem:[%s13 + $0x18] sm:$0xff]
      %v1114 = vld [vmem:[%s15] sm:$0x1]
      %v1116 = vlaneseq
      %v1117 = vshrl.u32 %v1116, 7
      %v1118 = vsub.s32 0, %v1117
      %v1119 = vrot.slane %v1114, %v1118
      %vm1121 = vcmask 261120
      %v1123 = vsel %vm1121, %v1107, 0
      %1125 = vmatprep.subr.mxu0 0.0
      %1126 = vmatpush1.msra.mxu0 %v1110
      %1127 = vmatprep.subr.mxu0 0.0
      %1128 = vmatpush1.msra.mxu0 %v1111
      %1129 = vmatprep.subr.mxu0 0.0
      %1130 = vmatpush1.msra.mxu0 %v1112
      %1131 = vmatprep.subr.mxu0 0.0
      %1132 = vmatpush1.msra.mxu0 %v1113
      %1133 = vmatprep.subr.mxu0 0.0
      %1134 = vmatpush1.msra.mxu0 0.0
      %1135 = vmatprep.subr.mxu0 0.0
      %1136 = vmatpush1.msra.mxu0 0.0
      %1137 = vmatprep.subr.mxu0 0.0
      %1138 = vmatpush1.msra.mxu0 0.0
      %1139 = vmatprep.subr.mxu0 0.0
      %1140 = vmatpush1.msra.mxu0 0.0
      %1141 = vmatprep.subr.mxu0 0.0
      %1142 = vmatpush1.msra.mxu0 0.0
      %1143 = vmatprep.subr.mxu0 0.0
      %1144 = vmatpush1.msra.mxu0 0.0
      %1145 = vmatprep.subr.mxu0 0.0
      %1146 = vmatpush1.msra.mxu0 0.0
      %1147 = vmatprep.subr.mxu0 0.0
      %1148 = vmatpush1.msra.mxu0 0.0
      %1149 = vmatprep.subr.mxu0 0.0
      %1150 = vmatpush1.msra.mxu0 0.0
      %1151 = vmatprep.subr.mxu0 0.0
      %1152 = vmatpush1.msra.mxu0 0.0
      %1153 = vmatprep.subr.mxu0 0.0
      %1154 = vmatpush1.msra.mxu0 0.0
      %1155 = vmatprep.subr.mxu0 0.0
      %1156 = vmatpush1.msra.mxu0 0.0
      %1157 = vmatprep.subr.mxu0 0.0
      %1158 = vmatpush1.msra.mxu0 0.0
      %1159 = vmatprep.subr.mxu0 0.0
      %1160 = vmatpush1.msra.mxu0 0.0
      %1161 = vmatprep.subr.mxu0 0.0
      %1162 = vmatpush1.msra.mxu0 0.0
      %1163 = vmatprep.subr.mxu0 0.0
      %1164 = vmatpush1.msra.mxu0 0.0
      %1165 = vmatprep.subr.mxu0 0.0
      %1166 = vmatpush1.msra.mxu0 0.0
      %1167 = vmatprep.subr.mxu0 0.0
      %1168 = vmatpush1.msra.mxu0 0.0
      %1169 = vmatprep.subr.mxu0 0.0
      %1170 = vmatpush1.msra.mxu0 0.0
      %1171 = vmatprep.subr.mxu0 0.0
      %1172 = vmatpush1.msra.mxu0 0.0
      %1173 = vmatprep.subr.mxu0 0.0
      %1174 = vmatpush1.msra.mxu0 0.0
      %1175 = vmatprep.subr.mxu0 0.0
      %1176 = vmatpush1.msra.mxu0 0.0
      %1177 = vmatprep.subr.mxu0 0.0
      %1178 = vmatpush1.msra.mxu0 0.0
      %1179 = vmatprep.subr.mxu0 0.0
      %1180 = vmatpush1.msra.mxu0 0.0
      %1181 = vmatprep.subr.mxu0 0.0
      %1182 = vmatpush1.msra.mxu0 0.0
      %1183 = vmatprep.subr.mxu0 0.0
      %1184 = vmatpush1.msra.mxu0 0.0
      %1185 = vmatprep.subr.mxu0 0.0
      %1186 = vmatpush1.msra.mxu0 0.0
      %1187 = vmatprep.subr.mxu0 0.0
      %1188 = vmatpush1.msra.mxu0 0.0
      %1189 = vmatprep.mubr.f32.mxu0 0.0
      %1190 = vmatmul.mubr.f32.gmra.mrb[0].mxu0 %v1123
      %v1191 = vpop.f32.mrb[0].mxu0
      %v1192 = vadd.f32 %v1119, %v1191
      %v1193 = vpop.f32.mrb[0].mxu0
      %1194 = vdwg.mxu0
      %vm1195 = vcmp.eq.s32.totalorder %v1018, 0
      %v1196 = vsel %vm1195, 1, 0
      %v1197 = vcvt.s32.f32 %v1196
      %v1198 = vsub.f32 1.0, %v1197
      %vm1199 = vcmask 57344
      %v1200 = vsel %vm1199, %v1198, 0.0
      %1201 = vadd.xlane.f32.xlu0 %v1200
      %v1202 = vpop.xlane.xlu0 %1201
      %v1203 = vmax.f32 %v1202, 1.0
      %vm1204 = vcmask 64512
      %v1206 = vsel %vm1204, %v1198, 0
      %1208 = vmatprep.subr.mxu0 0.0
      %1209 = vmatpush1.msra.mxu0 %v1192
      %1210 = vmatprep.subr.mxu0 0.0
      %1211 = vmatpush1.msra.mxu0 0.0
      %1212 = vmatprep.subr.mxu0 0.0
      %1213 = vmatpush1.msra.mxu0 0.0
      %1214 = vmatprep.subr.mxu0 0.0
      %1215 = vmatpush1.msra.mxu0 0.0
      %1216 = vmatprep.subr.mxu0 0.0
      %1217 = vmatpush1.msra.mxu0 0.0
      %1218 = vmatprep.subr.mxu0 0.0
      %1219 = vmatpush1.msra.mxu0 0.0
      %1220 = vmatprep.subr.mxu0 0.0
      %1221 = vmatpush1.msra.mxu0 0.0
      %1222 = vmatprep.subr.mxu0 0.0
      %1223 = vmatpush1.msra.mxu0 0.0
      %1224 = vmatprep.subr.mxu0 0.0
      %1225 = vmatpush1.msra.mxu0 0.0
      %1226 = vmatprep.subr.mxu0 0.0
      %1227 = vmatpush1.msra.mxu0 0.0
      %1228 = vmatprep.subr.mxu0 0.0
      %1229 = vmatpush1.msra.mxu0 0.0
      %1230 = vmatprep.subr.mxu0 0.0
      %1231 = vmatpush1.msra.mxu0 0.0
      %1232 = vmatprep.subr.mxu0 0.0
      %1233 = vmatpush1.msra.mxu0 0.0
      %1234 = vmatprep.subr.mxu0 0.0
      %1235 = vmatpush1.msra.mxu0 0.0
      %1236 = vmatprep.subr.mxu0 0.0
      %1237 = vmatpush1.msra.mxu0 0.0
      %1238 = vmatprep.subr.mxu0 0.0
      %1239 = vmatpush1.msra.mxu0 0.0
      %1240 = vmatprep.subr.mxu0 0.0
      %1241 = vmatpush1.msra.mxu0 0.0
      %1242 = vmatprep.subr.mxu0 0.0
      %1243 = vmatpush1.msra.mxu0 0.0
      %1244 = vmatprep.subr.mxu0 0.0
      %1245 = vmatpush1.msra.mxu0 0.0
      %1246 = vmatprep.subr.mxu0 0.0
      %1247 = vmatpush1.msra.mxu0 0.0
      %1248 = vmatprep.subr.mxu0 0.0
      %1249 = vmatpush1.msra.mxu0 0.0
      %1250 = vmatprep.subr.mxu0 0.0
      %1251 = vmatpush1.msra.mxu0 0.0
      %1252 = vmatprep.subr.mxu0 0.0
      %1253 = vmatpush1.msra.mxu0 0.0
      %1254 = vmatprep.subr.mxu0 0.0
      %1255 = vmatpush1.msra.mxu0 0.0
      %1256 = vmatprep.subr.mxu0 0.0
      %1257 = vmatpush1.msra.mxu0 0.0
      %1258 = vmatprep.subr.mxu0 0.0
      %1259 = vmatpush1.msra.mxu0 0.0
      %1260 = vmatprep.subr.mxu0 0.0
      %1261 = vmatpush1.msra.mxu0 0.0
      %1262 = vmatprep.subr.mxu0 0.0
      %1263 = vmatpush1.msra.mxu0 0.0
      %1264 = vmatprep.subr.mxu0 0.0
      %1265 = vmatpush1.msra.mxu0 0.0
      %1266 = vmatprep.subr.mxu0 0.0
      %1267 = vmatpush1.msra.mxu0 0.0
      %1268 = vmatprep.subr.mxu0 0.0
      %1269 = vmatpush1.msra.mxu0 0.0
      %1270 = vmatprep.subr.mxu0 0.0
      %1271 = vmatpush1.msra.mxu0 0.0
      %1272 = vmatprep.mubr.f32.mxu0 0.0
      %1273 = vmatmul.mubr.f32.gmra.mrb[0].mxu0 %v1206
      %v1274 = vpop.f32.mrb[0].mxu0
      %v1275 = vadd.f32 0.0, %v1274
      %v1276 = vpop.f32.mrb[0].mxu0
      %1277 = vdwg.mxu0
      %v1278 = vrcp.pop %v1203
      %v1279 = vmul.f32 %v1275, %v1278
      %v1280 = vld [vmem:[%s17] sm:$0xff]
      %v1281 = vld [vmem:[%s17 + $0x8] sm:$0xff]
      %v1282 = vld [vmem:[%s17 + $0x10] sm:$0xff]
      %v1283 = vld [vmem:[%s17 + $0x18] sm:$0xff]
      %v1284 = vld [vmem:[%s19] sm:$0x1]
      %v1286 = vsel %vm1121, %v1279, 0
      %1288 = vmatprep.subr.mxu0 0.0
      %1289 = vmatpush1.msra.mxu0 %v1280
      %1290 = vmatprep.subr.mxu0 0.0
      %1291 = vmatpush1.msra.mxu0 %v1281
      %1292 = vmatprep.subr.mxu0 0.0
      %1293 = vmatpush1.msra.mxu0 %v1282
      %1294 = vmatprep.subr.mxu0 0.0
      %1295 = vmatpush1.msra.mxu0 %v1283
      %1296 = vmatprep.subr.mxu0 0.0
      %1297 = vmatpush1.msra.mxu0 0.0
      %1298 = vmatprep.subr.mxu0 0.0
      %1299 = vmatpush1.msra.mxu0 0.0
      %1300 = vmatprep.subr.mxu0 0.0
      %1301 = vmatpush1.msra.mxu0 0.0
      %1302 = vmatprep.subr.mxu0 0.0
      %1303 = vmatpush1.msra.mxu0 0.0
      %1304 = vmatprep.subr.mxu0 0.0
      %1305 = vmatpush1.msra.mxu0 0.0
      %1306 = vmatprep.subr.mxu0 0.0
      %1307 = vmatpush1.msra.mxu0 0.0
      %1308 = vmatprep.subr.mxu0 0.0
      %1309 = vmatpush1.msra.mxu0 0.0
      %1310 = vmatprep.subr.mxu0 0.0
      %1311 = vmatpush1.msra.mxu0 0.0
      %1312 = vmatprep.subr.mxu0 0.0
      %1313 = vmatpush1.msra.mxu0 0.0
      %1314 = vmatprep.subr.mxu0 0.0
      %1315 = vmatpush1.msra.mxu0 0.0
      %1316 = vmatprep.subr.mxu0 0.0
      %1317 = vmatpush1.msra.mxu0 0.0
      %1318 = vmatprep.subr.mxu0 0.0
      %1319 = vmatpush1.msra.mxu0 0.0
      %1320 = vmatprep.subr.mxu0 0.0
      %1321 = vmatpush1.msra.mxu0 0.0
      %1322 = vmatprep.subr.mxu0 0.0
      %1323 = vmatpush1.msra.mxu0 0.0
      %1324 = vmatprep.subr.mxu0 0.0
      %1325 = vmatpush1.msra.mxu0 0.0
      %1326 = vmatprep.subr.mxu0 0.0
      %1327 = vmatpush1.msra.mxu0 0.0
      %1328 = vmatprep.subr.mxu0 0.0
      %1329 = vmatpush1.msra.mxu0 0.0
      %1330 = vmatprep.subr.mxu0 0.0
      %1331 = vmatpush1.msra.mxu0 0.0
      %1332 = vmatprep.subr.mxu0 0.0
      %1333 = vmatpush1.msra.mxu0 0.0
      %1334 = vmatprep.subr.mxu0 0.0
      %1335 = vmatpush1.msra.mxu0 0.0
      %1336 = vmatprep.subr.mxu0 0.0
      %1337 = vmatpush1.msra.mxu0 0.0
      %1338 = vmatprep.subr.mxu0 0.0
      %1339 = vmatpush1.msra.mxu0 0.0
      %1340 = vmatprep.subr.mxu0 0.0
      %1341 = vmatpush1.msra.mxu0 0.0
      %1342 = vmatprep.subr.mxu0 0.0
      %1343 = vmatpush1.msra.mxu0 0.0
      %1344 = vmatprep.subr.mxu0 0.0
      %1345 = vmatpush1.msra.mxu0 0.0
      %1346 = vmatprep.subr.mxu0 0.0
      %1347 = vmatpush1.msra.mxu0 0.0
      %1348 = vmatprep.subr.mxu0 0.0
      %1349 = vmatpush1.msra.mxu0 0.0
      %1350 = vmatprep.subr.mxu0 0.0
      %1351 = vmatpush1.msra.mxu0 0.0
      %1352 = vmatprep.mubr.f32.mxu0 0.0
      %1353 = vmatmul.mubr.f32.gmra.mrb[0].mxu0 %v1286
      %v1354 = vpop.f32.mrb[0].mxu0
      %v1355 = vadd.f32 %v1284, %v1354
      %v1356 = vpop.f32.mrb[0].mxu0
      %1357 = vdwg.mxu0
      %v1358 = vld [vmem:[%s1005] sm:$0xff]
      %v1359 = vld [vmem:[%s1005 + $0x8] sm:$0xff]
      %v1360 = vld [vmem:[%s9] sm:$0xff]
      %v1361 = vld [vmem:[%s9 + $0x8] sm:$0xff]
      %v1362 = vld [vmem:[%s9 + $0x10] sm:$0xff]
      %v1363 = vld [vmem:[%s9 + $0x18] sm:$0xff]
      %v1364 = vld [vmem:[%s9 + $0x20] sm:$0xff]
      %v1365 = vld [vmem:[%s9 + $0x28] sm:$0xff]
      %v1366 = vld [vmem:[%s11] sm:$0x1]
      %v1368 = vlaneseq
      %v1369 = vshrl.u32 %v1368, 7
      %v1370 = vsub.s32 0, %v1369
      %v1371 = vrot.slane %v1366, %v1370
      %vm1373 = vcmask 392192
      %v1375 = vsel %vm1373, %v1358, 0
      %v1378 = vsel %vm1373, %v1359, 0
      %1380 = vmatprep.subr.mxu0 0.0
      %1381 = vmatpush1.msra.mxu0 %v1360
      %1382 = vmatprep.subr.mxu0 0.0
      %1383 = vmatpush1.msra.mxu0 %v1361
      %1384 = vmatprep.subr.mxu0 0.0
      %1385 = vmatpush1.msra.mxu0 %v1362
      %1386 = vmatprep.subr.mxu0 0.0
      %1387 = vmatpush1.msra.mxu0 %v1363
      %1388 = vmatprep.subr.mxu0 0.0
      %1389 = vmatpush1.msra.mxu0 %v1364
      %1390 = vmatprep.subr.mxu0 0.0
      %1391 = vmatpush1.msra.mxu0 %v1365
      %1392 = vmatprep.subr.mxu0 0.0
      %1393 = vmatpush1.msra.mxu0 0.0
      %1394 = vmatprep.subr.mxu0 0.0
      %1395 = vmatpush1.msra.mxu0 0.0
      %1396 = vmatprep.subr.mxu0 0.0
      %1397 = vmatpush1.msra.mxu0 0.0
      %1398 = vmatprep.subr.mxu0 0.0
      %1399 = vmatpush1.msra.mxu0 0.0
      %1400 = vmatprep.subr.mxu0 0.0
      %1401 = vmatpush1.msra.mxu0 0.0
      %1402 = vmatprep.subr.mxu0 0.0
      %1403 = vmatpush1.msra.mxu0 0.0
      %1404 = vmatprep.subr.mxu0 0.0
      %1405 = vmatpush1.msra.mxu0 0.0
      %1406 = vmatprep.subr.mxu0 0.0
      %1407 = vmatpush1.msra.mxu0 0.0
      %1408 = vmatprep.subr.mxu0 0.0
      %1409 = vmatpush1.msra.mxu0 0.0
      %1410 = vmatprep.subr.mxu0 0.0
      %1411 = vmatpush1.msra.mxu0 0.0
      %1412 = vmatprep.subr.mxu0 0.0
      %1413 = vmatpush1.msra.mxu0 0.0
      %1414 = vmatprep.subr.mxu0 0.0
      %1415 = vmatpush1.msra.mxu0 0.0
      %1416 = vmatprep.subr.mxu0 0.0
      %1417 = vmatpush1.msra.mxu0 0.0
      %1418 = vmatprep.subr.mxu0 0.0
      %1419 = vmatpush1.msra.mxu0 0.0
      %1420 = vmatprep.subr.mxu0 0.0
      %1421 = vmatpush1.msra.mxu0 0.0
      %1422 = vmatprep.subr.mxu0 0.0
      %1423 = vmatpush1.msra.mxu0 0.0
      %1424 = vmatprep.subr.mxu0 0.0
      %1425 = vmatpush1.msra.mxu0 0.0
      %1426 = vmatprep.subr.mxu0 0.0
      %1427 = vmatpush1.msra.mxu0 0.0
      %1428 = vmatprep.subr.mxu0 0.0
      %1429 = vmatpush1.msra.mxu0 0.0
      %1430 = vmatprep.subr.mxu0 0.0
      %1431 = vmatpush1.msra.mxu0 0.0
      %1432 = vmatprep.subr.mxu0 0.0
      %1433 = vmatpush1.msra.mxu0 0.0
      %1434 = vmatprep.subr.mxu0 0.0
      %1435 = vmatpush1.msra.mxu0 0.0
      %1436 = vmatprep.subr.mxu0 0.0
      %1437 = vmatpush1.msra.mxu0 0.0
      %1438 = vmatprep.subr.mxu0 0.0
      %1439 = vmatpush1.msra.mxu0 0.0
      %1440 = vmatprep.subr.mxu0 0.0
      %1441 = vmatpush1.msra.mxu0 0.0
      %1442 = vmatprep.subr.mxu0 0.0
      %1443 = vmatpush1.msra.mxu0 0.0
      %1444 = vmatprep.mubr.f32.mxu0 0.0
      %1445 = vmatmul.mubr.f32.gmra.mrb[0].mxu0 %v1375
      %v1446 = vpop.f32.mrb[0].mxu0
      %v1447 = vadd.f32 %v1371, %v1446
      %v1448 = vpop.f32.mrb[0].mxu0
      %1449 = vmatprep.mubr.f32.mxu0 0.0
      %1450 = vmatmul.mubr.f32.gmra.mrb[0].mxu0 %v1378
      %v1451 = vpop.f32.mrb[0].mxu0
      %v1452 = vadd.f32 %v1371, %v1451
      %v1453 = vpop.f32.mrb[0].mxu0
      %1454 = vdwg.mxu0
      %v1455 = vld [vmem:[%s21] sm:$0xff]
      %v1456 = vld [vmem:[%s21 + $0x8] sm:$0xff]
      %v1457 = vld [vmem:[%s21 + $0x10] sm:$0xff]
      %v1458 = vld [vmem:[%s21 + $0x18] sm:$0xff]
      %v1459 = vld [vmem:[%s23] sm:$0x1]
      %v1461 = vlaneseq
      %v1462 = vshrl.u32 %v1461, 7
      %v1463 = vsub.s32 0, %v1462
      %v1464 = vrot.slane %v1459, %v1463
      %v1467 = vsel %vm1121, %v1447, 0
      %v1470 = vsel %vm1121, %v1452, 0
      %1472 = vmatprep.subr.mxu0 0.0
      %1473 = vmatpush1.msra.mxu0 %v1455
      %1474 = vmatprep.subr.mxu0 0.0
      %1475 = vmatpush1.msra.mxu0 %v1456
      %1476 = vmatprep.subr.mxu0 0.0
      %1477 = vmatpush1.msra.mxu0 %v1457
      %1478 = vmatprep.subr.mxu0 0.0
      %1479 = vmatpush1.msra.mxu0 %v1458
      %1480 = vmatprep.subr.mxu0 0.0
      %1481 = vmatpush1.msra.mxu0 0.0
      %1482 = vmatprep.subr.mxu0 0.0
      %1483 = vmatpush1.msra.mxu0 0.0
      %1484 = vmatprep.subr.mxu0 0.0
      %1485 = vmatpush1.msra.mxu0 0.0
      %1486 = vmatprep.subr.mxu0 0.0
      %1487 = vmatpush1.msra.mxu0 0.0
      %1488 = vmatprep.subr.mxu0 0.0
      %1489 = vmatpush1.msra.mxu0 0.0
      %1490 = vmatprep.subr.mxu0 0.0
      %1491 = vmatpush1.msra.mxu0 0.0
      %1492 = vmatprep.subr.mxu0 0.0
      %1493 = vmatpush1.msra.mxu0 0.0
      %1494 = vmatprep.subr.mxu0 0.0
      %1495 = vmatpush1.msra.mxu0 0.0
      %1496 = vmatprep.subr.mxu0 0.0
      %1497 = vmatpush1.msra.mxu0 0.0
      %1498 = vmatprep.subr.mxu0 0.0
      %1499 = vmatpush1.msra.mxu0 0.0
      %1500 = vmatprep.subr.mxu0 0.0
      %1501 = vmatpush1.msra.mxu0 0.0
      %1502 = vmatprep.subr.mxu0 0.0
      %1503 = vmatpush1.msra.mxu0 0.0
      %1504 = vmatprep.subr.mxu0 0.0
      %1505 = vmatpush1.msra.mxu0 0.0
      %1506 = vmatprep.subr.mxu0 0.0
      %1507 = vmatpush1.msra.mxu0 0.0
      %1508 = vmatprep.subr.mxu0 0.0
      %1509 = vmatpush1.msra.mxu0 0.0
      %1510 = vmatprep.subr.mxu0 0.0
      %1511 = vmatpush1.msra.mxu0 0.0
      %1512 = vmatprep.subr.mxu0 0.0
      %1513 = vmatpush1.msra.mxu0 0.0
      %1514 = vmatprep.subr.mxu0 0.0
      %1515 = vmatpush1.msra.mxu0 0.0
      %1516 = vmatprep.subr.mxu0 0.0
      %1517 = vmatpush1.msra.mxu0 0.0
      %1518 = vmatprep.subr.mxu0 0.0
      %1519 = vmatpush1.msra.mxu0 0.0
      %1520 = vmatprep.subr.mxu0 0.0
      %1521 = vmatpush1.msra.mxu0 0.0
      %1522 = vmatprep.subr.mxu0 0.0
      %1523 = vmatpush1.msra.mxu0 0.0
      %1524 = vmatprep.subr.mxu0 0.0
      %1525 = vmatpush1.msra.mxu0 0.0
      %1526 = vmatprep.subr.mxu0 0.0
      %1527 = vmatpush1.msra.mxu0 0.0
      %1528 = vmatprep.subr.mxu0 0.0
      %1529 = vmatpush1.msra.mxu0 0.0
      %1530 = vmatprep.subr.mxu0 0.0
      %1531 = vmatpush1.msra.mxu0 0.0
      %1532 = vmatprep.subr.mxu0 0.0
      %1533 = vmatpush1.msra.mxu0 0.0
      %1534 = vmatprep.subr.mxu0 0.0
      %1535 = vmatpush1.msra.mxu0 0.0
      %1536 = vmatprep.mubr.f32.mxu0 0.0
      %1537 = vmatmul.mubr.f32.gmra.mrb[0].mxu0 %v1467
      %v1538 = vpop.f32.mrb[0].mxu0
      %v1539 = vadd.f32 %v1464, %v1538
      %v1540 = vpop.f32.mrb[0].mxu0
      %1541 = vmatprep.mubr.f32.mxu0 0.0
      %1542 = vmatmul.mubr.f32.gmra.mrb[0].mxu0 %v1470
      %v1543 = vpop.f32.mrb[0].mxu0
      %v1544 = vadd.f32 %v1464, %v1543
      %v1545 = vpop.f32.mrb[0].mxu0
      %1546 = vdwg.mxu0
      %v1547 = vld [vmem:[%s25] sm:$0xff]
      %v1548 = vld [vmem:[%s25 + $0x8] sm:$0xff]
      %v1549 = vld [vmem:[%s25 + $0x10] sm:$0xff]
      %v1550 = vld [vmem:[%s25 + $0x18] sm:$0xff]
      %v1551 = vld [vmem:[%s27] sm:$0x1]
      %v1553 = vsel %vm1121, %v1355, 0
      %1555 = vmatprep.subr.mxu0 0.0
      %1556 = vmatpush1.msra.mxu0 %v1547
      %1557 = vmatprep.subr.mxu0 0.0
      %1558 = vmatpush1.msra.mxu0 %v1548
      %1559 = vmatprep.subr.mxu0 0.0
      %1560 = vmatpush1.msra.mxu0 %v1549
      %1561 = vmatprep.subr.mxu0 0.0
      %1562 = vmatpush1.msra.mxu0 %v1550
      %1563 = vmatprep.subr.mxu0 0.0
      %1564 = vmatpush1.msra.mxu0 0.0
      %1565 = vmatprep.subr.mxu0 0.0
      %1566 = vmatpush1.msra.mxu0 0.0
      %1567 = vmatprep.subr.mxu0 0.0
      %1568 = vmatpush1.msra.mxu0 0.0
      %1569 = vmatprep.subr.mxu0 0.0
      %1570 = vmatpush1.msra.mxu0 0.0
      %1571 = vmatprep.subr.mxu0 0.0
      %1572 = vmatpush1.msra.mxu0 0.0
      %1573 = vmatprep.subr.mxu0 0.0
      %1574 = vmatpush1.msra.mxu0 0.0
      %1575 = vmatprep.subr.mxu0 0.0
      %1576 = vmatpush1.msra.mxu0 0.0
      %1577 = vmatprep.subr.mxu0 0.0
      %1578 = vmatpush1.msra.mxu0 0.0
      %1579 = vmatprep.subr.mxu0 0.0
      %1580 = vmatpush1.msra.mxu0 0.0
      %1581 = vmatprep.subr.mxu0 0.0
      %1582 = vmatpush1.msra.mxu0 0.0
      %1583 = vmatprep.subr.mxu0 0.0
      %1584 = vmatpush1.msra.mxu0 0.0
      %1585 = vmatprep.subr.mxu0 0.0
      %1586 = vmatpush1.msra.mxu0 0.0
      %1587 = vmatprep.subr.mxu0 0.0
      %1588 = vmatpush1.msra.mxu0 0.0
      %1589 = vmatprep.subr.mxu0 0.0
      %1590 = vmatpush1.msra.mxu0 0.0
      %1591 = vmatprep.subr.mxu0 0.0
      %1592 = vmatpush1.msra.mxu0 0.0
      %1593 = vmatprep.subr.mxu0 0.0
      %1594 = vmatpush1.msra.mxu0 0.0
      %1595 = vmatprep.subr.mxu0 0.0
      %1596 = vmatpush1.msra.mxu0 0.0
      %1597 = vmatprep.subr.mxu0 0.0
      %1598 = vmatpush1.msra.mxu0 0.0
      %1599 = vmatprep.subr.mxu0 0.0
      %1600 = vmatpush1.msra.mxu0 0.0
      %1601 = vmatprep.subr.mxu0 0.0
      %1602 = vmatpush1.msra.mxu0 0.0
      %1603 = vmatprep.subr.mxu0 0.0
      %1604 = vmatpush1.msra.mxu0 0.0
      %1605 = vmatprep.subr.mxu0 0.0
      %1606 = vmatpush1.msra.mxu0 0.0
      %1607 = vmatprep.subr.mxu0 0.0
      %1608 = vmatpush1.msra.mxu0 0.0
      %1609 = vmatprep.subr.mxu0 0.0
      %1610 = vmatpush1.msra.mxu0 0.0
      %1611 = vmatprep.subr.mxu0 0.0
      %1612 = vmatpush1.msra.mxu0 0.0
      %1613 = vmatprep.subr.mxu0 0.0
      %1614 = vmatpush1.msra.mxu0 0.0
      %1615 = vmatprep.subr.mxu0 0.0
      %1616 = vmatpush1.msra.mxu0 0.0
      %1617 = vmatprep.subr.mxu0 0.0
      %1618 = vmatpush1.msra.mxu0 0.0
      %1619 = vmatprep.mubr.f32.mxu0 0.0
      %1620 = vmatmul.mubr.f32.gmra.mrb[0].mxu0 %v1553
      %v1621 = vpop.f32.mrb[0].mxu0
      %v1622 = vadd.f32 %v1551, %v1621
      %v1623 = vpop.f32.mrb[0].mxu0
      %1624 = vdwg.mxu0
      %v1625 = vxor.u32 %v1622, 2147483648
      %v1626 = vmul.f32 %v1625, 1.442695
      %v1627 = vpow.pop %v1626
      %v1628 = vadd.f32 %v1627, 1.0
      %v1629 = vrcp.pop %v1628
      %v1630 = vmul.f32 1.0, %v1629
      %v1631 = vlaneseq
      %v1632 = vshrl.u32 %v1631, 7
      %v1633 = vsub.s32 0, %v1632
      %v1634 = vrot.slane %v1630, %v1633
      %v1635 = vmul.f32 %v1539, %v1634
      %v1636 = vmul.f32 %v1544, %v1634
      %v1637 = vsel %vm1121, %v1635, 0.0
      %1638 = vadd.xlane.f32.xlu0 %v1637
      %v1639 = vpop.xlane.xlu0 %1638
      %v1640 = vsel %vm1121, %v1636, 0.0
      %1641 = vadd.xlane.f32.xlu0 %v1640
      %v1642 = vpop.xlane.xlu0 %1641
      %v1643 = vrcp.pop 32.0
      %v1644 = vmul.f32 %v1639, %v1643
      %v1645 = vmul.f32 %v1642, %v1643
      %v1646 = vsub.f32 %v1635, %v1644
      %v1647 = vsub.f32 %v1636, %v1645
      %v1648 = vmul.f32 %v1646, %v1646
      %v1649 = vmul.f32 %v1647, %v1647
      %v1650 = vsel %vm1121, %v1648, 0.0
      %1651 = vadd.xlane.f32.xlu0 %v1650
      %v1652 = vpop.xlane.xlu0 %1651
      %v1653 = vsel %vm1121, %v1649, 0.0
      %1654 = vadd.xlane.f32.xlu0 %v1653
      %v1655 = vpop.xlane.xlu0 %1654
      %v1656 = vmul.f32 %v1652, %v1643
      %v1657 = vmul.f32 %v1655, %v1643
      %v1658 = vadd.f32 %v1656, 1e-05
      %v1659 = vadd.f32 %v1657, 1e-05
      %v1660 = vrsqrt.pop %v1658
      %v1661 = vrsqrt.pop %v1659
      %v1662 = vmul.f32 %v1646, %v1660
      %v1663 = vmul.f32 %v1647, %v1661
      %v1664 = vld [vmem:[%s29] sm:$0x1]
      %v1666 = vlaneseq
      %v1667 = vshrl.u32 %v1666, 7
      %v1668 = vsub.s32 0, %v1667
      %v1669 = vrot.slane %v1664, %v1668
      %v1671 = vmul.f32 %v1662, %v1669
      %v1672 = vmul.f32 %v1663, %v1669
      %v1673 = vld [vmem:[%s31] sm:$0x1]
      %v1675 = vlaneseq
      %v1676 = vshrl.u32 %v1675, 7
      %v1677 = vsub.s32 0, %v1676
      %v1678 = vrot.slane %v1673, %v1677
      %v1680 = vadd.f32 %v1671, %v1678
      %v1681 = vadd.f32 %v1672, %v1678
      %v1682 = vld [vmem:[%s33] sm:$0xff]
      %v1683 = vld [vmem:[%s33 + $0x8] sm:$0xff]
      %v1684 = vld [vmem:[%s33 + $0x10] sm:$0xff]
      %v1685 = vld [vmem:[%s33 + $0x18] sm:$0xff]
      %v1686 = vld [vmem:[%s35] sm:$0x1]
      %v1688 = vlaneseq
      %v1689 = vshrl.u32 %v1688, 7
      %v1690 = vsub.s32 0, %v1689
      %v1691 = vrot.slane %v1686, %v1690
      %v1694 = vsel %vm1121, %v1680, 0
      %v1697 = vsel %vm1121, %v1681, 0
      %1699 = vmatprep.subr.mxu0 0.0
      %1700 = vmatpush1.msra.mxu0 %v1682
      %1701 = vmatprep.subr.mxu0 0.0
      %1702 = vmatpush1.msra.mxu0 %v1683
      %1703 = vmatprep.subr.mxu0 0.0
      %1704 = vmatpush1.msra.mxu0 %v1684
      %1705 = vmatprep.subr.mxu0 0.0
      %1706 = vmatpush1.msra.mxu0 %v1685
      %1707 = vmatprep.subr.mxu0 0.0
      %1708 = vmatpush1.msra.mxu0 0.0
      %1709 = vmatprep.subr.mxu0 0.0
      %1710 = vmatpush1.msra.mxu0 0.0
      %1711 = vmatprep.subr.mxu0 0.0
      %1712 = vmatpush1.msra.mxu0 0.0
      %1713 = vmatprep.subr.mxu0 0.0
      %1714 = vmatpush1.msra.mxu0 0.0
      %1715 = vmatprep.subr.mxu0 0.0
      %1716 = vmatpush1.msra.mxu0 0.0
      %1717 = vmatprep.subr.mxu0 0.0
      %1718 = vmatpush1.msra.mxu0 0.0
      %1719 = vmatprep.subr.mxu0 0.0
      %1720 = vmatpush1.msra.mxu0 0.0
      %1721 = vmatprep.subr.mxu0 0.0
      %1722 = vmatpush1.msra.mxu0 0.0
      %1723 = vmatprep.subr.mxu0 0.0
      %1724 = vmatpush1.msra.mxu0 0.0
      %1725 = vmatprep.subr.mxu0 0.0
      %1726 = vmatpush1.msra.mxu0 0.0
      %1727 = vmatprep.subr.mxu0 0.0
      %1728 = vmatpush1.msra.mxu0 0.0
      %1729 = vmatprep.subr.mxu0 0.0
      %1730 = vmatpush1.msra.mxu0 0.0
      %1731 = vmatprep.subr.mxu0 0.0
      %1732 = vmatpush1.msra.mxu0 0.0
      %1733 = vmatprep.subr.mxu0 0.0
      %1734 = vmatpush1.msra.mxu0 0.0
      %1735 = vmatprep.subr.mxu0 0.0
      %1736 = vmatpush1.msra.mxu0 0.0
      %1737 = vmatprep.subr.mxu0 0.0
      %1738 = vmatpush1.msra.mxu0 0.0
      %1739 = vmatprep.subr.mxu0 0.0
      %1740 = vmatpush1.msra.mxu0 0.0
      %1741 = vmatprep.subr.mxu0 0.0
      %1742 = vmatpush1.msra.mxu0 0.0
      %1743 = vmatprep.subr.mxu0 0.0
      %1744 = vmatpush1.msra.mxu0 0.0
      %1745 = vmatprep.subr.mxu0 0.0
      %1746 = vmatpush1.msra.mxu0 0.0
      %1747 = vmatprep.subr.mxu0 0.0
      %1748 = vmatpush1.msra.mxu0 0.0
      %1749 = vmatprep.subr.mxu0 0.0
      %1750 = vmatpush1.msra.mxu0 0.0
      %1751 = vmatprep.subr.mxu0 0.0
      %1752 = vmatpush1.msra.mxu0 0.0
      %1753 = vmatprep.subr.mxu0 0.0
      %1754 = vmatpush1.msra.mxu0 0.0
      %1755 = vmatprep.subr.mxu0 0.0
      %1756 = vmatpush1.msra.mxu0 0.0
      %1757 = vmatprep.subr.mxu0 0.0
      %1758 = vmatpush1.msra.mxu0 0.0
      %1759 = vmatprep.subr.mxu0 0.0
      %1760 = vmatpush1.msra.mxu0 0.0
      %1761 = vmatprep.subr.mxu0 0.0
      %1762 = vmatpush1.msra.mxu0 0.0
      %1763 = vmatprep.mubr.f32.mxu0 0.0
      %1764 = vmatmul.mubr.f32.gmra.mrb[0].mxu0 %v1694
      %v1765 = vpop.f32.mrb[0].mxu0
      %v1766 = vadd.f32 %v1691, %v1765
      %v1767 = vpop.f32.mrb[0].mxu0
      %1768 = vmatprep.mubr.f32.mxu0 0.0
      %1769 = vmatmul.mubr.f32.gmra.mrb[0].mxu0 %v1697
      %v1770 = vpop.f32.mrb[0].mxu0
      %v1771 = vadd.f32 %v1691, %v1770
      %v1772 = vpop.f32.mrb[0].mxu0
      %1773 = vdwg.mxu0
      %v1774 = vld [vmem:[%s37] sm:$0xff]
      %v1775 = vld [vmem:[%s37 + $0x8] sm:$0xff]
      %v1776 = vld [vmem:[%s37 + $0x10] sm:$0xff]
      %v1777 = vld [vmem:[%s37 + $0x18] sm:$0xff]
      %v1778 = vld [vmem:[%s39] sm:$0x1]
      %v1780 = vlaneseq
      %v1781 = vshrl.u32 %v1780, 7
      %v1782 = vsub.s32 0, %v1781
      %v1783 = vrot.slane %v1778, %v1782
      %v1786 = vsel %vm1121, %v1192, 0
      %1788 = vmatprep.subr.mxu0 0.0
      %1789 = vmatpush1.msra.mxu0 %v1774
      %1790 = vmatprep.subr.mxu0 0.0
      %1791 = vmatpush1.msra.mxu0 %v1775
      %1792 = vmatprep.subr.mxu0 0.0
      %1793 = vmatpush1.msra.mxu0 %v1776
      %1794 = vmatprep.subr.mxu0 0.0
      %1795 = vmatpush1.msra.mxu0 %v1777
      %1796 = vmatprep.subr.mxu0 0.0
      %1797 = vmatpush1.msra.mxu0 0.0
      %1798 = vmatprep.subr.mxu0 0.0
      %1799 = vmatpush1.msra.mxu0 0.0
      %1800 = vmatprep.subr.mxu0 0.0
      %1801 = vmatpush1.msra.mxu0 0.0
      %1802 = vmatprep.subr.mxu0 0.0
      %1803 = vmatpush1.msra.mxu0 0.0
      %1804 = vmatprep.subr.mxu0 0.0
      %1805 = vmatpush1.msra.mxu0 0.0
      %1806 = vmatprep.subr.mxu0 0.0
      %1807 = vmatpush1.msra.mxu0 0.0
      %1808 = vmatprep.subr.mxu0 0.0
      %1809 = vmatpush1.msra.mxu0 0.0
      %1810 = vmatprep.subr.mxu0 0.0
      %1811 = vmatpush1.msra.mxu0 0.0
      %1812 = vmatprep.subr.mxu0 0.0
      %1813 = vmatpush1.msra.mxu0 0.0
      %1814 = vmatprep.subr.mxu0 0.0
      %1815 = vmatpush1.msra.mxu0 0.0
      %1816 = vmatprep.subr.mxu0 0.0
      %1817 = vmatpush1.msra.mxu0 0.0
      %1818 = vmatprep.subr.mxu0 0.0
      %1819 = vmatpush1.msra.mxu0 0.0
      %1820 = vmatprep.subr.mxu0 0.0
      %1821 = vmatpush1.msra.mxu0 0.0
      %1822 = vmatprep.subr.mxu0 0.0
      %1823 = vmatpush1.msra.mxu0 0.0
      %1824 = vmatprep.subr.mxu0 0.0
      %1825 = vmatpush1.msra.mxu0 0.0
      %1826 = vmatprep.subr.mxu0 0.0
      %1827 = vmatpush1.msra.mxu0 0.0
      %1828 = vmatprep.subr.mxu0 0.0
      %1829 = vmatpush1.msra.mxu0 0.0
      %1830 = vmatprep.subr.mxu0 0.0
      %1831 = vmatpush1.msra.mxu0 0.0
      %1832 = vmatprep.subr.mxu0 0.0
      %1833 = vmatpush1.msra.mxu0 0.0
      %1834 = vmatprep.subr.mxu0 0.0
      %1835 = vmatpush1.msra.mxu0 0.0
      %1836 = vmatprep.subr.mxu0 0.0
      %1837 = vmatpush1.msra.mxu0 0.0
      %1838 = vmatprep.subr.mxu0 0.0
      %1839 = vmatpush1.msra.mxu0 0.0
      %1840 = vmatprep.subr.mxu0 0.0
      %1841 = vmatpush1.msra.mxu0 0.0
      %1842 = vmatprep.subr.mxu0 0.0
      %1843 = vmatpush1.msra.mxu0 0.0
      %1844 = vmatprep.subr.mxu0 0.0
      %1845 = vmatpush1.msra.mxu0 0.0
      %1846 = vmatprep.subr.mxu0 0.0
      %1847 = vmatpush1.msra.mxu0 0.0
      %1848 = vmatprep.subr.mxu0 0.0
      %1849 = vmatpush1.msra.mxu0 0.0
      %1850 = vmatprep.subr.mxu0 0.0
      %1851 = vmatpush1.msra.mxu0 0.0
      %1852 = vmatprep.mubr.f32.mxu0 0.0
      %1853 = vmatmul.mubr.f32.gmra.mrb[0].mxu0 %v1786
      %v1854 = vpop.f32.mrb[0].mxu0
      %v1855 = vadd.f32 %v1783, %v1854
      %v1856 = vpop.f32.mrb[0].mxu0
      %1857 = vdwg.mxu0
      %vm1858 = vcmask 130048
      %v1860 = vsel %vm1858, %v1766, 0
      %v1863 = vsel %vm1858, %v1771, 0
      %v1866 = vsel %vm1858, %v1855, 0
      %1868 = vmatprep.subr.mxu0 0.0
      %1869 = vmatpush1.xpose.msra.mxu0 %v1866
      %1870 = vmatprep.subr.mxu0 0.0
      %1871 = vmatpush1.xpose.msra.mxu0 0.0
      %1872 = vmatprep.subr.mxu0 0.0
      %1873 = vmatpush1.xpose.msra.mxu0 0.0
      %1874 = vmatprep.subr.mxu0 0.0
      %1875 = vmatpush1.xpose.msra.mxu0 0.0
      %1876 = vmatprep.subr.mxu0 0.0
      %1877 = vmatpush1.xpose.msra.mxu0 0.0
      %1878 = vmatprep.subr.mxu0 0.0
      %1879 = vmatpush1.xpose.msra.mxu0 0.0
      %1880 = vmatprep.subr.mxu0 0.0
      %1881 = vmatpush1.xpose.msra.mxu0 0.0
      %1882 = vmatprep.subr.mxu0 0.0
      %1883 = vmatpush1.xpose.msra.mxu0 0.0
      %1884 = vmatprep.subr.mxu0 0.0
      %1885 = vmatpush1.xpose.msra.mxu0 0.0
      %1886 = vmatprep.subr.mxu0 0.0
      %1887 = vmatpush1.xpose.msra.mxu0 0.0
      %1888 = vmatprep.subr.mxu0 0.0
      %1889 = vmatpush1.xpose.msra.mxu0 0.0
      %1890 = vmatprep.subr.mxu0 0.0
      %1891 = vmatpush1.xpose.msra.mxu0 0.0
      %1892 = vmatprep.subr.mxu0 0.0
      %1893 = vmatpush1.xpose.msra.mxu0 0.0
      %1894 = vmatprep.subr.mxu0 0.0
      %1895 = vmatpush1.xpose.msra.mxu0 0.0
      %1896 = vmatprep.subr.mxu0 0.0
      %1897 = vmatpush1.xpose.msra.mxu0 0.0
      %1898 = vmatprep.subr.mxu0 0.0
      %1899 = vmatpush1.xpose.msra.mxu0 0.0
      %1900 = vmatprep.subr.mxu0 0.0
      %1901 = vmatpush1.xpose.msra.mxu0 0.0
      %1902 = vmatprep.subr.mxu0 0.0
      %1903 = vmatpush1.xpose.msra.mxu0 0.0
      %1904 = vmatprep.subr.mxu0 0.0
      %1905 = vmatpush1.xpose.msra.mxu0 0.0
      %1906 = vmatprep.subr.mxu0 0.0
      %1907 = vmatpush1.xpose.msra.mxu0 0.0
      %1908 = vmatprep.subr.mxu0 0.0
      %1909 = vmatpush1.xpose.msra.mxu0 0.0
      %1910 = vmatprep.subr.mxu0 0.0
      %1911 = vmatpush1.xpose.msra.mxu0 0.0
      %1912 = vmatprep.subr.mxu0 0.0
      %1913 = vmatpush1.xpose.msra.mxu0 0.0
      %1914 = vmatprep.subr.mxu0 0.0
      %1915 = vmatpush1.xpose.msra.mxu0 0.0
      %1916 = vmatprep.subr.mxu0 0.0
      %1917 = vmatpush1.xpose.msra.mxu0 0.0
      %1918 = vmatprep.subr.mxu0 0.0
      %1919 = vmatpush1.xpose.msra.mxu0 0.0
      %1920 = vmatprep.subr.mxu0 0.0
      %1921 = vmatpush1.xpose.msra.mxu0 0.0
      %1922 = vmatprep.subr.mxu0 0.0
      %1923 = vmatpush1.xpose.msra.mxu0 0.0
      %1924 = vmatprep.subr.mxu0 0.0
      %1925 = vmatpush1.xpose.msra.mxu0 0.0
      %1926 = vmatprep.subr.mxu0 0.0
      %1927 = vmatpush1.xpose.msra.mxu0 0.0
      %1928 = vmatprep.subr.mxu0 0.0
      %1929 = vmatpush1.xpose.msra.mxu0 0.0
      %1930 = vmatprep.subr.mxu0 0.0
      %1931 = vmatpush1.xpose.msra.mxu0 0.0
      %1932 = vmatprep.mubr.f32.mxu0 0.0
      %1933 = vmatmul.mubr.f32.gmra.mrb[0].mxu0 %v1860
      %v1934 = vpop.f32.mrb[0].mxu0
      %v1935 = vadd.f32 0.0, %v1934
      %v1936 = vpop.f32.mrb[0].mxu0
      %1937 = vmatprep.mubr.f32.mxu0 0.0
      %1938 = vmatmul.mubr.f32.gmra.mrb[0].mxu0 %v1863
      %v1939 = vpop.f32.mrb[0].mxu0
      %v1940 = vadd.f32 0.0, %v1939
      %v1941 = vpop.f32.mrb[0].mxu0
      %1942 = vdwg.mxu0
      %v1943 = vmul.f32 %v1935, 0.25
      %v1944 = vmul.f32 %v1940, 0.25
      %v1945 = vmul.f32 %v1197, 1e+09
      %v1947 = vlaneseq
      %v1948 = vshrl.u32 %v1947, 7
      %v1949 = vsub.s32 0, %v1948
      %v1950 = vrot.slane %v1945, %v1949
      %v1952 = vsub.f32 %v1943, %v1950
      %v1953 = vsub.f32 %v1944, %v1950
      %v1954 = vsel %vm1204, %v1952, -inf
      %1955 = vmax.xlane.f32.xlu0 %v1954
      %v1956 = vpop.xlane.xlu0 %1955
      %v1957 = vsel %vm1204, %v1953, -inf
      %1958 = vmax.xlane.f32.xlu0 %v1957
      %v1959 = vpop.xlane.xlu0 %1958
      %v1960 = vsub.f32 %v1952, %v1956
      %v1961 = vsub.f32 %v1953, %v1959
      %v1962 = vmul.f32 %v1960, 1.442695
      %v1963 = vpow.pop %v1962
      %v1964 = vmul.f32 %v1961, 1.442695
      %v1965 = vpow.pop %v1964
      %v1966 = vsel %vm1204, %v1963, 0.0
      %1967 = vadd.xlane.f32.xlu0 %v1966
      %v1968 = vpop.xlane.xlu0 %1967
      %v1969 = vsel %vm1204, %v1965, 0.0
      %1970 = vadd.xlane.f32.xlu0 %v1969
      %v1971 = vpop.xlane.xlu0 %1970
      %v1972 = vrcp.pop %v1968
      %v1973 = vrcp.pop %v1971
      %v1974 = vmul.f32 %v1963, %v1972
      %v1975 = vmul.f32 %v1965, %v1973
      %1976 = vrot.lane.b32.xlu0 %v1855, 96
      %v1977 = vpop.permute.xlu0 %1976
      %v1980 = vsel %vm1204, %v1974, 0
      %v1983 = vsel %vm1204, %v1975, 0
      %1985 = vmatprep.subr.mxu0 0.0
      %1986 = vmatpush1.msra.mxu0 %v1977
      %1987 = vmatprep.subr.mxu0 0.0
      %1988 = vmatpush1.msra.mxu0 0.0
      %1989 = vmatprep.subr.mxu0 0.0
      %1990 = vmatpush1.msra.mxu0 0.0
      %1991 = vmatprep.subr.mxu0 0.0
      %1992 = vmatpush1.msra.mxu0 0.0
      %1993 = vmatprep.subr.mxu0 0.0
      %1994 = vmatpush1.msra.mxu0 0.0
      %1995 = vmatprep.subr.mxu0 0.0
      %1996 = vmatpush1.msra.mxu0 0.0
      %1997 = vmatprep.subr.mxu0 0.0
      %1998 = vmatpush1.msra.mxu0 0.0
      %1999 = vmatprep.subr.mxu0 0.0
      %2000 = vmatpush1.msra.mxu0 0.0
      %2001 = vmatprep.subr.mxu0 0.0
      %2002 = vmatpush1.msra.mxu0 0.0
      %2003 = vmatprep.subr.mxu0 0.0
      %2004 = vmatpush1.msra.mxu0 0.0
      %2005 = vmatprep.subr.mxu0 0.0
      %2006 = vmatpush1.msra.mxu0 0.0
      %2007 = vmatprep.subr.mxu0 0.0
      %2008 = vmatpush1.msra.mxu0 0.0
      %2009 = vmatprep.subr.mxu0 0.0
      %2010 = vmatpush1.msra.mxu0 0.0
      %2011 = vmatprep.subr.mxu0 0.0
      %2012 = vmatpush1.msra.mxu0 0.0
      %2013 = vmatprep.subr.mxu0 0.0
      %2014 = vmatpush1.msra.mxu0 0.0
      %2015 = vmatprep.subr.mxu0 0.0
      %2016 = vmatpush1.msra.mxu0 0.0
      %2017 = vmatprep.subr.mxu0 0.0
      %2018 = vmatpush1.msra.mxu0 0.0
      %2019 = vmatprep.subr.mxu0 0.0
      %2020 = vmatpush1.msra.mxu0 0.0
      %2021 = vmatprep.subr.mxu0 0.0
      %2022 = vmatpush1.msra.mxu0 0.0
      %2023 = vmatprep.subr.mxu0 0.0
      %2024 = vmatpush1.msra.mxu0 0.0
      %2025 = vmatprep.subr.mxu0 0.0
      %2026 = vmatpush1.msra.mxu0 0.0
      %2027 = vmatprep.subr.mxu0 0.0
      %2028 = vmatpush1.msra.mxu0 0.0
      %2029 = vmatprep.subr.mxu0 0.0
      %2030 = vmatpush1.msra.mxu0 0.0
      %2031 = vmatprep.subr.mxu0 0.0
      %2032 = vmatpush1.msra.mxu0 0.0
      %2033 = vmatprep.subr.mxu0 0.0
      %2034 = vmatpush1.msra.mxu0 0.0
      %2035 = vmatprep.subr.mxu0 0.0
      %2036 = vmatpush1.msra.mxu0 0.0
      %2037 = vmatprep.subr.mxu0 0.0
      %2038 = vmatpush1.msra.mxu0 0.0
      %2039 = vmatprep.subr.mxu0 0.0
      %2040 = vmatpush1.msra.mxu0 0.0
      %2041 = vmatprep.subr.mxu0 0.0
      %2042 = vmatpush1.msra.mxu0 0.0
      %2043 = vmatprep.subr.mxu0 0.0
      %2044 = vmatpush1.msra.mxu0 0.0
      %2045 = vmatprep.subr.mxu0 0.0
      %2046 = vmatpush1.msra.mxu0 0.0
      %2047 = vmatprep.subr.mxu0 0.0
      %2048 = vmatpush1.msra.mxu0 0.0
      %2049 = vmatprep.mubr.f32.mxu0 0.0
      %2050 = vmatmul.mubr.f32.gmra.mrb[0].mxu0 %v1980
      %v2051 = vpop.f32.mrb[0].mxu0
      %v2052 = vadd.f32 0.0, %v2051
      %v2053 = vpop.f32.mrb[0].mxu0
      %2054 = vmatprep.mubr.f32.mxu0 0.0
      %2055 = vmatmul.mubr.f32.gmra.mrb[0].mxu0 %v1983
      %v2056 = vpop.f32.mrb[0].mxu0
      %v2057 = vadd.f32 0.0, %v2056
      %v2058 = vpop.f32.mrb[0].mxu0
      %2059 = vdwg.mxu0
      %v2060 = vld [vmem:[%s41] sm:$0xff]
      %v2061 = vld [vmem:[%s41 + $0x8] sm:$0xff]
      %2062 = vrot.lane.b32.xlu0 %v1766, 112
      %v2063 = vpop.permute.xlu0 %2062
      %2064 = vrot.lane.b32.xlu0 %v1771, 112
      %v2065 = vpop.permute.xlu0 %2064
      %2066 = vrot.lane.b32.xlu0 %v1855, 112
      %v2067 = vpop.permute.xlu0 %2066
      %v2068 = vsel %vm1858, %v2063, 0
      %v2070 = vsel %vm1858, %v2065, 0
      %v2072 = vsel %vm1858, %v2067, 0
      %2074 = vmatprep.subr.mxu0 0.0
      %2075 = vmatpush1.xpose.msra.mxu0 %v2072
      %2076 = vmatprep.subr.mxu0 0.0
      %2077 = vmatpush1.xpose.msra.mxu0 0.0
      %2078 = vmatprep.subr.mxu0 0.0
      %2079 = vmatpush1.xpose.msra.mxu0 0.0
      %2080 = vmatprep.subr.mxu0 0.0
      %2081 = vmatpush1.xpose.msra.mxu0 0.0
      %2082 = vmatprep.subr.mxu0 0.0
      %2083 = vmatpush1.xpose.msra.mxu0 0.0
      %2084 = vmatprep.subr.mxu0 0.0
      %2085 = vmatpush1.xpose.msra.mxu0 0.0
      %2086 = vmatprep.subr.mxu0 0.0
      %2087 = vmatpush1.xpose.msra.mxu0 0.0
      %2088 = vmatprep.subr.mxu0 0.0
      %2089 = vmatpush1.xpose.msra.mxu0 0.0
      %2090 = vmatprep.subr.mxu0 0.0
      %2091 = vmatpush1.xpose.msra.mxu0 0.0
      %2092 = vmatprep.subr.mxu0 0.0
      %2093 = vmatpush1.xpose.msra.mxu0 0.0
      %2094 = vmatprep.subr.mxu0 0.0
      %2095 = vmatpush1.xpose.msra.mxu0 0.0
      %2096 = vmatprep.subr.mxu0 0.0
      %2097 = vmatpush1.xpose.msra.mxu0 0.0
      %2098 = vmatprep.subr.mxu0 0.0
      %2099 = vmatpush1.xpose.msra.mxu0 0.0
      %2100 = vmatprep.subr.mxu0 0.0
      %2101 = vmatpush1.xpose.msra.mxu0 0.0
      %2102 = vmatprep.subr.mxu0 0.0
      %2103 = vmatpush1.xpose.msra.mxu0 0.0
      %2104 = vmatprep.subr.mxu0 0.0
      %2105 = vmatpush1.xpose.msra.mxu0 0.0
      %2106 = vmatprep.subr.mxu0 0.0
      %2107 = vmatpush1.xpose.msra.mxu0 0.0
      %2108 = vmatprep.subr.mxu0 0.0
      %2109 = vmatpush1.xpose.msra.mxu0 0.0
      %2110 = vmatprep.subr.mxu0 0.0
      %2111 = vmatpush1.xpose.msra.mxu0 0.0
      %2112 = vmatprep.subr.mxu0 0.0
      %2113 = vmatpush1.xpose.msra.mxu0 0.0
      %2114 = vmatprep.subr.mxu0 0.0
      %2115 = vmatpush1.xpose.msra.mxu0 0.0
      %2116 = vmatprep.subr.mxu0 0.0
      %2117 = vmatpush1.xpose.msra.mxu0 0.0
      %2118 = vmatprep.subr.mxu0 0.0
      %2119 = vmatpush1.xpose.msra.mxu0 0.0
      %2120 = vmatprep.subr.mxu0 0.0
      %2121 = vmatpush1.xpose.msra.mxu0 0.0
      %2122 = vmatprep.subr.mxu0 0.0
      %2123 = vmatpush1.xpose.msra.mxu0 0.0
      %2124 = vmatprep.subr.mxu0 0.0
      %2125 = vmatpush1.xpose.msra.mxu0 0.0
      %2126 = vmatprep.subr.mxu0 0.0
      %2127 = vmatpush1.xpose.msra.mxu0 0.0
      %2128 = vmatprep.subr.mxu0 0.0
      %2129 = vmatpush1.xpose.msra.mxu0 0.0
      %2130 = vmatprep.subr.mxu0 0.0
      %2131 = vmatpush1.xpose.msra.mxu0 0.0
      %2132 = vmatprep.subr.mxu0 0.0
      %2133 = vmatpush1.xpose.msra.mxu0 0.0
      %2134 = vmatprep.subr.mxu0 0.0
      %2135 = vmatpush1.xpose.msra.mxu0 0.0
      %2136 = vmatprep.subr.mxu0 0.0
      %2137 = vmatpush1.xpose.msra.mxu0 0.0
      %2138 = vmatprep.mubr.f32.mxu0 0.0
      %2139 = vmatmul.mubr.f32.gmra.mrb[0].mxu0 %v2068
      %v2140 = vpop.f32.mrb[0].mxu0
      %v2141 = vadd.f32 0.0, %v2140
      %v2142 = vpop.f32.mrb[0].mxu0
      %2143 = vmatprep.mubr.f32.mxu0 0.0
      %2144 = vmatmul.mubr.f32.gmra.mrb[0].mxu0 %v2070
      %v2145 = vpop.f32.mrb[0].mxu0
      %v2146 = vadd.f32 0.0, %v2145
      %v2147 = vpop.f32.mrb[0].mxu0
      %2148 = vdwg.mxu0
      %v2149 = vmul.f32 %v2141, 0.25
      %v2150 = vmul.f32 %v2146, 0.25
      %v2151 = vsub.f32 %v2149, %v1950
      %v2152 = vsub.f32 %v2150, %v1950
      %v2153 = vsel %vm1204, %v2151, -inf
      %2154 = vmax.xlane.f32.xlu0 %v2153
      %v2155 = vpop.xlane.xlu0 %2154
      %v2156 = vsel %vm1204, %v2152, -inf
      %2157 = vmax.xlane.f32.xlu0 %v2156
      %v2158 = vpop.xlane.xlu0 %2157
      %v2159 = vsub.f32 %v2151, %v2155
      %v2160 = vsub.f32 %v2152, %v2158
      %v2161 = vmul.f32 %v2159, 1.442695
      %v2162 = vpow.pop %v2161
      %v2163 = vmul.f32 %v2160, 1.442695
      %v2164 = vpow.pop %v2163
      %v2165 = vsel %vm1204, %v2162, 0.0
      %2166 = vadd.xlane.f32.xlu0 %v2165
      %v2167 = vpop.xlane.xlu0 %2166
      %v2168 = vsel %vm1204, %v2164, 0.0
      %2169 = vadd.xlane.f32.xlu0 %v2168
      %v2170 = vpop.xlane.xlu0 %2169
      %v2171 = vrcp.pop %v2167
      %v2172 = vrcp.pop %v2170
      %v2173 = vmul.f32 %v2162, %v2171
      %v2174 = vmul.f32 %v2164, %v2172
      %2175 = vrot.lane.b32.xlu0 %v1855, 80
      %v2176 = vpop.permute.xlu0 %2175
      %v2179 = vsel %vm1204, %v2173, 0
      %v2182 = vsel %vm1204, %v2174, 0
      %2184 = vmatprep.subr.mxu0 0.0
      %2185 = vmatpush1.msra.mxu0 %v2176
      %2186 = vmatprep.subr.mxu0 0.0
      %2187 = vmatpush1.msra.mxu0 0.0
      %2188 = vmatprep.subr.mxu0 0.0
      %2189 = vmatpush1.msra.mxu0 0.0
      %2190 = vmatprep.subr.mxu0 0.0
      %2191 = vmatpush1.msra.mxu0 0.0
      %2192 = vmatprep.subr.mxu0 0.0
      %2193 = vmatpush1.msra.mxu0 0.0
      %2194 = vmatprep.subr.mxu0 0.0
      %2195 = vmatpush1.msra.mxu0 0.0
      %2196 = vmatprep.subr.mxu0 0.0
      %2197 = vmatpush1.msra.mxu0 0.0
      %2198 = vmatprep.subr.mxu0 0.0
      %2199 = vmatpush1.msra.mxu0 0.0
      %2200 = vmatprep.subr.mxu0 0.0
      %2201 = vmatpush1.msra.mxu0 0.0
      %2202 = vmatprep.subr.mxu0 0.0
      %2203 = vmatpush1.msra.mxu0 0.0
      %2204 = vmatprep.subr.mxu0 0.0
      %2205 = vmatpush1.msra.mxu0 0.0
      %2206 = vmatprep.subr.mxu0 0.0
      %2207 = vmatpush1.msra.mxu0 0.0
      %2208 = vmatprep.subr.mxu0 0.0
      %2209 = vmatpush1.msra.mxu0 0.0
      %2210 = vmatprep.subr.mxu0 0.0
      %2211 = vmatpush1.msra.mxu0 0.0
      %2212 = vmatprep.subr.mxu0 0.0
      %2213 = vmatpush1.msra.mxu0 0.0
      %2214 = vmatprep.subr.mxu0 0.0
      %2215 = vmatpush1.msra.mxu0 0.0
      %2216 = vmatprep.subr.mxu0 0.0
      %2217 = vmatpush1.msra.mxu0 0.0
      %2218 = vmatprep.subr.mxu0 0.0
      %2219 = vmatpush1.msra.mxu0 0.0
      %2220 = vmatprep.subr.mxu0 0.0
      %2221 = vmatpush1.msra.mxu0 0.0
      %2222 = vmatprep.subr.mxu0 0.0
      %2223 = vmatpush1.msra.mxu0 0.0
      %2224 = vmatprep.subr.mxu0 0.0
      %2225 = vmatpush1.msra.mxu0 0.0
      %2226 = vmatprep.subr.mxu0 0.0
      %2227 = vmatpush1.msra.mxu0 0.0
      %2228 = vmatprep.subr.mxu0 0.0
      %2229 = vmatpush1.msra.mxu0 0.0
      %2230 = vmatprep.subr.mxu0 0.0
      %2231 = vmatpush1.msra.mxu0 0.0
      %2232 = vmatprep.subr.mxu0 0.0
      %2233 = vmatpush1.msra.mxu0 0.0
      %2234 = vmatprep.subr.mxu0 0.0
      %2235 = vmatpush1.msra.mxu0 0.0
      %2236 = vmatprep.subr.mxu0 0.0
      %2237 = vmatpush1.msra.mxu0 0.0
      %2238 = vmatprep.subr.mxu0 0.0
      %2239 = vmatpush1.msra.mxu0 0.0
      %2240 = vmatprep.subr.mxu0 0.0
      %2241 = vmatpush1.msra.mxu0 0.0
      %2242 = vmatprep.subr.mxu0 0.0
      %2243 = vmatpush1.msra.mxu0 0.0
      %2244 = vmatprep.subr.mxu0 0.0
      %2245 = vmatpush1.msra.mxu0 0.0
      %2246 = vmatprep.subr.mxu0 0.0
      %2247 = vmatpush1.msra.mxu0 0.0
      %2248 = vmatprep.mubr.f32.mxu0 0.0
      %2249 = vmatmul.mubr.f32.gmra.mrb[0].mxu0 %v2179
      %v2250 = vpop.f32.mrb[0].mxu0
      %v2251 = vadd.f32 0.0, %v2250
      %v2252 = vpop.f32.mrb[0].mxu0
      %2253 = vmatprep.mubr.f32.mxu0 0.0
      %2254 = vmatmul.mubr.f32.gmra.mrb[0].mxu0 %v2182
      %v2255 = vpop.f32.mrb[0].mxu0
      %v2256 = vadd.f32 0.0, %v2255
      %v2257 = vpop.f32.mrb[0].mxu0
      %2258 = vdwg.mxu0
      %v2259 = vld [vmem:[%s41 + $0x10] sm:$0xff]
      %v2260 = vld [vmem:[%s41 + $0x18] sm:$0xff]
      %v2262 = vsel %vm1858, %v2251, 0
      %v2265 = vsel %vm1858, %v2256, 0
      %2267 = vmatprep.subr.mxu0 0.0
      %2268 = vmatpush1.msra.mxu0 %v2259
      %2269 = vmatprep.subr.mxu0 0.0
      %2270 = vmatpush1.msra.mxu0 %v2260
      %2271 = vmatprep.subr.mxu0 0.0
      %2272 = vmatpush1.msra.mxu0 0.0
      %2273 = vmatprep.subr.mxu0 0.0
      %2274 = vmatpush1.msra.mxu0 0.0
      %2275 = vmatprep.subr.mxu0 0.0
      %2276 = vmatpush1.msra.mxu0 0.0
      %2277 = vmatprep.subr.mxu0 0.0
      %2278 = vmatpush1.msra.mxu0 0.0
      %2279 = vmatprep.subr.mxu0 0.0
      %2280 = vmatpush1.msra.mxu0 0.0
      %2281 = vmatprep.subr.mxu0 0.0
      %2282 = vmatpush1.msra.mxu0 0.0
      %2283 = vmatprep.subr.mxu0 0.0
      %2284 = vmatpush1.msra.mxu0 0.0
      %2285 = vmatprep.subr.mxu0 0.0
      %2286 = vmatpush1.msra.mxu0 0.0
      %2287 = vmatprep.subr.mxu0 0.0
      %2288 = vmatpush1.msra.mxu0 0.0
      %2289 = vmatprep.subr.mxu0 0.0
      %2290 = vmatpush1.msra.mxu0 0.0
      %2291 = vmatprep.subr.mxu0 0.0
      %2292 = vmatpush1.msra.mxu0 0.0
      %2293 = vmatprep.subr.mxu0 0.0
      %2294 = vmatpush1.msra.mxu0 0.0
      %2295 = vmatprep.subr.mxu0 0.0
      %2296 = vmatpush1.msra.mxu0 0.0
      %2297 = vmatprep.subr.mxu0 0.0
      %2298 = vmatpush1.msra.mxu0 0.0
      %2299 = vmatprep.subr.mxu0 0.0
      %2300 = vmatpush1.msra.mxu0 0.0
      %2301 = vmatprep.subr.mxu0 0.0
      %2302 = vmatpush1.msra.mxu0 0.0
      %2303 = vmatprep.subr.mxu0 0.0
      %2304 = vmatpush1.msra.mxu0 0.0
      %2305 = vmatprep.subr.mxu0 0.0
      %2306 = vmatpush1.msra.mxu0 0.0
      %2307 = vmatprep.subr.mxu0 0.0
      %2308 = vmatpush1.msra.mxu0 0.0
      %2309 = vmatprep.subr.mxu0 0.0
      %2310 = vmatpush1.msra.mxu0 0.0
      %2311 = vmatprep.subr.mxu0 0.0
      %2312 = vmatpush1.msra.mxu0 0.0
      %2313 = vmatprep.subr.mxu0 0.0
      %2314 = vmatpush1.msra.mxu0 0.0
      %2315 = vmatprep.subr.mxu0 0.0
      %2316 = vmatpush1.msra.mxu0 0.0
      %2317 = vmatprep.subr.mxu0 0.0
      %2318 = vmatpush1.msra.mxu0 0.0
      %2319 = vmatprep.subr.mxu0 0.0
      %2320 = vmatpush1.msra.mxu0 0.0
      %2321 = vmatprep.subr.mxu0 0.0
      %2322 = vmatpush1.msra.mxu0 0.0
      %2323 = vmatprep.subr.mxu0 0.0
      %2324 = vmatpush1.msra.mxu0 0.0
      %2325 = vmatprep.subr.mxu0 0.0
      %2326 = vmatpush1.msra.mxu0 0.0
      %2327 = vmatprep.subr.mxu0 0.0
      %2328 = vmatpush1.msra.mxu0 0.0
      %2329 = vmatprep.subr.mxu0 0.0
      %2330 = vmatpush1.msra.mxu0 0.0
      %2331 = vmatprep.mubr.f32.mxu0 0.0
      %2332 = vmatmul.mubr.f32.gmra.mrb[0].mxu0 %v2262
      %v2333 = vpop.f32.mrb[0].mxu0
      %v2334 = vadd.f32 0.0, %v2333
      %v2335 = vpop.f32.mrb[0].mxu0
      %2336 = vmatprep.mubr.f32.mxu0 0.0
      %2337 = vmatmul.mubr.f32.gmra.mrb[0].mxu0 %v2265
      %v2338 = vpop.f32.mrb[0].mxu0
      %v2339 = vadd.f32 0.0, %v2338
      %v2340 = vpop.f32.mrb[0].mxu0
      %2341 = vdwg.mxu0
      %v2343 = vsel %vm1858, %v2052, 0
      %v2346 = vsel %vm1858, %v2057, 0
      %2348 = vmatprep.subr.mxu0 0.0
      %2349 = vmatpush1.msra.mxu0 %v2060
      %2350 = vmatprep.subr.mxu0 0.0
      %2351 = vmatpush1.msra.mxu0 %v2061
      %2352 = vmatprep.subr.mxu0 0.0
      %2353 = vmatpush1.msra.mxu0 0.0
      %2354 = vmatprep.subr.mxu0 0.0
      %2355 = vmatpush1.msra.mxu0 0.0
      %2356 = vmatprep.subr.mxu0 0.0
      %2357 = vmatpush1.msra.mxu0 0.0
      %2358 = vmatprep.subr.mxu0 0.0
      %2359 = vmatpush1.msra.mxu0 0.0
      %2360 = vmatprep.subr.mxu0 0.0
      %2361 = vmatpush1.msra.mxu0 0.0
      %2362 = vmatprep.subr.mxu0 0.0
      %2363 = vmatpush1.msra.mxu0 0.0
      %2364 = vmatprep.subr.mxu0 0.0
      %2365 = vmatpush1.msra.mxu0 0.0
      %2366 = vmatprep.subr.mxu0 0.0
      %2367 = vmatpush1.msra.mxu0 0.0
      %2368 = vmatprep.subr.mxu0 0.0
      %2369 = vmatpush1.msra.mxu0 0.0
      %2370 = vmatprep.subr.mxu0 0.0
      %2371 = vmatpush1.msra.mxu0 0.0
      %2372 = vmatprep.subr.mxu0 0.0
      %2373 = vmatpush1.msra.mxu0 0.0
      %2374 = vmatprep.subr.mxu0 0.0
      %2375 = vmatpush1.msra.mxu0 0.0
      %2376 = vmatprep.subr.mxu0 0.0
      %2377 = vmatpush1.msra.mxu0 0.0
      %2378 = vmatprep.subr.mxu0 0.0
      %2379 = vmatpush1.msra.mxu0 0.0
      %2380 = vmatprep.subr.mxu0 0.0
      %2381 = vmatpush1.msra.mxu0 0.0
      %2382 = vmatprep.subr.mxu0 0.0
      %2383 = vmatpush1.msra.mxu0 0.0
      %2384 = vmatprep.subr.mxu0 0.0
      %2385 = vmatpush1.msra.mxu0 0.0
      %2386 = vmatprep.subr.mxu0 0.0
      %2387 = vmatpush1.msra.mxu0 0.0
      %2388 = vmatprep.subr.mxu0 0.0
      %2389 = vmatpush1.msra.mxu0 0.0
      %2390 = vmatprep.subr.mxu0 0.0
      %2391 = vmatpush1.msra.mxu0 0.0
      %2392 = vmatprep.subr.mxu0 0.0
      %2393 = vmatpush1.msra.mxu0 0.0
      %2394 = vmatprep.subr.mxu0 0.0
      %2395 = vmatpush1.msra.mxu0 0.0
      %2396 = vmatprep.subr.mxu0 0.0
      %2397 = vmatpush1.msra.mxu0 0.0
      %2398 = vmatprep.subr.mxu0 0.0
      %2399 = vmatpush1.msra.mxu0 0.0
      %2400 = vmatprep.subr.mxu0 0.0
      %2401 = vmatpush1.msra.mxu0 0.0
      %2402 = vmatprep.subr.mxu0 0.0
      %2403 = vmatpush1.msra.mxu0 0.0
      %2404 = vmatprep.subr.mxu0 0.0
      %2405 = vmatpush1.msra.mxu0 0.0
      %2406 = vmatprep.subr.mxu0 0.0
      %2407 = vmatpush1.msra.mxu0 0.0
      %2408 = vmatprep.subr.mxu0 0.0
      %2409 = vmatpush1.msra.mxu0 0.0
      %2410 = vmatprep.subr.mxu0 0.0
      %2411 = vmatpush1.msra.mxu0 0.0
      %2412 = vmatprep.mubr.f32.mxu0 0.0
      %2413 = vmatmul.mubr.f32.gmra.mrb[0].mxu0 %v2343
      %v2414 = vpop.f32.mrb[0].mxu0
      %v2415 = vadd.f32 %v2334, %v2414
      %v2416 = vpop.f32.mrb[0].mxu0
      %2417 = vmatprep.mubr.f32.mxu0 0.0
      %2418 = vmatmul.mubr.f32.gmra.mrb[0].mxu0 %v2346
      %v2419 = vpop.f32.mrb[0].mxu0
      %v2420 = vadd.f32 %v2339, %v2419
      %v2421 = vpop.f32.mrb[0].mxu0
      %2422 = vdwg.mxu0
      %v2423 = vld [vmem:[%s43] sm:$0x1]
      %v2425 = vlaneseq
      %v2426 = vshrl.u32 %v2425, 7
      %v2427 = vsub.s32 0, %v2426
      %v2428 = vrot.slane %v2423, %v2427
      %v2430 = vadd.f32 %v2415, %v2428
      %v2431 = vadd.f32 %v2420, %v2428
      %v2432 = vadd.f32 %v1635, %v2430
      %v2433 = vadd.f32 %v1636, %v2431
      %v2434 = vsel %vm1121, %v2432, 0.0
      %2435 = vadd.xlane.f32.xlu0 %v2434
      %v2436 = vpop.xlane.xlu0 %2435
      %v2437 = vsel %vm1121, %v2433, 0.0
      %2438 = vadd.xlane.f32.xlu0 %v2437
      %v2439 = vpop.xlane.xlu0 %2438
      %v2440 = vmul.f32 %v2436, %v1643
      %v2441 = vmul.f32 %v2439, %v1643
      %v2442 = vsub.f32 %v2432, %v2440
      %v2443 = vsub.f32 %v2433, %v2441
      %v2444 = vmul.f32 %v2442, %v2442
      %v2445 = vmul.f32 %v2443, %v2443
      %v2446 = vsel %vm1121, %v2444, 0.0
      %2447 = vadd.xlane.f32.xlu0 %v2446
      %v2448 = vpop.xlane.xlu0 %2447
      %v2449 = vsel %vm1121, %v2445, 0.0
      %2450 = vadd.xlane.f32.xlu0 %v2449
      %v2451 = vpop.xlane.xlu0 %2450
      %v2452 = vmul.f32 %v2448, %v1643
      %v2453 = vmul.f32 %v2451, %v1643
      %v2454 = vadd.f32 %v2452, 1e-05
      %v2455 = vadd.f32 %v2453, 1e-05
      %v2456 = vrsqrt.pop %v2454
      %v2457 = vrsqrt.pop %v2455
      %v2458 = vmul.f32 %v2442, %v2456
      %v2459 = vmul.f32 %v2443, %v2457
      %v2460 = vld [vmem:[%s45] sm:$0x1]
      %v2462 = vlaneseq
      %v2463 = vshrl.u32 %v2462, 7
      %v2464 = vsub.s32 0, %v2463
      %v2465 = vrot.slane %v2460, %v2464
      %v2467 = vmul.f32 %v2458, %v2465
      %v2468 = vmul.f32 %v2459, %v2465
      %v2469 = vld [vmem:[%s47] sm:$0x1]
      %v2471 = vlaneseq
      %v2472 = vshrl.u32 %v2471, 7
      %v2473 = vsub.s32 0, %v2472
      %v2474 = vrot.slane %v2469, %v2473
      %v2476 = vadd.f32 %v2467, %v2474
      %v2477 = vadd.f32 %v2468, %v2474
      %v2478 = vld [vmem:[%s49] sm:$0xff]
      %v2479 = vld [vmem:[%s49 + $0x8] sm:$0xff]
      %v2480 = vld [vmem:[%s49 + $0x10] sm:$0xff]
      %v2481 = vld [vmem:[%s49 + $0x18] sm:$0xff]
      %v2482 = vld [vmem:[%s51] sm:$0x1]
      %v2484 = vlaneseq
      %v2485 = vshrl.u32 %v2484, 7
      %v2486 = vsub.s32 0, %v2485
      %v2487 = vrot.slane %v2482, %v2486
      %v2490 = vsel %vm1121, %v2476, 0
      %v2493 = vsel %vm1121, %v2477, 0
      %2495 = vmatprep.subr.mxu0 0.0
      %2496 = vmatpush1.msra.mxu0 %v2478
      %2497 = vmatprep.subr.mxu0 0.0
      %2498 = vmatpush1.msra.mxu0 %v2479
      %2499 = vmatprep.subr.mxu0 0.0
      %2500 = vmatpush1.msra.mxu0 %v2480
      %2501 = vmatprep.subr.mxu0 0.0
      %2502 = vmatpush1.msra.mxu0 %v2481
      %2503 = vmatprep.subr.mxu0 0.0
      %2504 = vmatpush1.msra.mxu0 0.0
      %2505 = vmatprep.subr.mxu0 0.0
      %2506 = vmatpush1.msra.mxu0 0.0
      %2507 = vmatprep.subr.mxu0 0.0
      %2508 = vmatpush1.msra.mxu0 0.0
      %2509 = vmatprep.subr.mxu0 0.0
      %2510 = vmatpush1.msra.mxu0 0.0
      %2511 = vmatprep.subr.mxu0 0.0
      %2512 = vmatpush1.msra.mxu0 0.0
      %2513 = vmatprep.subr.mxu0 0.0
      %2514 = vmatpush1.msra.mxu0 0.0
      %2515 = vmatprep.subr.mxu0 0.0
      %2516 = vmatpush1.msra.mxu0 0.0
      %2517 = vmatprep.subr.mxu0 0.0
      %2518 = vmatpush1.msra.mxu0 0.0
      %2519 = vmatprep.subr.mxu0 0.0
      %2520 = vmatpush1.msra.mxu0 0.0
      %2521 = vmatprep.subr.mxu0 0.0
      %2522 = vmatpush1.msra.mxu0 0.0
      %2523 = vmatprep.subr.mxu0 0.0
      %2524 = vmatpush1.msra.mxu0 0.0
      %2525 = vmatprep.subr.mxu0 0.0
      %2526 = vmatpush1.msra.mxu0 0.0
      %2527 = vmatprep.subr.mxu0 0.0
      %2528 = vmatpush1.msra.mxu0 0.0
      %2529 = vmatprep.subr.mxu0 0.0
      %2530 = vmatpush1.msra.mxu0 0.0
      %2531 = vmatprep.subr.mxu0 0.0
      %2532 = vmatpush1.msra.mxu0 0.0
      %2533 = vmatprep.subr.mxu0 0.0
      %2534 = vmatpush1.msra.mxu0 0.0
      %2535 = vmatprep.subr.mxu0 0.0
      %2536 = vmatpush1.msra.mxu0 0.0
      %2537 = vmatprep.subr.mxu0 0.0
      %2538 = vmatpush1.msra.mxu0 0.0
      %2539 = vmatprep.subr.mxu0 0.0
      %2540 = vmatpush1.msra.mxu0 0.0
      %2541 = vmatprep.subr.mxu0 0.0
      %2542 = vmatpush1.msra.mxu0 0.0
      %2543 = vmatprep.subr.mxu0 0.0
      %2544 = vmatpush1.msra.mxu0 0.0
      %2545 = vmatprep.subr.mxu0 0.0
      %2546 = vmatpush1.msra.mxu0 0.0
      %2547 = vmatprep.subr.mxu0 0.0
      %2548 = vmatpush1.msra.mxu0 0.0
      %2549 = vmatprep.subr.mxu0 0.0
      %2550 = vmatpush1.msra.mxu0 0.0
      %2551 = vmatprep.subr.mxu0 0.0
      %2552 = vmatpush1.msra.mxu0 0.0
      %2553 = vmatprep.subr.mxu0 0.0
      %2554 = vmatpush1.msra.mxu0 0.0
      %2555 = vmatprep.subr.mxu0 0.0
      %2556 = vmatpush1.msra.mxu0 0.0
      %2557 = vmatprep.subr.mxu0 0.0
      %2558 = vmatpush1.msra.mxu0 0.0
      %2559 = vmatprep.mubr.f32.mxu0 0.0
      %2560 = vmatmul.mubr.f32.gmra.mrb[0].mxu0 %v2490
      %v2561 = vpop.f32.mrb[0].mxu0
      %v2562 = vadd.f32 %v2487, %v2561
      %v2563 = vpop.f32.mrb[0].mxu0
      %2564 = vmatprep.mubr.f32.mxu0 0.0
      %2565 = vmatmul.mubr.f32.gmra.mrb[0].mxu0 %v2493
      %v2566 = vpop.f32.mrb[0].mxu0
      %v2567 = vadd.f32 %v2487, %v2566
      %v2568 = vpop.f32.mrb[0].mxu0
      %2569 = vdwg.mxu0
      %v2570 = vmax.f32 %v2562, 0.0
      %v2571 = vmax.f32 %v2567, 0.0
      %v2572 = vld [vmem:[%s53] sm:$0xff]
      %v2573 = vld [vmem:[%s53 + $0x8] sm:$0xff]
      %v2574 = vld [vmem:[%s53 + $0x10] sm:$0xff]
      %v2575 = vld [vmem:[%s53 + $0x18] sm:$0xff]
      %v2576 = vld [vmem:[%s53 + $0x20] sm:$0xff]
      %v2577 = vld [vmem:[%s53 + $0x28] sm:$0xff]
      %v2578 = vld [vmem:[%s53 + $0x30] sm:$0xff]
      %v2579 = vld [vmem:[%s53 + $0x38] sm:$0xff]
      %v2580 = vld [vmem:[%s55] sm:$0x1]
      %v2582 = vlaneseq
      %v2583 = vshrl.u32 %v2582, 7
      %v2584 = vsub.s32 0, %v2583
      %v2585 = vrot.slane %v2580, %v2584
      %v2588 = vsel %vm1036, %v2570, 0
      %v2591 = vsel %vm1036, %v2571, 0
      %2593 = vmatprep.subr.mxu0 0.0
      %2594 = vmatpush1.msra.mxu0 %v2572
      %2595 = vmatprep.subr.mxu0 0.0
      %2596 = vmatpush1.msra.mxu0 %v2573
      %2597 = vmatprep.subr.mxu0 0.0
      %2598 = vmatpush1.msra.mxu0 %v2574
      %2599 = vmatprep.subr.mxu0 0.0
      %2600 = vmatpush1.msra.mxu0 %v2575
      %2601 = vmatprep.subr.mxu0 0.0
      %2602 = vmatpush1.msra.mxu0 %v2576
      %2603 = vmatprep.subr.mxu0 0.0
      %2604 = vmatpush1.msra.mxu0 %v2577
      %2605 = vmatprep.subr.mxu0 0.0
      %2606 = vmatpush1.msra.mxu0 %v2578
      %2607 = vmatprep.subr.mxu0 0.0
      %2608 = vmatpush1.msra.mxu0 %v2579
      %2609 = vmatprep.subr.mxu0 0.0
      %2610 = vmatpush1.msra.mxu0 0.0
      %2611 = vmatprep.subr.mxu0 0.0
      %2612 = vmatpush1.msra.mxu0 0.0
      %2613 = vmatprep.subr.mxu0 0.0
      %2614 = vmatpush1.msra.mxu0 0.0
      %2615 = vmatprep.subr.mxu0 0.0
      %2616 = vmatpush1.msra.mxu0 0.0
      %2617 = vmatprep.subr.mxu0 0.0
      %2618 = vmatpush1.msra.mxu0 0.0
      %2619 = vmatprep.subr.mxu0 0.0
      %2620 = vmatpush1.msra.mxu0 0.0
      %2621 = vmatprep.subr.mxu0 0.0
      %2622 = vmatpush1.msra.mxu0 0.0
      %2623 = vmatprep.subr.mxu0 0.0
      %2624 = vmatpush1.msra.mxu0 0.0
      %2625 = vmatprep.subr.mxu0 0.0
      %2626 = vmatpush1.msra.mxu0 0.0
      %2627 = vmatprep.subr.mxu0 0.0
      %2628 = vmatpush1.msra.mxu0 0.0
      %2629 = vmatprep.subr.mxu0 0.0
      %2630 = vmatpush1.msra.mxu0 0.0
      %2631 = vmatprep.subr.mxu0 0.0
      %2632 = vmatpush1.msra.mxu0 0.0
      %2633 = vmatprep.subr.mxu0 0.0
      %2634 = vmatpush1.msra.mxu0 0.0
      %2635 = vmatprep.subr.mxu0 0.0
      %2636 = vmatpush1.msra.mxu0 0.0
      %2637 = vmatprep.subr.mxu0 0.0
      %2638 = vmatpush1.msra.mxu0 0.0
      %2639 = vmatprep.subr.mxu0 0.0
      %2640 = vmatpush1.msra.mxu0 0.0
      %2641 = vmatprep.subr.mxu0 0.0
      %2642 = vmatpush1.msra.mxu0 0.0
      %2643 = vmatprep.subr.mxu0 0.0
      %2644 = vmatpush1.msra.mxu0 0.0
      %2645 = vmatprep.subr.mxu0 0.0
      %2646 = vmatpush1.msra.mxu0 0.0
      %2647 = vmatprep.subr.mxu0 0.0
      %2648 = vmatpush1.msra.mxu0 0.0
      %2649 = vmatprep.subr.mxu0 0.0
      %2650 = vmatpush1.msra.mxu0 0.0
      %2651 = vmatprep.subr.mxu0 0.0
      %2652 = vmatpush1.msra.mxu0 0.0
      %2653 = vmatprep.subr.mxu0 0.0
      %2654 = vmatpush1.msra.mxu0 0.0
      %2655 = vmatprep.subr.mxu0 0.0
      %2656 = vmatpush1.msra.mxu0 0.0
      %2657 = vmatprep.mubr.f32.mxu0 0.0
      %2658 = vmatmul.mubr.f32.gmra.mrb[0].mxu0 %v2588
      %v2659 = vpop.f32.mrb[0].mxu0
      %v2660 = vadd.f32 %v2585, %v2659
      %v2661 = vpop.f32.mrb[0].mxu0
      %2662 = vmatprep.mubr.f32.mxu0 0.0
      %2663 = vmatmul.mubr.f32.gmra.mrb[0].mxu0 %v2591
      %v2664 = vpop.f32.mrb[0].mxu0
      %v2665 = vadd.f32 %v2585, %v2664
      %v2666 = vpop.f32.mrb[0].mxu0
      %2667 = vdwg.mxu0
      %v2668 = vadd.f32 %v2432, %v2660
      %v2669 = vadd.f32 %v2433, %v2665
      %v2670 = vld [vmem:[%s57] sm:$0xff]
      %v2671 = vld [vmem:[%s57 + $0x8] sm:$0xff]
      %v2672 = vld [vmem:[%s57 + $0x10] sm:$0xff]
      %v2673 = vld [vmem:[%s57 + $0x18] sm:$0xff]
      %v2674 = vld [vmem:[%s59] sm:$0x1]
      %v2676 = vlaneseq
      %v2677 = vshrl.u32 %v2676, 7
      %v2678 = vsub.s32 0, %v2677
      %v2679 = vrot.slane %v2674, %v2678
      %v2682 = vsel %vm1121, %v2668, 0
      %v2685 = vsel %vm1121, %v2669, 0
      %2687 = vmatprep.subr.mxu0 0.0
      %2688 = vmatpush1.msra.mxu0 %v2670
      %2689 = vmatprep.subr.mxu0 0.0
      %2690 = vmatpush1.msra.mxu0 %v2671
      %2691 = vmatprep.subr.mxu0 0.0
      %2692 = vmatpush1.msra.mxu0 %v2672
      %2693 = vmatprep.subr.mxu0 0.0
      %2694 = vmatpush1.msra.mxu0 %v2673
      %2695 = vmatprep.subr.mxu0 0.0
      %2696 = vmatpush1.msra.mxu0 0.0
      %2697 = vmatprep.subr.mxu0 0.0
      %2698 = vmatpush1.msra.mxu0 0.0
      %2699 = vmatprep.subr.mxu0 0.0
      %2700 = vmatpush1.msra.mxu0 0.0
      %2701 = vmatprep.subr.mxu0 0.0
      %2702 = vmatpush1.msra.mxu0 0.0
      %2703 = vmatprep.subr.mxu0 0.0
      %2704 = vmatpush1.msra.mxu0 0.0
      %2705 = vmatprep.subr.mxu0 0.0
      %2706 = vmatpush1.msra.mxu0 0.0
      %2707 = vmatprep.subr.mxu0 0.0
      %2708 = vmatpush1.msra.mxu0 0.0
      %2709 = vmatprep.subr.mxu0 0.0
      %2710 = vmatpush1.msra.mxu0 0.0
      %2711 = vmatprep.subr.mxu0 0.0
      %2712 = vmatpush1.msra.mxu0 0.0
      %2713 = vmatprep.subr.mxu0 0.0
      %2714 = vmatpush1.msra.mxu0 0.0
      %2715 = vmatprep.subr.mxu0 0.0
      %2716 = vmatpush1.msra.mxu0 0.0
      %2717 = vmatprep.subr.mxu0 0.0
      %2718 = vmatpush1.msra.mxu0 0.0
      %2719 = vmatprep.subr.mxu0 0.0
      %2720 = vmatpush1.msra.mxu0 0.0
      %2721 = vmatprep.subr.mxu0 0.0
      %2722 = vmatpush1.msra.mxu0 0.0
      %2723 = vmatprep.subr.mxu0 0.0
      %2724 = vmatpush1.msra.mxu0 0.0
      %2725 = vmatprep.subr.mxu0 0.0
      %2726 = vmatpush1.msra.mxu0 0.0
      %2727 = vmatprep.subr.mxu0 0.0
      %2728 = vmatpush1.msra.mxu0 0.0
      %2729 = vmatprep.subr.mxu0 0.0
      %2730 = vmatpush1.msra.mxu0 0.0
      %2731 = vmatprep.subr.mxu0 0.0
      %2732 = vmatpush1.msra.mxu0 0.0
      %2733 = vmatprep.subr.mxu0 0.0
      %2734 = vmatpush1.msra.mxu0 0.0
      %2735 = vmatprep.subr.mxu0 0.0
      %2736 = vmatpush1.msra.mxu0 0.0
      %2737 = vmatprep.subr.mxu0 0.0
      %2738 = vmatpush1.msra.mxu0 0.0
      %2739 = vmatprep.subr.mxu0 0.0
      %2740 = vmatpush1.msra.mxu0 0.0
      %2741 = vmatprep.subr.mxu0 0.0
      %2742 = vmatpush1.msra.mxu0 0.0
      %2743 = vmatprep.subr.mxu0 0.0
      %2744 = vmatpush1.msra.mxu0 0.0
      %2745 = vmatprep.subr.mxu0 0.0
      %2746 = vmatpush1.msra.mxu0 0.0
      %2747 = vmatprep.subr.mxu0 0.0
      %2748 = vmatpush1.msra.mxu0 0.0
      %2749 = vmatprep.subr.mxu0 0.0
      %2750 = vmatpush1.msra.mxu0 0.0
      %2751 = vmatprep.mubr.f32.mxu0 0.0
      %2752 = vmatmul.mubr.f32.gmra.mrb[0].mxu0 %v2682
      %v2753 = vpop.f32.mrb[0].mxu0
      %v2754 = vadd.f32 %v2679, %v2753
      %v2755 = vpop.f32.mrb[0].mxu0
      %2756 = vmatprep.mubr.f32.mxu0 0.0
      %2757 = vmatmul.mubr.f32.gmra.mrb[0].mxu0 %v2685
      %v2758 = vpop.f32.mrb[0].mxu0
      %v2759 = vadd.f32 %v2679, %v2758
      %v2760 = vpop.f32.mrb[0].mxu0
      %2761 = vdwg.mxu0
      %v2762 = vld [vmem:[%s61] sm:$0xff]
      %v2763 = vld [vmem:[%s61 + $0x8] sm:$0xff]
      %v2764 = vld [vmem:[%s61 + $0x10] sm:$0xff]
      %v2765 = vld [vmem:[%s61 + $0x18] sm:$0xff]
      %v2766 = vld [vmem:[%s63] sm:$0x1]
      %2767 = vmatprep.subr.mxu0 0.0
      %2768 = vmatpush1.msra.mxu0 %v2762
      %2769 = vmatprep.subr.mxu0 0.0
      %2770 = vmatpush1.msra.mxu0 %v2763
      %2771 = vmatprep.subr.mxu0 0.0
      %2772 = vmatpush1.msra.mxu0 %v2764
      %2773 = vmatprep.subr.mxu0 0.0
      %2774 = vmatpush1.msra.mxu0 %v2765
      %2775 = vmatprep.subr.mxu0 0.0
      %2776 = vmatpush1.msra.mxu0 0.0
      %2777 = vmatprep.subr.mxu0 0.0
      %2778 = vmatpush1.msra.mxu0 0.0
      %2779 = vmatprep.subr.mxu0 0.0
      %2780 = vmatpush1.msra.mxu0 0.0
      %2781 = vmatprep.subr.mxu0 0.0
      %2782 = vmatpush1.msra.mxu0 0.0
      %2783 = vmatprep.subr.mxu0 0.0
      %2784 = vmatpush1.msra.mxu0 0.0
      %2785 = vmatprep.subr.mxu0 0.0
      %2786 = vmatpush1.msra.mxu0 0.0
      %2787 = vmatprep.subr.mxu0 0.0
      %2788 = vmatpush1.msra.mxu0 0.0
      %2789 = vmatprep.subr.mxu0 0.0
      %2790 = vmatpush1.msra.mxu0 0.0
      %2791 = vmatprep.subr.mxu0 0.0
      %2792 = vmatpush1.msra.mxu0 0.0
      %2793 = vmatprep.subr.mxu0 0.0
      %2794 = vmatpush1.msra.mxu0 0.0
      %2795 = vmatprep.subr.mxu0 0.0
      %2796 = vmatpush1.msra.mxu0 0.0
      %2797 = vmatprep.subr.mxu0 0.0
      %2798 = vmatpush1.msra.mxu0 0.0
      %2799 = vmatprep.subr.mxu0 0.0
      %2800 = vmatpush1.msra.mxu0 0.0
      %2801 = vmatprep.subr.mxu0 0.0
      %2802 = vmatpush1.msra.mxu0 0.0
      %2803 = vmatprep.subr.mxu0 0.0
      %2804 = vmatpush1.msra.mxu0 0.0
      %2805 = vmatprep.subr.mxu0 0.0
      %2806 = vmatpush1.msra.mxu0 0.0
      %2807 = vmatprep.subr.mxu0 0.0
      %2808 = vmatpush1.msra.mxu0 0.0
      %2809 = vmatprep.subr.mxu0 0.0
      %2810 = vmatpush1.msra.mxu0 0.0
      %2811 = vmatprep.subr.mxu0 0.0
      %2812 = vmatpush1.msra.mxu0 0.0
      %2813 = vmatprep.subr.mxu0 0.0
      %2814 = vmatpush1.msra.mxu0 0.0
      %2815 = vmatprep.subr.mxu0 0.0
      %2816 = vmatpush1.msra.mxu0 0.0
      %2817 = vmatprep.subr.mxu0 0.0
      %2818 = vmatpush1.msra.mxu0 0.0
      %2819 = vmatprep.subr.mxu0 0.0
      %2820 = vmatpush1.msra.mxu0 0.0
      %2821 = vmatprep.subr.mxu0 0.0
      %2822 = vmatpush1.msra.mxu0 0.0
      %2823 = vmatprep.subr.mxu0 0.0
      %2824 = vmatpush1.msra.mxu0 0.0
      %2825 = vmatprep.subr.mxu0 0.0
      %2826 = vmatpush1.msra.mxu0 0.0
      %2827 = vmatprep.subr.mxu0 0.0
      %2828 = vmatpush1.msra.mxu0 0.0
      %2829 = vmatprep.subr.mxu0 0.0
      %2830 = vmatpush1.msra.mxu0 0.0
      %2831 = vmatprep.mubr.f32.mxu0 0.0
      %2832 = vmatmul.mubr.f32.gmra.mrb[0].mxu0 %v1553
      %v2833 = vpop.f32.mrb[0].mxu0
      %v2834 = vadd.f32 %v2766, %v2833
      %v2835 = vpop.f32.mrb[0].mxu0
      %2836 = vdwg.mxu0
      %v2837 = vlaneseq
      %v2838 = vshrl.u32 %v2837, 7
      %v2839 = vsub.s32 0, %v2838
      %v2840 = vrot.slane %v2834, %v2839
      %v2841 = vmul.f32 %v2754, %v2840
      %v2842 = vmul.f32 %v2759, %v2840
      %v2843 = vsel %vm1858, %v2841, 0.0
      %2844 = vadd.xlane.f32.xlu0 %v2843
      %v2845 = vpop.xlane.xlu0 %2844
      %v2846 = vsel %vm1858, %v2842, 0.0
      %2847 = vadd.xlane.f32.xlu0 %v2846
      %v2848 = vpop.xlane.xlu0 %2847
      %v2849 = vadd.f32 %v2845, %v2840
      %v2850 = vadd.f32 %v2848, %v2840
      %2853 = vrot.lane.b32.xlu0 %v2849, 112
      %v2854 = vpop.permute.xlu0 %2853
      %2855 = vrot.lane.b32.xlu0 %v2850, 112
      %v2856 = vpop.permute.xlu0 %2855
      %vm2859 = vcmask 7168
      %2860 = vst.msk [vmem:[%s1017] sm:$0xff] %vm2859, %v2854
      %2861 = vst.msk [vmem:[%s1017 + $0x8] sm:$0xff] %vm2859, %v2856
      %p2862 = scmp.lt.s32.totalorder %s76, 1
      %s2863 = scalar_select %p2862, %s76, 1
      %s2864 = smul.addr %s2863, 2
      %s2865 = smul.addr %s2864, 8
      %s2866 = scalar_lea.vmem %s65, %s2865
      // Predicated region
      $region149: #{etris_forward.1} parent=147 // pred_check
        %p2867 = pneg %p781
      $region150: #{etris_forward.1} parent=147 // pred_check_branch
        %2869 = sbr.rel (%p2867) target = $region152
      $region151: #{etris_forward.1} parent=147 // pred_region
        _
      $region152: #{etris_forward.1} parent=147 // pred_fallthru
        _
    $region148: #{etris_forward.1} parent=5 // pred_fallthru
      _
    %p2870 = scmp.le.s32.totalorder 2, %s71
    // Predicated region
    $region153: #{etris_forward.1} parent=5 // pred_check
      %p2871 = pneg %p2870
    $region154: #{etris_forward.1} parent=5 // pred_check_branch
      %2873 = sbr.rel (%p2871) target = $region156
    $region155: #{etris_forward.1} parent=5 // pred_region
      %s2874 = ssub.s32 %s71, 2
      // Predicated region
      $region157: #{etris_forward.1} parent=155 // pred_check
        %p2875 = pneg %p787
      $region158: #{etris_forward.1} parent=155 // pred_check_branch
        %2877 = sbr.rel (%p2875) target = $region160
      $region159: #{etris_forward.1} parent=155 // pred_region
        %p2878 = scmp.lt.s32.totalorder %s77, 1
        %s2879 = scalar_select %p2878, %s77, 1
        %s2880 = smul.addr %s2879, 2
        %s2881 = smul.addr %s2880, 8
        %s2882 = scalar_lea.vmem %s65, %s2881
      $region160: #{etris_forward.1} parent=155 // pred_fallthru
        _
    $region156: #{etris_forward.1} parent=5 // pred_fallthru
      _
  $region6: #{etris_forward.1} parent=0 // loop_footer
    %s75 = sadd.s32 1, %s71
  $region7: #{etris_forward.1} parent=0 // loop_footer_branch
    %70 = sbr.rel target = $region3
  $region8: #{etris_forward.1} parent=0 // loop_exit
    _

</llo_original>
